<compile_context>
chip_gen: v7x
topology: tpu7x:2x2x1
jax: 0.10.0
libtpu: 0.0.40
codegen_flags: <defaults>
</compile_context>

<pallas_src>
import jax
import jax.numpy as jnp
from jax.experimental import pallas as pl
from jax.experimental.pallas import tpu as pltpu


def _round_up(n, m):
    return ((n + m - 1) // m) * m


# ----------------------------------------------------------------------------
# Pallas kernel 1: M-tiled matmul + bias + ReLU   (conv-as-GEMM hot path)
# ----------------------------------------------------------------------------
def _matmul_bias_relu_kernel(x_ref, w_ref, b_ref, o_ref):
    acc = jnp.dot(x_ref[...], w_ref[...], preferred_element_type=jnp.float32)
    o_ref[...] = jnp.maximum(acc + b_ref[...], 0.0).astype(o_ref.dtype)


def matmul_bias_relu(x, w, b, *, tm_max=512, out_dtype=jnp.bfloat16):
    """(M,K)@(K,N) + b, ReLU. x/w are bf16, accumulation is f32. Grid over row
    tiles; the (K,N) weight and (1,N) bias blocks stay VMEM-resident via
    constant index_maps. N (16/32) is NOT lane-padded: full-array last dim."""
    M, K = x.shape
    Kw, N = w.shape
    assert K == Kw and b.shape == (1, N)
    # Small M: a single grid step with minimal row padding (no per-step
    # overhead, no pad waste).  Large M: 512-row tiles sharded across cores.
    if M <= 4 * tm_max:
        tm = _round_up(max(M, 1), 8)
    else:
        tm = tm_max
    m_pad = _round_up(M, tm)
    if m_pad != M:
        x = jnp.pad(x, ((0, m_pad - M), (0, 0)))
    out = pl.pallas_call(
        _matmul_bias_relu_kernel,
        out_shape=jax.ShapeDtypeStruct((m_pad, N), out_dtype),
        grid=(m_pad // tm,),
        in_specs=[
            pl.BlockSpec((tm, K), lambda i: (i, 0)),
            pl.BlockSpec((K, N), lambda i: (0, 0)),   # resident across row tiles
            pl.BlockSpec((1, N), lambda i: (0, 0)),   # resident across row tiles
        ],
        out_specs=pl.BlockSpec((tm, N), lambda i: (i, 0)),
        compiler_params=pltpu.CompilerParams(
            dimension_semantics=("parallel",),
        ),
    )(x, w, b)
    return out[:M]


# ----------------------------------------------------------------------------
# Pallas kernel 2: fused fc1(+ReLU) -> folded (fc2 @ fc3) head.
# fc2 has no activation in the reference, so (fc2, fc3) are pre-folded into a
# single (1024, 8) bf16 column (real width 1, zero-padded to 8 lanes); the
# caller slices the real column back out.
# ----------------------------------------------------------------------------
def _fused_fc_kernel(x_ref, w1_ref, b1_ref, w23_ref, b23_ref, o_ref):
    h = jnp.dot(x_ref[...], w1_ref[...], preferred_element_type=jnp.float32)
    h = jnp.maximum(h + b1_ref[...], 0.0)                       # fc1 + ReLU
    o = jnp.dot(h.astype(jnp.bfloat16), w23_ref[...],           # folded fc2->fc3
                preferred_element_type=jnp.float32) + b23_ref[...]
    o_ref[...] = o.astype(o_ref.dtype)


def fused_fc(x, w1, b1, w23, b23, *, tm_max=512, n_out=1):
    M, K1 = x.shape
    _, H1 = w1.shape
    _, N3 = w23.shape
    if M <= tm_max:
        tm = _round_up(max(M, 1), 8)     # small batch: single tile, grid=1
    else:
        tm = tm_max                      # large batch: 512-row tiles
    m_pad = _round_up(M, tm)
    if m_pad != M:
        x = jnp.pad(x, ((0, m_pad - M), (0, 0)))
    out = pl.pallas_call(
        _fused_fc_kernel,
        out_shape=jax.ShapeDtypeStruct((m_pad, N3), jnp.float32),
        grid=(m_pad // tm,),
        in_specs=[
            pl.BlockSpec((tm, K1), lambda i: (i, 0)),
            pl.BlockSpec((K1, H1), lambda i: (0, 0)),   # bf16 fc1 weight, resident
            pl.BlockSpec((1, H1), lambda i: (0, 0)),    # fc1 bias (f32), resident
            pl.BlockSpec((H1, N3), lambda i: (0, 0)),   # folded fc2@fc3, resident
            pl.BlockSpec((1, N3), lambda i: (0, 0)),    # folded bias, resident
        ],
        out_specs=pl.BlockSpec((tm, N3), lambda i: (i, 0)),
        compiler_params=pltpu.CompilerParams(
            dimension_semantics=("parallel",),
            vmem_limit_bytes=32 * 1024 * 1024,
        ),
    )(x, w1, b1, w23, b23)
    return out[:M, :n_out]


# ----------------------------------------------------------------------------
# Pure-JAX glue (layout only — XLA fuses these, no extra Pallas launches)
# ----------------------------------------------------------------------------
def maxpool2x2(x):
    """2x2 max-pool, stride 2, floor mode (NHWC): 3 maxes of strided views."""
    B, H, W, C = x.shape
    oh, ow = H // 2, W // 2
    xc = x[:, : 2 * oh, : 2 * ow, :]
    m0 = jnp.maximum(xc[:, 0::2, 0::2, :], xc[:, 0::2, 1::2, :])
    m1 = jnp.maximum(xc[:, 1::2, 0::2, :], xc[:, 1::2, 1::2, :])
    return jnp.maximum(m0, m1)


def conv3x3_relu(x, w2d, b):
    """x: NHWC bf16; w2d: (9*Cin, Cout) bf16 (HWIO reshaped). Valid pad, ReLU."""
    B, H, W, Cin = x.shape
    oh, ow = H - 2, W - 2
    cout = w2d.shape[1]
    # im2col: contraction order (kh, kw, cin) matches the HWIO weight reshape.
    patches = jnp.concatenate(
        [x[:, di : di + oh, dj : dj + ow, :] for di in range(3) for dj in range(3)],
        axis=-1,
    ).reshape(B * oh * ow, 9 * Cin)
    out = matmul_bias_relu(patches, w2d, b)
    return out.reshape(B, oh, ow, cout)


# ----------------------------------------------------------------------------
# Parameters (deterministic synthetic init matching the PyTorch module shapes)
# ----------------------------------------------------------------------------
def init_params(key):
    ks = jax.random.split(key, 10)
    s = 0.05
    return {
        # conv weights in HWIO (3,3,Cin,Cout)  == PyTorch (Cout,Cin,3,3) transposed.
        "conv1_w": jax.random.normal(ks[0], (3, 3, 3, 16), jnp.float32) * s,
        "conv1_b": jax.random.normal(ks[1], (16,), jnp.float32) * s,
        "conv2_w": jax.random.normal(ks[2], (3, 3, 16, 32), jnp.float32) * s,
        "conv2_b": jax.random.normal(ks[3], (32,), jnp.float32) * s,
        # fc1 weight stored (in, out) with rows in NHWC-flatten order (h, w, c).
        # To import PyTorch weights:
        #   W.T.reshape(32, 5, 5, 1024).transpose(1, 2, 0, 3).reshape(800, 1024)
        "fc1_w": jax.random.normal(ks[4], (5 * 5 * 32, 1024), jnp.float32) * s,
        "fc1_b": jax.random.normal(ks[5], (1024,), jnp.float32) * s,
        "fc2_w": jax.random.normal(ks[6], (1024, 1024), jnp.float32) * s,
        "fc2_b": jax.random.normal(ks[7], (1024,), jnp.float32) * s,
        "fc3_w": jax.random.normal(ks[8], (1024, 1), jnp.float32) * s,
        "fc3_b": jax.random.normal(ks[9], (1,), jnp.float32) * s,
    }


def prepare_params(p):
    """One-time offline layout/precision plumbing (off the hot path):
       * conv weights reshaped to GEMM form (9*Cin, Cout), cast to bf16;
       * fc2 and fc3 (both linear, no activation between them in the
         reference) folded in f32 into a single (1024, 1) column, zero-padded
         to 8 lanes, cast to bf16;
       * fc1 weight cast to bf16;
       * biases kept f32 as (1, N) rows (added to the f32 accumulator)."""
    FC3_PAD = 8
    w23 = p["fc2_w"] @ p["fc3_w"]                         # (1024, 1), f32 fold
    b23 = (p["fc2_b"] @ p["fc3_w"] + p["fc3_b"]).reshape(1, -1)   # (1, 1)
    w23 = jnp.pad(w23, ((0, 0), (0, FC3_PAD - w23.shape[1])))
    b23 = jnp.pad(b23, ((0, 0), (0, FC3_PAD - b23.shape[1])))
    return {
        "conv1_w": p["conv1_w"].reshape(9 * 3, 16).astype(jnp.bfloat16),
        "conv1_b": p["conv1_b"].reshape(1, 16),
        "conv2_w": p["conv2_w"].reshape(9 * 16, 32).astype(jnp.bfloat16),
        "conv2_b": p["conv2_b"].reshape(1, 32),
        "fc1_w": p["fc1_w"].astype(jnp.bfloat16),
        "fc1_b": p["fc1_b"].reshape(1, 1024),
        "w23": w23.astype(jnp.bfloat16),
        "b23": b23,                                        # f32
    }


# ----------------------------------------------------------------------------
# Forward pass (mirrors RegressionNet.forward)
# ----------------------------------------------------------------------------
@jax.jit
def regression_net_forward(prep, x_nchw):
    B = x_nchw.shape[0]
    x = jnp.transpose(x_nchw, (0, 2, 3, 1)).astype(jnp.bfloat16)   # NCHW -> NHWC
    x = conv3x3_relu(x, prep["conv1_w"], prep["conv1_b"])          # (B,26,26,16)
    x = maxpool2x2(x)                                              # (B,13,13,16)
    x = conv3x3_relu(x, prep["conv2_w"], prep["conv2_b"])          # (B,11,11,32)
    x = maxpool2x2(x)                                              # (B,5,5,32)
    # NHWC flatten; fc1_w rows are pre-permuted to this order (no transpose).
    x = x.reshape(B, 5 * 5 * 32)
    return fused_fc(x, prep["fc1_w"], prep["fc1_b"],
                    prep["w23"], prep["b23"], n_out=1)             # (B,1)


if __name__ == "__main__":
    # Input implied by the module: fc1 expects 32*5*5 => input is (B, 3, 28, 28).
    x = jax.random.normal(jax.random.PRNGKey(0), (2, 3, 28, 28), jnp.float32)
    params = prepare_params(init_params(jax.random.PRNGKey(42)))

    out = regression_net_forward(params, x)
    out = jax.block_until_ready(out)
    assert out.shape == (2, 1), out.shape
    print("KERNEL_OK")
</pallas_src>

<mosaic_0001>
module attributes {stable_mosaic.version = 11 : i64} {
  func.func @_matmul_bias_relu_kernel(%arg0: i32, %arg1: memref<1352x27xbf16, #tpu.memory_space<vmem>>, %arg2: memref<27x16xbf16, #tpu.memory_space<vmem>>, %arg3: memref<1x16xf32, #tpu.memory_space<vmem>>, %arg4: memref<1352x16xbf16, #tpu.memory_space<vmem>>) attributes {dimension_semantics = [#tpu.dimension_semantics<parallel>], iteration_bounds = array<i64: 1>, scalar_prefetch = 0 : i64, scratch_operands = 0 : i64, tpu.core_type = #tpu.core_type<tc>, window_params = [{transform_indices = @transform_0, window_bounds = array<i64: 1352, 27>}, {pipeline_mode = #tpu.pipeline_mode<synchronous>, transform_indices = @transform_1, window_bounds = array<i64: 27, 16>}, {pipeline_mode = #tpu.pipeline_mode<synchronous>, transform_indices = @transform_2, window_bounds = array<i64: 1, 16>}, {transform_indices = @transform_3, window_bounds = array<i64: 1352, 16>}]} {
    %c0 = arith.constant 0 : index
    %c0_0 = arith.constant 0 : index
    %0 = vector.load %arg1[%c0, %c0_0] : memref<1352x27xbf16, #tpu.memory_space<vmem>>, vector<1352x27xbf16>
    %c0_1 = arith.constant 0 : index
    %c0_2 = arith.constant 0 : index
    %1 = vector.load %arg2[%c0_1, %c0_2] : memref<27x16xbf16, #tpu.memory_space<vmem>>, vector<27x16xbf16>
    %cst = arith.constant dense<0.000000e+00> : vector<1352x16xf32>
    %2 = tpu.matmul %0, %1, %cst {dimension_numbers = #tpu.dot_dimension_numbers<[1], [0], [0], [1], [0, 0, 1, 1], [], []>} : vector<1352x27xbf16>, vector<27x16xbf16>, vector<1352x16xf32> -> vector<1352x16xf32>
    %c0_3 = arith.constant 0 : index
    %c0_4 = arith.constant 0 : index
    %3 = vector.load %arg3[%c0_3, %c0_4] : memref<1x16xf32, #tpu.memory_space<vmem>>, vector<1x16xf32>
    %4 = vector.broadcast %3 : vector<1x16xf32> to vector<1352x16xf32>
    %5 = arith.addf %2, %4 : vector<1352x16xf32>
    %cst_5 = arith.constant 0.000000e+00 : f32
    %6 = vector.broadcast %cst_5 : f32 to vector<1352x16xf32>
    %7 = arith.maximumf %5, %6 : vector<1352x16xf32>
    %8 = arith.truncf %7 : vector<1352x16xf32> to vector<1352x16xbf16>
    %c0_6 = arith.constant 0 : index
    %c0_7 = arith.constant 0 : index
    %9 = vector.load %arg4[%c0_6, %c0_7] : memref<1352x16xbf16, #tpu.memory_space<vmem>>, vector<1352x16xbf16>
    tpu.vector_store %arg4[%c0_6, %c0_7], %8 {strides = array<i32>} : memref<1352x16xbf16, #tpu.memory_space<vmem>>, vector<1352x16xbf16>,
    return
  }
  func.func @transform_0(%arg0: i32) -> (i32, i32) {
    %c0_i32 = arith.constant 0 : i32
    %c0_i32_0 = arith.constant 0 : i32
    return %arg0, %c0_i32 : i32, i32
  }
  func.func @transform_1(%arg0: i32) -> (i32, i32) {
    %c0_i32 = arith.constant 0 : i32
    %c0_i32_0 = arith.constant 0 : i32
    %c0_i32_1 = arith.constant 0 : i32
    return %c0_i32, %c0_i32_0 : i32, i32
  }
  func.func @transform_2(%arg0: i32) -> (i32, i32) {
    %c0_i32 = arith.constant 0 : i32
    %c0_i32_0 = arith.constant 0 : i32
    %c0_i32_1 = arith.constant 0 : i32
    return %c0_i32, %c0_i32_0 : i32, i32
  }
  func.func @transform_3(%arg0: i32) -> (i32, i32) {
    %c0_i32 = arith.constant 0 : i32
    %c0_i32_0 = arith.constant 0 : i32
    return %arg0, %c0_i32 : i32, i32
  }
}

module attributes {stable_mosaic.version = 11 : i64} {
  func.func @_matmul_bias_relu_kernel(%arg0: i32, %arg1: memref<248x144xbf16, #tpu.memory_space<vmem>>, %arg2: memref<144x32xbf16, #tpu.memory_space<vmem>>, %arg3: memref<1x32xf32, #tpu.memory_space<vmem>>, %arg4: memref<248x32xbf16, #tpu.memory_space<vmem>>) attributes {dimension_semantics = [#tpu.dimension_semantics<parallel>], iteration_bounds = array<i64: 1>, scalar_prefetch = 0 : i64, scratch_operands = 0 : i64, tpu.core_type = #tpu.core_type<tc>, window_params = [{transform_indices = @transform_0, window_bounds = array<i64: 248, 144>}, {pipeline_mode = #tpu.pipeline_mode<synchronous>, transform_indices = @transform_1, window_bounds = array<i64: 144, 32>}, {pipeline_mode = #tpu.pipeline_mode<synchronous>, transform_indices = @transform_2, window_bounds = array<i64: 1, 32>}, {transform_indices = @transform_3, window_bounds = array<i64: 248, 32>}]} {
    %c0 = arith.constant 0 : index
    %c0_0 = arith.constant 0 : index
    %0 = vector.load %arg1[%c0, %c0_0] : memref<248x144xbf16, #tpu.memory_space<vmem>>, vector<248x144xbf16>
    %c0_1 = arith.constant 0 : index
    %c0_2 = arith.constant 0 : index
    %1 = vector.load %arg2[%c0_1, %c0_2] : memref<144x32xbf16, #tpu.memory_space<vmem>>, vector<144x32xbf16>
    %cst = arith.constant dense<0.000000e+00> : vector<248x32xf32>
    %2 = tpu.matmul %0, %1, %cst {dimension_numbers = #tpu.dot_dimension_numbers<[1], [0], [0], [1], [0, 0, 1, 1], [], []>} : vector<248x144xbf16>, vector<144x32xbf16>, vector<248x32xf32> -> vector<248x32xf32>
    %c0_3 = arith.constant 0 : index
    %c0_4 = arith.constant 0 : index
    %3 = vector.load %arg3[%c0_3, %c0_4] : memref<1x32xf32, #tpu.memory_space<vmem>>, vector<1x32xf32>
    %4 = vector.broadcast %3 : vector<1x32xf32> to vector<248x32xf32>
    %5 = arith.addf %2, %4 : vector<248x32xf32>
    %cst_5 = arith.constant 0.000000e+00 : f32
    %6 = vector.broadcast %cst_5 : f32 to vector<248x32xf32>
    %7 = arith.maximumf %5, %6 : vector<248x32xf32>
    %8 = arith.truncf %7 : vector<248x32xf32> to vector<248x32xbf16>
    %c0_6 = arith.constant 0 : index
    %c0_7 = arith.constant 0 : index
    %9 = vector.load %arg4[%c0_6, %c0_7] : memref<248x32xbf16, #tpu.memory_space<vmem>>, vector<248x32xbf16>
    tpu.vector_store %arg4[%c0_6, %c0_7], %8 {strides = array<i32>} : memref<248x32xbf16, #tpu.memory_space<vmem>>, vector<248x32xbf16>,
    return
  }
  func.func @transform_0(%arg0: i32) -> (i32, i32) {
    %c0_i32 = arith.constant 0 : i32
    %c0_i32_0 = arith.constant 0 : i32
    return %arg0, %c0_i32 : i32, i32
  }
  func.func @transform_1(%arg0: i32) -> (i32, i32) {
    %c0_i32 = arith.constant 0 : i32
    %c0_i32_0 = arith.constant 0 : i32
    %c0_i32_1 = arith.constant 0 : i32
    return %c0_i32, %c0_i32_0 : i32, i32
  }
  func.func @transform_2(%arg0: i32) -> (i32, i32) {
    %c0_i32 = arith.constant 0 : i32
    %c0_i32_0 = arith.constant 0 : i32
    %c0_i32_1 = arith.constant 0 : i32
    return %c0_i32, %c0_i32_0 : i32, i32
  }
  func.func @transform_3(%arg0: i32) -> (i32, i32) {
    %c0_i32 = arith.constant 0 : i32
    %c0_i32_0 = arith.constant 0 : i32
    return %arg0, %c0_i32 : i32, i32
  }
}

module attributes {stable_mosaic.version = 11 : i64} {
  func.func @_fused_fc_kernel(%arg0: i32, %arg1: memref<8x800xbf16, #tpu.memory_space<vmem>>, %arg2: memref<800x1024xbf16, #tpu.memory_space<vmem>>, %arg3: memref<1x1024xf32, #tpu.memory_space<vmem>>, %arg4: memref<1024x8xbf16, #tpu.memory_space<vmem>>, %arg5: memref<1x8xf32, #tpu.memory_space<vmem>>, %arg6: memref<8x8xf32, #tpu.memory_space<vmem>>) attributes {dimension_semantics = [#tpu.dimension_semantics<parallel>], iteration_bounds = array<i64: 1>, scalar_prefetch = 0 : i64, scratch_operands = 0 : i64, tpu.core_type = #tpu.core_type<tc>, window_params = [{transform_indices = @transform_0, window_bounds = array<i64: 8, 800>}, {pipeline_mode = #tpu.pipeline_mode<synchronous>, transform_indices = @transform_1, window_bounds = array<i64: 800, 1024>}, {pipeline_mode = #tpu.pipeline_mode<synchronous>, transform_indices = @transform_2, window_bounds = array<i64: 1, 1024>}, {pipeline_mode = #tpu.pipeline_mode<synchronous>, transform_indices = @transform_3, window_bounds = array<i64: 1024, 8>}, {pipeline_mode = #tpu.pipeline_mode<synchronous>, transform_indices = @transform_4, window_bounds = array<i64: 1, 8>}, {transform_indices = @transform_5, window_bounds = array<i64: 8, 8>}]} {
    %c0 = arith.constant 0 : index
    %c0_0 = arith.constant 0 : index
    %0 = vector.load %arg1[%c0, %c0_0] : memref<8x800xbf16, #tpu.memory_space<vmem>>, vector<8x800xbf16>
    %c0_1 = arith.constant 0 : index
    %c0_2 = arith.constant 0 : index
    %1 = vector.load %arg2[%c0_1, %c0_2] : memref<800x1024xbf16, #tpu.memory_space<vmem>>, vector<800x1024xbf16>
    %cst = arith.constant dense<0.000000e+00> : vector<8x1024xf32>
    %2 = tpu.matmul %0, %1, %cst {dimension_numbers = #tpu.dot_dimension_numbers<[1], [0], [0], [1], [0, 0, 1, 1], [], []>} : vector<8x800xbf16>, vector<800x1024xbf16>, vector<8x1024xf32> -> vector<8x1024xf32>
    %c0_3 = arith.constant 0 : index
    %c0_4 = arith.constant 0 : index
    %3 = vector.load %arg3[%c0_3, %c0_4] : memref<1x1024xf32, #tpu.memory_space<vmem>>, vector<1x1024xf32>
    %4 = vector.broadcast %3 : vector<1x1024xf32> to vector<8x1024xf32>
    %5 = arith.addf %2, %4 : vector<8x1024xf32>
    %cst_5 = arith.constant 0.000000e+00 : f32
    %6 = vector.broadcast %cst_5 : f32 to vector<8x1024xf32>
    %7 = arith.maximumf %5, %6 : vector<8x1024xf32>
    %8 = arith.truncf %7 : vector<8x1024xf32> to vector<8x1024xbf16>
    %c0_6 = arith.constant 0 : index
    %c0_7 = arith.constant 0 : index
    %9 = vector.load %arg4[%c0_6, %c0_7] : memref<1024x8xbf16, #tpu.memory_space<vmem>>, vector<1024x8xbf16>
    %cst_8 = arith.constant dense<0.000000e+00> : vector<8x8xf32>
    %10 = tpu.matmul %8, %9, %cst_8 {dimension_numbers = #tpu.dot_dimension_numbers<[1], [0], [0], [1], [0, 0, 1, 1], [], []>} : vector<8x1024xbf16>, vector<1024x8xbf16>, vector<8x8xf32> -> vector<8x8xf32>
    %c0_9 = arith.constant 0 : index
    %c0_10 = arith.constant 0 : index
    %11 = vector.load %arg5[%c0_9, %c0_10] : memref<1x8xf32, #tpu.memory_space<vmem>>, vector<1x8xf32>
    %12 = vector.broadcast %11 : vector<1x8xf32> to vector<8x8xf32>
    %13 = arith.addf %10, %12 : vector<8x8xf32>
    %c0_11 = arith.constant 0 : index
    %c0_12 = arith.constant 0 : index
    %14 = vector.load %arg6[%c0_11, %c0_12] : memref<8x8xf32, #tpu.memory_space<vmem>>, vector<8x8xf32>
    tpu.vector_store %arg6[%c0_11, %c0_12], %13 {strides = array<i32>} : memref<8x8xf32, #tpu.memory_space<vmem>>, vector<8x8xf32>,
    return
  }
  func.func @transform_0(%arg0: i32) -> (i32, i32) {
    %c0_i32 = arith.constant 0 : i32
    %c0_i32_0 = arith.constant 0 : i32
    return %arg0, %c0_i32 : i32, i32
  }
  func.func @transform_1(%arg0: i32) -> (i32, i32) {
    %c0_i32 = arith.constant 0 : i32
    %c0_i32_0 = arith.constant 0 : i32
    %c0_i32_1 = arith.constant 0 : i32
    return %c0_i32, %c0_i32_0 : i32, i32
  }
  func.func @transform_2(%arg0: i32) -> (i32, i32) {
    %c0_i32 = arith.constant 0 : i32
    %c0_i32_0 = arith.constant 0 : i32
    %c0_i32_1 = arith.constant 0 : i32
    return %c0_i32, %c0_i32_0 : i32, i32
  }
  func.func @transform_3(%arg0: i32) -> (i32, i32) {
    %c0_i32 = arith.constant 0 : i32
    %c0_i32_0 = arith.constant 0 : i32
    %c0_i32_1 = arith.constant 0 : i32
    return %c0_i32, %c0_i32_0 : i32, i32
  }
  func.func @transform_4(%arg0: i32) -> (i32, i32) {
    %c0_i32 = arith.constant 0 : i32
    %c0_i32_0 = arith.constant 0 : i32
    %c0_i32_1 = arith.constant 0 : i32
    return %c0_i32, %c0_i32_0 : i32, i32
  }
  func.func @transform_5(%arg0: i32) -> (i32, i32) {
    %c0_i32 = arith.constant 0 : i32
    %c0_i32_0 = arith.constant 0 : i32
    return %arg0, %c0_i32 : i32, i32
  }
}

</mosaic_0001>

<llo_original>
// kernel: regression_net_forward.3
$region0: #{regression_net_forward.3}
  #allocation0 [shape = 'u32[]', space=smem, size = 0x4, offset = 0x4, fixed_abs, tag = 'smem constant byte address 0x4 - core index']
  #allocation1 [shape = 'u32[144,128]{1,0:T(1,128)}', space=vmem, size = 0x12000, scoped, tag = 'internal scratch']
  %s0 = inlined_call_operand.vmem [shape: bf16[1352,27], index: 0, kind: input, shape index: {}]
  %s1 = inlined_call_operand.vmem [shape: bf16[27,16], index: 1, kind: input, shape index: {}]
  %s2 = inlined_call_operand.vmem [shape: f32[1,16], index: 2, kind: input, shape index: {}]
  %s3 = inlined_call_operand.vmem [shape: bf16[1352,16], index: 3, kind: output, shape index: {}]
  %s4 = sld [smem:[#allocation0]]
  $region22: #{regression_net_forward.3} parent=0
    _
  %s6 = ssub.s32 1, %s4
  %s7 = scalar_select 0, %s6, %s4
  // Predicated region
  $region2: #{regression_net_forward.3} parent=0 // pred_check
    _
  $region3: #{regression_net_forward.3} parent=0 // pred_check_branch
    %9 = sbr.rel (0) target = $region5
  $region4: #{regression_net_forward.3} parent=0 // pred_region
    _
  $region5: #{regression_net_forward.3} parent=0 // pred_fallthru
    _
  // Predicated region
  $region6: #{regression_net_forward.3} parent=0 // pred_check
    _
  $region7: #{regression_net_forward.3} parent=0 // pred_check_branch
    %11 = sbr.rel (0) target = $region9
  $region8: #{regression_net_forward.3} parent=0 // pred_region
    _
  $region9: #{regression_net_forward.3} parent=0 // pred_fallthru
    _
  // Predicated region
  $region10: #{regression_net_forward.3} parent=0 // pred_check
    _
  $region11: #{regression_net_forward.3} parent=0 // pred_check_branch
    %13 = sbr.rel (0) target = $region13
  $region12: #{regression_net_forward.3} parent=0 // pred_region
    _
  $region13: #{regression_net_forward.3} parent=0 // pred_fallthru
    _
  %v15 = vld [vmem:[%s0] sm:$0xf]
  %v16 = vld [vmem:[%s0 + $0x4] sm:$0xf]
  %v17 = vld [vmem:[%s0 + $0x8] sm:$0xf]
  %v18 = vld [vmem:[%s0 + $0xc] sm:$0xf]
  %v19 = vld [vmem:[%s0 + $0x10] sm:$0xf]
  %v20 = vld [vmem:[%s0 + $0x14] sm:$0xf]
  %v21 = vld [vmem:[%s0 + $0x18] sm:$0xf]
  %v22 = vld [vmem:[%s0 + $0x1c] sm:$0xf]
  %v23 = vld [vmem:[%s0 + $0x20] sm:$0xf]
  %v24 = vld [vmem:[%s0 + $0x24] sm:$0xf]
  %v25 = vld [vmem:[%s0 + $0x28] sm:$0xf]
  %v26 = vld [vmem:[%s0 + $0x2c] sm:$0xf]
  %v27 = vld [vmem:[%s0 + $0x30] sm:$0xf]
  %v28 = vld [vmem:[%s0 + $0x34] sm:$0xf]
  %v29 = vld [vmem:[%s0 + $0x38] sm:$0xf]
  %v30 = vld [vmem:[%s0 + $0x3c] sm:$0xf]
  %v31 = vld [vmem:[%s0 + $0x40] sm:$0xf]
  %v32 = vld [vmem:[%s0 + $0x44] sm:$0xf]
  %v33 = vld [vmem:[%s0 + $0x48] sm:$0xf]
  %v34 = vld [vmem:[%s0 + $0x4c] sm:$0xf]
  %v35 = vld [vmem:[%s0 + $0x50] sm:$0xf]
  %v36 = vld [vmem:[%s0 + $0x54] sm:$0xf]
  %v37 = vld [vmem:[%s0 + $0x58] sm:$0xf]
  %v38 = vld [vmem:[%s0 + $0x5c] sm:$0xf]
  %v39 = vld [vmem:[%s0 + $0x60] sm:$0xf]
  %v40 = vld [vmem:[%s0 + $0x64] sm:$0xf]
  %v41 = vld [vmem:[%s0 + $0x68] sm:$0xf]
  %v42 = vld [vmem:[%s0 + $0x6c] sm:$0xf]
  %v43 = vld [vmem:[%s0 + $0x70] sm:$0xf]
  %v44 = vld [vmem:[%s0 + $0x74] sm:$0xf]
  %v45 = vld [vmem:[%s0 + $0x78] sm:$0xf]
  %v46 = vld [vmem:[%s0 + $0x7c] sm:$0xf]
  %v47 = vld [vmem:[%s0 + $0x80] sm:$0xf]
  %v48 = vld [vmem:[%s0 + $0x84] sm:$0xf]
  %v49 = vld [vmem:[%s0 + $0x88] sm:$0xf]
  %v50 = vld [vmem:[%s0 + $0x8c] sm:$0xf]
  %v51 = vld [vmem:[%s0 + $0x90] sm:$0xf]
  %v52 = vld [vmem:[%s0 + $0x94] sm:$0xf]
  %v53 = vld [vmem:[%s0 + $0x98] sm:$0xf]
  %v54 = vld [vmem:[%s0 + $0x9c] sm:$0xf]
  %v55 = vld [vmem:[%s0 + $0xa0] sm:$0xf]
  %v56 = vld [vmem:[%s0 + $0xa4] sm:$0xf]
  %v57 = vld [vmem:[%s0 + $0xa8] sm:$0xf]
  %v58 = vld [vmem:[%s0 + $0xac] sm:$0xf]
  %v59 = vld [vmem:[%s0 + $0xb0] sm:$0xf]
  %v60 = vld [vmem:[%s0 + $0xb4] sm:$0xf]
  %v61 = vld [vmem:[%s0 + $0xb8] sm:$0xf]
  %v62 = vld [vmem:[%s0 + $0xbc] sm:$0xf]
  %v63 = vld [vmem:[%s0 + $0xc0] sm:$0xf]
  %v64 = vld [vmem:[%s0 + $0xc4] sm:$0xf]
  %v65 = vld [vmem:[%s0 + $0xc8] sm:$0xf]
  %v66 = vld [vmem:[%s0 + $0xcc] sm:$0xf]
  %v67 = vld [vmem:[%s0 + $0xd0] sm:$0xf]
  %v68 = vld [vmem:[%s0 + $0xd4] sm:$0xf]
  %v69 = vld [vmem:[%s0 + $0xd8] sm:$0xf]
  %v70 = vld [vmem:[%s0 + $0xdc] sm:$0xf]
  %v71 = vld [vmem:[%s0 + $0xe0] sm:$0xf]
  %v72 = vld [vmem:[%s0 + $0xe4] sm:$0xf]
  %v73 = vld [vmem:[%s0 + $0xe8] sm:$0xf]
  %v74 = vld [vmem:[%s0 + $0xec] sm:$0xf]
  %v75 = vld [vmem:[%s0 + $0xf0] sm:$0xf]
  %v76 = vld [vmem:[%s0 + $0xf4] sm:$0xf]
  %v77 = vld [vmem:[%s0 + $0xf8] sm:$0xf]
  %v78 = vld [vmem:[%s0 + $0xfc] sm:$0xf]
  %v79 = vld [vmem:[%s0 + $0x100] sm:$0xf]
  %v80 = vld [vmem:[%s0 + $0x104] sm:$0xf]
  %v81 = vld [vmem:[%s0 + $0x108] sm:$0xf]
  %v82 = vld [vmem:[%s0 + $0x10c] sm:$0xf]
  %v83 = vld [vmem:[%s0 + $0x110] sm:$0xf]
  %v84 = vld [vmem:[%s0 + $0x114] sm:$0xf]
  %v85 = vld [vmem:[%s0 + $0x118] sm:$0xf]
  %v86 = vld [vmem:[%s0 + $0x11c] sm:$0xf]
  %v87 = vld [vmem:[%s0 + $0x120] sm:$0xf]
  %v88 = vld [vmem:[%s0 + $0x124] sm:$0xf]
  %v89 = vld [vmem:[%s0 + $0x128] sm:$0xf]
  %v90 = vld [vmem:[%s0 + $0x12c] sm:$0xf]
  %v91 = vld [vmem:[%s0 + $0x130] sm:$0xf]
  %v92 = vld [vmem:[%s0 + $0x134] sm:$0xf]
  %v93 = vld [vmem:[%s0 + $0x138] sm:$0xf]
  %v94 = vld [vmem:[%s0 + $0x13c] sm:$0xf]
  %v95 = vld [vmem:[%s0 + $0x140] sm:$0xf]
  %v96 = vld [vmem:[%s0 + $0x144] sm:$0xf]
  %v97 = vld [vmem:[%s0 + $0x148] sm:$0xf]
  %v98 = vld [vmem:[%s0 + $0x14c] sm:$0xf]
  %v99 = vld [vmem:[%s0 + $0x150] sm:$0xf]
  %v100 = vld [vmem:[%s0 + $0x154] sm:$0xf]
  %v101 = vld [vmem:[%s0 + $0x158] sm:$0xf]
  %v102 = vld [vmem:[%s0 + $0x15c] sm:$0xf]
  %v103 = vld [vmem:[%s0 + $0x160] sm:$0xf]
  %v104 = vld [vmem:[%s0 + $0x164] sm:$0xf]
  %v105 = vld [vmem:[%s0 + $0x168] sm:$0xf]
  %v106 = vld [vmem:[%s0 + $0x16c] sm:$0xf]
  %v107 = vld [vmem:[%s0 + $0x170] sm:$0xf]
  %v108 = vld [vmem:[%s0 + $0x174] sm:$0xf]
  %v109 = vld [vmem:[%s0 + $0x178] sm:$0xf]
  %v110 = vld [vmem:[%s0 + $0x17c] sm:$0xf]
  %v111 = vld [vmem:[%s0 + $0x180] sm:$0xf]
  %v112 = vld [vmem:[%s0 + $0x184] sm:$0xf]
  %v113 = vld [vmem:[%s0 + $0x188] sm:$0xf]
  %v114 = vld [vmem:[%s0 + $0x18c] sm:$0xf]
  %v115 = vld [vmem:[%s0 + $0x190] sm:$0xf]
  %v116 = vld [vmem:[%s0 + $0x194] sm:$0xf]
  %v117 = vld [vmem:[%s0 + $0x198] sm:$0xf]
  %v118 = vld [vmem:[%s0 + $0x19c] sm:$0xf]
  %v119 = vld [vmem:[%s0 + $0x1a0] sm:$0xf]
  %v120 = vld [vmem:[%s0 + $0x1a4] sm:$0xf]
  %v121 = vld [vmem:[%s0 + $0x1a8] sm:$0xf]
  %v122 = vld [vmem:[%s0 + $0x1ac] sm:$0xf]
  %v123 = vld [vmem:[%s0 + $0x1b0] sm:$0xf]
  %v124 = vld [vmem:[%s0 + $0x1b4] sm:$0xf]
  %v125 = vld [vmem:[%s0 + $0x1b8] sm:$0xf]
  %v126 = vld [vmem:[%s0 + $0x1bc] sm:$0xf]
  %v127 = vld [vmem:[%s0 + $0x1c0] sm:$0xf]
  %v128 = vld [vmem:[%s0 + $0x1c4] sm:$0xf]
  %v129 = vld [vmem:[%s0 + $0x1c8] sm:$0xf]
  %v130 = vld [vmem:[%s0 + $0x1cc] sm:$0xf]
  %v131 = vld [vmem:[%s0 + $0x1d0] sm:$0xf]
  %v132 = vld [vmem:[%s0 + $0x1d4] sm:$0xf]
  %v133 = vld [vmem:[%s0 + $0x1d8] sm:$0xf]
  %v134 = vld [vmem:[%s0 + $0x1dc] sm:$0xf]
  %v135 = vld [vmem:[%s0 + $0x1e0] sm:$0xf]
  %v136 = vld [vmem:[%s0 + $0x1e4] sm:$0xf]
  %v137 = vld [vmem:[%s0 + $0x1e8] sm:$0xf]
  %v138 = vld [vmem:[%s0 + $0x1ec] sm:$0xf]
  %v139 = vld [vmem:[%s0 + $0x1f0] sm:$0xf]
  %v140 = vld [vmem:[%s0 + $0x1f4] sm:$0xf]
  %v141 = vld [vmem:[%s0 + $0x1f8] sm:$0xf]
  %v142 = vld [vmem:[%s0 + $0x1fc] sm:$0xf]
  %v143 = vld [vmem:[%s0 + $0x200] sm:$0xf]
  %v144 = vld [vmem:[%s0 + $0x204] sm:$0xf]
  %v145 = vld [vmem:[%s0 + $0x208] sm:$0xf]
  %v146 = vld [vmem:[%s0 + $0x20c] sm:$0xf]
  %v147 = vld [vmem:[%s0 + $0x210] sm:$0xf]
  %v148 = vld [vmem:[%s0 + $0x214] sm:$0xf]
  %v149 = vld [vmem:[%s0 + $0x218] sm:$0xf]
  %v150 = vld [vmem:[%s0 + $0x21c] sm:$0xf]
  %v151 = vld [vmem:[%s0 + $0x220] sm:$0xf]
  %v152 = vld [vmem:[%s0 + $0x224] sm:$0xf]
  %v153 = vld [vmem:[%s0 + $0x228] sm:$0xf]
  %v154 = vld [vmem:[%s0 + $0x22c] sm:$0xf]
  %v155 = vld [vmem:[%s0 + $0x230] sm:$0xf]
  %v156 = vld [vmem:[%s0 + $0x234] sm:$0xf]
  %v157 = vld [vmem:[%s0 + $0x238] sm:$0xf]
  %v158 = vld [vmem:[%s0 + $0x23c] sm:$0xf]
  %v159 = vld [vmem:[%s0 + $0x240] sm:$0xf]
  %v160 = vld [vmem:[%s0 + $0x244] sm:$0xf]
  %v161 = vld [vmem:[%s0 + $0x248] sm:$0xf]
  %v162 = vld [vmem:[%s0 + $0x24c] sm:$0xf]
  %v163 = vld [vmem:[%s0 + $0x250] sm:$0xf]
  %v164 = vld [vmem:[%s0 + $0x254] sm:$0xf]
  %v165 = vld [vmem:[%s0 + $0x258] sm:$0xf]
  %v166 = vld [vmem:[%s0 + $0x25c] sm:$0xf]
  %v167 = vld [vmem:[%s0 + $0x260] sm:$0xf]
  %v168 = vld [vmem:[%s0 + $0x264] sm:$0xf]
  %v169 = vld [vmem:[%s0 + $0x268] sm:$0xf]
  %v170 = vld [vmem:[%s0 + $0x26c] sm:$0xf]
  %v171 = vld [vmem:[%s0 + $0x270] sm:$0xf]
  %v172 = vld [vmem:[%s0 + $0x274] sm:$0xf]
  %v173 = vld [vmem:[%s0 + $0x278] sm:$0xf]
  %v174 = vld [vmem:[%s0 + $0x27c] sm:$0xf]
  %v175 = vld [vmem:[%s0 + $0x280] sm:$0xf]
  %v176 = vld [vmem:[%s0 + $0x284] sm:$0xf]
  %v177 = vld [vmem:[%s0 + $0x288] sm:$0xf]
  %v178 = vld [vmem:[%s0 + $0x28c] sm:$0xf]
  %v179 = vld [vmem:[%s0 + $0x290] sm:$0xf]
  %v180 = vld [vmem:[%s0 + $0x294] sm:$0xf]
  %v181 = vld [vmem:[%s0 + $0x298] sm:$0xf]
  %v182 = vld [vmem:[%s0 + $0x29c] sm:$0xf]
  %v183 = vld [vmem:[%s0 + $0x2a0] sm:$0xf]
  %v184 = vld [vmem:[%s1] sm:$0xf]
  %v185 = vld [vmem:[%s1 + $0x4] sm:$0xf]
  %v186 = vld [vmem:[%s1 + $0x8] sm:$0xf]
  %v187 = vld [vmem:[%s1 + $0xc] sm:$0x3]
  %v188 = vld [vmem:[%s2] sm:$0x1]
  %v190 = vlaneseq
  %v191 = vshrl.u32 %v190, 7
  %v192 = vsub.s32 0, %v191
  %v193 = vrot.slane %v188, %v192
  %v364 = vunpack.c.l.b16 %v15
  %v365 = vunpack.c.l.b16 %v16
  %v366 = vunpack.c.l.b16 %v17
  %v367 = vunpack.c.l.b16 %v18
  %v368 = vunpack.c.l.b16 %v19
  %v369 = vunpack.c.l.b16 %v20
  %v370 = vunpack.c.l.b16 %v21
  %v371 = vunpack.c.l.b16 %v22
  %v372 = vunpack.c.l.b16 %v23
  %v373 = vunpack.c.l.b16 %v24
  %v374 = vunpack.c.l.b16 %v25
  %v375 = vunpack.c.l.b16 %v26
  %v376 = vunpack.c.l.b16 %v27
  %v377 = vunpack.c.l.b16 %v28
  %v378 = vunpack.c.l.b16 %v29
  %v379 = vunpack.c.l.b16 %v30
  %v380 = vunpack.c.l.b16 %v31
  %v381 = vunpack.c.l.b16 %v32
  %v382 = vunpack.c.l.b16 %v33
  %v383 = vunpack.c.l.b16 %v34
  %v384 = vunpack.c.l.b16 %v35
  %v385 = vunpack.c.l.b16 %v36
  %v386 = vunpack.c.l.b16 %v37
  %v387 = vunpack.c.l.b16 %v38
  %v388 = vunpack.c.l.b16 %v39
  %v389 = vunpack.c.l.b16 %v40
  %v390 = vunpack.c.l.b16 %v41
  %v391 = vunpack.c.l.b16 %v42
  %v392 = vunpack.c.l.b16 %v43
  %v393 = vunpack.c.l.b16 %v44
  %v394 = vunpack.c.l.b16 %v45
  %v395 = vunpack.c.l.b16 %v46
  %v396 = vunpack.c.l.b16 %v47
  %v397 = vunpack.c.l.b16 %v48
  %v398 = vunpack.c.l.b16 %v49
  %v399 = vunpack.c.l.b16 %v50
  %v400 = vunpack.c.l.b16 %v51
  %v401 = vunpack.c.l.b16 %v52
  %v402 = vunpack.c.l.b16 %v53
  %v403 = vunpack.c.l.b16 %v54
  %v404 = vunpack.c.l.b16 %v55
  %v405 = vunpack.c.l.b16 %v56
  %v406 = vunpack.c.l.b16 %v57
  %v407 = vunpack.c.l.b16 %v58
  %v408 = vunpack.c.l.b16 %v59
  %v409 = vunpack.c.l.b16 %v60
  %v410 = vunpack.c.l.b16 %v61
  %v411 = vunpack.c.l.b16 %v62
  %v412 = vunpack.c.l.b16 %v63
  %v413 = vunpack.c.l.b16 %v64
  %v414 = vunpack.c.l.b16 %v65
  %v415 = vunpack.c.l.b16 %v66
  %v416 = vunpack.c.l.b16 %v67
  %v417 = vunpack.c.l.b16 %v68
  %v418 = vunpack.c.l.b16 %v69
  %v419 = vunpack.c.l.b16 %v70
  %v420 = vunpack.c.l.b16 %v71
  %v421 = vunpack.c.l.b16 %v72
  %v422 = vunpack.c.l.b16 %v73
  %v423 = vunpack.c.l.b16 %v74
  %v424 = vunpack.c.l.b16 %v75
  %v425 = vunpack.c.l.b16 %v76
  %v426 = vunpack.c.l.b16 %v77
  %v427 = vunpack.c.l.b16 %v78
  %v428 = vunpack.c.l.b16 %v79
  %v429 = vunpack.c.l.b16 %v80
  %v430 = vunpack.c.l.b16 %v81
  %v431 = vunpack.c.l.b16 %v82
  %v432 = vunpack.c.l.b16 %v83
  %v433 = vunpack.c.l.b16 %v84
  %v434 = vunpack.c.l.b16 %v85
  %v435 = vunpack.c.l.b16 %v86
  %v436 = vunpack.c.l.b16 %v87
  %v437 = vunpack.c.l.b16 %v88
  %v438 = vunpack.c.l.b16 %v89
  %v439 = vunpack.c.l.b16 %v90
  %v440 = vunpack.c.l.b16 %v91
  %v441 = vunpack.c.l.b16 %v92
  %v442 = vunpack.c.l.b16 %v93
  %v443 = vunpack.c.l.b16 %v94
  %v444 = vunpack.c.l.b16 %v95
  %v445 = vunpack.c.l.b16 %v96
  %v446 = vunpack.c.l.b16 %v97
  %v447 = vunpack.c.l.b16 %v98
  %v448 = vunpack.c.l.b16 %v99
  %v449 = vunpack.c.l.b16 %v100
  %v450 = vunpack.c.l.b16 %v101
  %v451 = vunpack.c.l.b16 %v102
  %v452 = vunpack.c.l.b16 %v103
  %v453 = vunpack.c.l.b16 %v104
  %v454 = vunpack.c.l.b16 %v105
  %v455 = vunpack.c.l.b16 %v106
  %v456 = vunpack.c.l.b16 %v107
  %v457 = vunpack.c.l.b16 %v108
  %v458 = vunpack.c.l.b16 %v109
  %v459 = vunpack.c.l.b16 %v110
  %v460 = vunpack.c.l.b16 %v111
  %v461 = vunpack.c.l.b16 %v112
  %v462 = vunpack.c.l.b16 %v113
  %v463 = vunpack.c.l.b16 %v114
  %v464 = vunpack.c.l.b16 %v115
  %v465 = vunpack.c.l.b16 %v116
  %v466 = vunpack.c.l.b16 %v117
  %v467 = vunpack.c.l.b16 %v118
  %v468 = vunpack.c.l.b16 %v119
  %v469 = vunpack.c.l.b16 %v120
  %v470 = vunpack.c.l.b16 %v121
  %v471 = vunpack.c.l.b16 %v122
  %v472 = vunpack.c.l.b16 %v123
  %v473 = vunpack.c.l.b16 %v124
  %v474 = vunpack.c.l.b16 %v125
  %v475 = vunpack.c.l.b16 %v126
  %v476 = vunpack.c.l.b16 %v127
  %v477 = vunpack.c.l.b16 %v128
  %v478 = vunpack.c.l.b16 %v129
  %v479 = vunpack.c.l.b16 %v130
  %v480 = vunpack.c.l.b16 %v131
  %v481 = vunpack.c.l.b16 %v132
  %v482 = vunpack.c.l.b16 %v133
  %v483 = vunpack.c.l.b16 %v134
  %v484 = vunpack.c.l.b16 %v135
  %v485 = vunpack.c.l.b16 %v136
  %v486 = vunpack.c.l.b16 %v137
  %v487 = vunpack.c.l.b16 %v138
  %v488 = vunpack.c.l.b16 %v139
  %v489 = vunpack.c.l.b16 %v140
  %v490 = vunpack.c.l.b16 %v141
  %v491 = vunpack.c.l.b16 %v142
  %v492 = vunpack.c.l.b16 %v143
  %v493 = vunpack.c.l.b16 %v144
  %v494 = vunpack.c.l.b16 %v145
  %v495 = vunpack.c.l.b16 %v146
  %v496 = vunpack.c.l.b16 %v147
  %v497 = vunpack.c.l.b16 %v148
  %v498 = vunpack.c.l.b16 %v149
  %v499 = vunpack.c.l.b16 %v150
  %v500 = vunpack.c.l.b16 %v151
  %v501 = vunpack.c.l.b16 %v152
  %v502 = vunpack.c.l.b16 %v153
  %v503 = vunpack.c.l.b16 %v154
  %v504 = vunpack.c.l.b16 %v155
  %v505 = vunpack.c.l.b16 %v156
  %v506 = vunpack.c.l.b16 %v157
  %v507 = vunpack.c.l.b16 %v158
  %v508 = vunpack.c.l.b16 %v159
  %v509 = vunpack.c.l.b16 %v160
  %v510 = vunpack.c.l.b16 %v161
  %v511 = vunpack.c.l.b16 %v162
  %v512 = vunpack.c.l.b16 %v163
  %v513 = vunpack.c.l.b16 %v164
  %v514 = vunpack.c.l.b16 %v165
  %v515 = vunpack.c.l.b16 %v166
  %v516 = vunpack.c.l.b16 %v167
  %v517 = vunpack.c.l.b16 %v168
  %v518 = vunpack.c.l.b16 %v169
  %v519 = vunpack.c.l.b16 %v170
  %v520 = vunpack.c.l.b16 %v171
  %v521 = vunpack.c.l.b16 %v172
  %v522 = vunpack.c.l.b16 %v173
  %v523 = vunpack.c.l.b16 %v174
  %v524 = vunpack.c.l.b16 %v175
  %v525 = vunpack.c.l.b16 %v176
  %v526 = vunpack.c.l.b16 %v177
  %v527 = vunpack.c.l.b16 %v178
  %v528 = vunpack.c.l.b16 %v179
  %v529 = vunpack.c.l.b16 %v180
  %v530 = vunpack.c.l.b16 %v181
  %v531 = vunpack.c.l.b16 %v182
  %v532 = vunpack.c.l.b16 %v183
  %v533 = vpack.c.b16 %v365, %v364
  %v534 = vpack.c.b16 %v367, %v366
  %v535 = vpack.c.b16 %v369, %v368
  %v536 = vpack.c.b16 %v371, %v370
  %v537 = vpack.c.b16 %v373, %v372
  %v538 = vpack.c.b16 %v375, %v374
  %v539 = vpack.c.b16 %v377, %v376
  %v540 = vpack.c.b16 %v379, %v378
  %v541 = vpack.c.b16 %v381, %v380
  %v542 = vpack.c.b16 %v383, %v382
  %v543 = vpack.c.b16 %v385, %v384
  %v544 = vpack.c.b16 %v387, %v386
  %v545 = vpack.c.b16 %v389, %v388
  %v546 = vpack.c.b16 %v391, %v390
  %v547 = vpack.c.b16 %v393, %v392
  %v548 = vpack.c.b16 %v395, %v394
  %v549 = vpack.c.b16 %v397, %v396
  %v550 = vpack.c.b16 %v399, %v398
  %v551 = vpack.c.b16 %v401, %v400
  %v552 = vpack.c.b16 %v403, %v402
  %v553 = vpack.c.b16 %v405, %v404
  %v554 = vpack.c.b16 %v407, %v406
  %v555 = vpack.c.b16 %v409, %v408
  %v556 = vpack.c.b16 %v411, %v410
  %v557 = vpack.c.b16 %v413, %v412
  %v558 = vpack.c.b16 %v415, %v414
  %v559 = vpack.c.b16 %v417, %v416
  %v560 = vpack.c.b16 %v419, %v418
  %v561 = vpack.c.b16 %v421, %v420
  %v562 = vpack.c.b16 %v423, %v422
  %v563 = vpack.c.b16 %v425, %v424
  %v564 = vpack.c.b16 %v427, %v426
  %v565 = vpack.c.b16 %v429, %v428
  %v566 = vpack.c.b16 %v431, %v430
  %v567 = vpack.c.b16 %v433, %v432
  %v568 = vpack.c.b16 %v435, %v434
  %v569 = vpack.c.b16 %v437, %v436
  %v570 = vpack.c.b16 %v439, %v438
  %v571 = vpack.c.b16 %v441, %v440
  %v572 = vpack.c.b16 %v443, %v442
  %v573 = vpack.c.b16 %v445, %v444
  %v574 = vpack.c.b16 %v447, %v446
  %v575 = vpack.c.b16 %v449, %v448
  %v576 = vpack.c.b16 %v451, %v450
  %v577 = vpack.c.b16 %v453, %v452
  %v578 = vpack.c.b16 %v455, %v454
  %v579 = vpack.c.b16 %v457, %v456
  %v580 = vpack.c.b16 %v459, %v458
  %v581 = vpack.c.b16 %v461, %v460
  %v582 = vpack.c.b16 %v463, %v462
  %v583 = vpack.c.b16 %v465, %v464
  %v584 = vpack.c.b16 %v467, %v466
  %v585 = vpack.c.b16 %v469, %v468
  %v586 = vpack.c.b16 %v471, %v470
  %v587 = vpack.c.b16 %v473, %v472
  %v588 = vpack.c.b16 %v475, %v474
  %v589 = vpack.c.b16 %v477, %v476
  %v590 = vpack.c.b16 %v479, %v478
  %v591 = vpack.c.b16 %v481, %v480
  %v592 = vpack.c.b16 %v483, %v482
  %v593 = vpack.c.b16 %v485, %v484
  %v594 = vpack.c.b16 %v487, %v486
  %v595 = vpack.c.b16 %v489, %v488
  %v596 = vpack.c.b16 %v491, %v490
  %v597 = vpack.c.b16 %v493, %v492
  %v598 = vpack.c.b16 %v495, %v494
  %v599 = vpack.c.b16 %v497, %v496
  %v600 = vpack.c.b16 %v499, %v498
  %v601 = vpack.c.b16 %v501, %v500
  %v602 = vpack.c.b16 %v503, %v502
  %v603 = vpack.c.b16 %v505, %v504
  %v604 = vpack.c.b16 %v507, %v506
  %v605 = vpack.c.b16 %v509, %v508
  %v606 = vpack.c.b16 %v511, %v510
  %v607 = vpack.c.b16 %v513, %v512
  %v608 = vpack.c.b16 %v515, %v514
  %v609 = vpack.c.b16 %v517, %v516
  %v610 = vpack.c.b16 %v519, %v518
  %v611 = vpack.c.b16 %v521, %v520
  %v612 = vpack.c.b16 %v523, %v522
  %v613 = vpack.c.b16 %v525, %v524
  %v614 = vpack.c.b16 %v527, %v526
  %v615 = vpack.c.b16 %v529, %v528
  %v616 = vpack.c.b16 %v531, %v530
  %v617 = vpack.c.b16 %v532, %v532
  %v622 = vunpack.c.l.b16 %v184
  %v623 = vunpack.c.l.b16 %v185
  %v624 = vunpack.c.l.b16 %v186
  %v625 = vunpack.c.l.b16 %v187
  %v626 = vpack.c.b16 %v623, %v622
  %v627 = vpack.c.b16 %v625, %v624
  %vm629 = vcmask 220160
  %v631 = vsel %vm629, %v533, 0
  %v634 = vsel %vm629, %v534, 0
  %v637 = vsel %vm629, %v535, 0
  %v640 = vsel %vm629, %v536, 0
  %v643 = vsel %vm629, %v537, 0
  %v646 = vsel %vm629, %v538, 0
  %v649 = vsel %vm629, %v539, 0
  %v652 = vsel %vm629, %v540, 0
  %v655 = vsel %vm629, %v541, 0
  %v658 = vsel %vm629, %v542, 0
  %v661 = vsel %vm629, %v543, 0
  %v664 = vsel %vm629, %v544, 0
  %v667 = vsel %vm629, %v545, 0
  %v670 = vsel %vm629, %v546, 0
  %v673 = vsel %vm629, %v547, 0
  %v676 = vsel %vm629, %v548, 0
  %v679 = vsel %vm629, %v549, 0
  %v682 = vsel %vm629, %v550, 0
  %v685 = vsel %vm629, %v551, 0
  %v688 = vsel %vm629, %v552, 0
  %v691 = vsel %vm629, %v553, 0
  %v694 = vsel %vm629, %v554, 0
  %v697 = vsel %vm629, %v555, 0
  %v700 = vsel %vm629, %v556, 0
  %v703 = vsel %vm629, %v557, 0
  %v706 = vsel %vm629, %v558, 0
  %v709 = vsel %vm629, %v559, 0
  %v712 = vsel %vm629, %v560, 0
  %v715 = vsel %vm629, %v561, 0
  %v718 = vsel %vm629, %v562, 0
  %v721 = vsel %vm629, %v563, 0
  %v724 = vsel %vm629, %v564, 0
  %v727 = vsel %vm629, %v565, 0
  %v730 = vsel %vm629, %v566, 0
  %v733 = vsel %vm629, %v567, 0
  %v736 = vsel %vm629, %v568, 0
  %v739 = vsel %vm629, %v569, 0
  %v742 = vsel %vm629, %v570, 0
  %v745 = vsel %vm629, %v571, 0
  %v748 = vsel %vm629, %v572, 0
  %v751 = vsel %vm629, %v573, 0
  %v754 = vsel %vm629, %v574, 0
  %v757 = vsel %vm629, %v575, 0
  %v760 = vsel %vm629, %v576, 0
  %v763 = vsel %vm629, %v577, 0
  %v766 = vsel %vm629, %v578, 0
  %v769 = vsel %vm629, %v579, 0
  %v772 = vsel %vm629, %v580, 0
  %v775 = vsel %vm629, %v581, 0
  %v778 = vsel %vm629, %v582, 0
  %v781 = vsel %vm629, %v583, 0
  %v784 = vsel %vm629, %v584, 0
  %v787 = vsel %vm629, %v585, 0
  %v790 = vsel %vm629, %v586, 0
  %v793 = vsel %vm629, %v587, 0
  %v796 = vsel %vm629, %v588, 0
  %v799 = vsel %vm629, %v589, 0
  %v802 = vsel %vm629, %v590, 0
  %v805 = vsel %vm629, %v591, 0
  %v808 = vsel %vm629, %v592, 0
  %v811 = vsel %vm629, %v593, 0
  %v814 = vsel %vm629, %v594, 0
  %v817 = vsel %vm629, %v595, 0
  %v820 = vsel %vm629, %v596, 0
  %v823 = vsel %vm629, %v597, 0
  %v826 = vsel %vm629, %v598, 0
  %v829 = vsel %vm629, %v599, 0
  %v832 = vsel %vm629, %v600, 0
  %v835 = vsel %vm629, %v601, 0
  %v838 = vsel %vm629, %v602, 0
  %v841 = vsel %vm629, %v603, 0
  %v844 = vsel %vm629, %v604, 0
  %v847 = vsel %vm629, %v605, 0
  %v850 = vsel %vm629, %v606, 0
  %v853 = vsel %vm629, %v607, 0
  %v856 = vsel %vm629, %v608, 0
  %v859 = vsel %vm629, %v609, 0
  %v862 = vsel %vm629, %v610, 0
  %v865 = vsel %vm629, %v611, 0
  %v868 = vsel %vm629, %v612, 0
  %v871 = vsel %vm629, %v613, 0
  %v874 = vsel %vm629, %v614, 0
  %v877 = vsel %vm629, %v615, 0
  %v880 = vsel %vm629, %v616, 0
  %v883 = vsel %vm629, %v617, 0
  %vm885 = vcmask 1044480
  %vm886 = vcmask 1045504
  %v887 = vsel %vm885, 4294967295, 65535
  %v888 = vsel %vm886, %v887, 0
  %v890 = vand.u32 %v627, %v888
  %892 = vmatprep.subr.bf16.mxu0 0
  %893 = vmatpush1.bf16.msra.mxu0 %v626
  %894 = vmatprep.subr.bf16.mxu0 0
  %895 = vmatpush1.bf16.msra.mxu0 %v890
  %896 = vmatprep.subr.bf16.mxu0 0
  %897 = vmatpush1.bf16.msra.mxu0 0
  %898 = vmatprep.subr.bf16.mxu0 0
  %899 = vmatpush1.bf16.msra.mxu0 0
  %900 = vmatprep.subr.bf16.mxu0 0
  %901 = vmatpush1.bf16.msra.mxu0 0
  %902 = vmatprep.subr.bf16.mxu0 0
  %903 = vmatpush1.bf16.msra.mxu0 0
  %904 = vmatprep.subr.bf16.mxu0 0
  %905 = vmatpush1.bf16.msra.mxu0 0
  %906 = vmatprep.subr.bf16.mxu0 0
  %907 = vmatpush1.bf16.msra.mxu0 0
  %908 = vmatprep.subr.bf16.mxu0 0
  %909 = vmatpush1.bf16.msra.mxu0 0
  %910 = vmatprep.subr.bf16.mxu0 0
  %911 = vmatpush1.bf16.msra.mxu0 0
  %912 = vmatprep.subr.bf16.mxu0 0
  %913 = vmatpush1.bf16.msra.mxu0 0
  %914 = vmatprep.subr.bf16.mxu0 0
  %915 = vmatpush1.bf16.msra.mxu0 0
  %916 = vmatprep.subr.bf16.mxu0 0
  %917 = vmatpush1.bf16.msra.mxu0 0
  %918 = vmatprep.subr.bf16.mxu0 0
  %919 = vmatpush1.bf16.msra.mxu0 0
  %920 = vmatprep.subr.bf16.mxu0 0
  %921 = vmatpush1.bf16.msra.mxu0 0
  %922 = vmatprep.subr.bf16.mxu0 0
  %923 = vmatpush1.bf16.msra.mxu0 0
  %924 = vmatprep.mubr.bf16.mxu0 0
  %925 = vmatmul.mubr.bf16.gmra.mrb[0].mxu0 %v631
  %v926 = vpop.f32.mrb[0].mxu0
  %v927 = vadd.f32 %v193, %v926
  %v928 = vpop.f32.mrb[0].mxu0
  %v929 = vpop.f32.mrb[0].mxu0
  %v930 = vadd.f32 %v193, %v929
  %v931 = vpop.f32.mrb[0].mxu0
  %932 = vmatprep.mubr.bf16.mxu0 0
  %933 = vmatmul.mubr.bf16.gmra.mrb[0].mxu0 %v634
  %v934 = vpop.f32.mrb[0].mxu0
  %v935 = vadd.f32 %v193, %v934
  %v936 = vpop.f32.mrb[0].mxu0
  %v937 = vpop.f32.mrb[0].mxu0
  %v938 = vadd.f32 %v193, %v937
  %v939 = vpop.f32.mrb[0].mxu0
  %940 = vmatprep.mubr.bf16.mxu0 0
  %941 = vmatmul.mubr.bf16.gmra.mrb[0].mxu0 %v637
  %v942 = vpop.f32.mrb[0].mxu0
  %v943 = vadd.f32 %v193, %v942
  %v944 = vpop.f32.mrb[0].mxu0
  %v945 = vpop.f32.mrb[0].mxu0
  %v946 = vadd.f32 %v193, %v945
  %v947 = vpop.f32.mrb[0].mxu0
  %948 = vmatprep.mubr.bf16.mxu0 0
  %949 = vmatmul.mubr.bf16.gmra.mrb[0].mxu0 %v640
  %v950 = vpop.f32.mrb[0].mxu0
  %v951 = vadd.f32 %v193, %v950
  %v952 = vpop.f32.mrb[0].mxu0
  %v953 = vpop.f32.mrb[0].mxu0
  %v954 = vadd.f32 %v193, %v953
  %v955 = vpop.f32.mrb[0].mxu0
  %956 = vmatprep.mubr.bf16.mxu0 0
  %957 = vmatmul.mubr.bf16.gmra.mrb[0].mxu0 %v643
  %v958 = vpop.f32.mrb[0].mxu0
  %v959 = vadd.f32 %v193, %v958
  %v960 = vpop.f32.mrb[0].mxu0
  %v961 = vpop.f32.mrb[0].mxu0
  %v962 = vadd.f32 %v193, %v961
  %v963 = vpop.f32.mrb[0].mxu0
  %964 = vmatprep.mubr.bf16.mxu0 0
  %965 = vmatmul.mubr.bf16.gmra.mrb[0].mxu0 %v646
  %v966 = vpop.f32.mrb[0].mxu0
  %v967 = vadd.f32 %v193, %v966
  %v968 = vpop.f32.mrb[0].mxu0
  %v969 = vpop.f32.mrb[0].mxu0
  %v970 = vadd.f32 %v193, %v969
  %v971 = vpop.f32.mrb[0].mxu0
  %972 = vmatprep.mubr.bf16.mxu0 0
  %973 = vmatmul.mubr.bf16.gmra.mrb[0].mxu0 %v649
  %v974 = vpop.f32.mrb[0].mxu0
  %v975 = vadd.f32 %v193, %v974
  %v976 = vpop.f32.mrb[0].mxu0
  %v977 = vpop.f32.mrb[0].mxu0
  %v978 = vadd.f32 %v193, %v977
  %v979 = vpop.f32.mrb[0].mxu0
  %980 = vmatprep.mubr.bf16.mxu0 0
  %981 = vmatmul.mubr.bf16.gmra.mrb[0].mxu0 %v652
  %v982 = vpop.f32.mrb[0].mxu0
  %v983 = vadd.f32 %v193, %v982
  %v984 = vpop.f32.mrb[0].mxu0
  %v985 = vpop.f32.mrb[0].mxu0
  %v986 = vadd.f32 %v193, %v985
  %v987 = vpop.f32.mrb[0].mxu0
  %988 = vmatprep.mubr.bf16.mxu0 0
  %989 = vmatmul.mubr.bf16.gmra.mrb[0].mxu0 %v655
  %v990 = vpop.f32.mrb[0].mxu0
  %v991 = vadd.f32 %v193, %v990
  %v992 = vpop.f32.mrb[0].mxu0
  %v993 = vpop.f32.mrb[0].mxu0
  %v994 = vadd.f32 %v193, %v993
  %v995 = vpop.f32.mrb[0].mxu0
  %996 = vmatprep.mubr.bf16.mxu0 0
  %997 = vmatmul.mubr.bf16.gmra.mrb[0].mxu0 %v658
  %v998 = vpop.f32.mrb[0].mxu0
  %v999 = vadd.f32 %v193, %v998
  %v1000 = vpop.f32.mrb[0].mxu0
  %v1001 = vpop.f32.mrb[0].mxu0
  %v1002 = vadd.f32 %v193, %v1001
  %v1003 = vpop.f32.mrb[0].mxu0
  %1004 = vmatprep.mubr.bf16.mxu0 0
  %1005 = vmatmul.mubr.bf16.gmra.mrb[0].mxu0 %v661
  %v1006 = vpop.f32.mrb[0].mxu0
  %v1007 = vadd.f32 %v193, %v1006
  %v1008 = vpop.f32.mrb[0].mxu0
  %v1009 = vpop.f32.mrb[0].mxu0
  %v1010 = vadd.f32 %v193, %v1009
  %v1011 = vpop.f32.mrb[0].mxu0
  %1012 = vmatprep.mubr.bf16.mxu0 0
  %1013 = vmatmul.mubr.bf16.gmra.mrb[0].mxu0 %v664
  %v1014 = vpop.f32.mrb[0].mxu0
  %v1015 = vadd.f32 %v193, %v1014
  %v1016 = vpop.f32.mrb[0].mxu0
  %v1017 = vpop.f32.mrb[0].mxu0
  %v1018 = vadd.f32 %v193, %v1017
  %v1019 = vpop.f32.mrb[0].mxu0
  %1020 = vmatprep.mubr.bf16.mxu0 0
  %1021 = vmatmul.mubr.bf16.gmra.mrb[0].mxu0 %v667
  %v1022 = vpop.f32.mrb[0].mxu0
  %v1023 = vadd.f32 %v193, %v1022
  %v1024 = vpop.f32.mrb[0].mxu0
  %v1025 = vpop.f32.mrb[0].mxu0
  %v1026 = vadd.f32 %v193, %v1025
  %v1027 = vpop.f32.mrb[0].mxu0
  %1028 = vmatprep.mubr.bf16.mxu0 0
  %1029 = vmatmul.mubr.bf16.gmra.mrb[0].mxu0 %v670
  %v1030 = vpop.f32.mrb[0].mxu0
  %v1031 = vadd.f32 %v193, %v1030
  %v1032 = vpop.f32.mrb[0].mxu0
  %v1033 = vpop.f32.mrb[0].mxu0
  %v1034 = vadd.f32 %v193, %v1033
  %v1035 = vpop.f32.mrb[0].mxu0
  %1036 = vmatprep.mubr.bf16.mxu0 0
  %1037 = vmatmul.mubr.bf16.gmra.mrb[0].mxu0 %v673
  %v1038 = vpop.f32.mrb[0].mxu0
  %v1039 = vadd.f32 %v193, %v1038
  %v1040 = vpop.f32.mrb[0].mxu0
  %v1041 = vpop.f32.mrb[0].mxu0
  %v1042 = vadd.f32 %v193, %v1041
  %v1043 = vpop.f32.mrb[0].mxu0
  %1044 = vmatprep.mubr.bf16.mxu0 0
  %1045 = vmatmul.mubr.bf16.gmra.mrb[0].mxu0 %v676
  %v1046 = vpop.f32.mrb[0].mxu0
  %v1047 = vadd.f32 %v193, %v1046
  %v1048 = vpop.f32.mrb[0].mxu0
  %v1049 = vpop.f32.mrb[0].mxu0
  %v1050 = vadd.f32 %v193, %v1049
  %v1051 = vpop.f32.mrb[0].mxu0
  %1052 = vmatprep.mubr.bf16.mxu0 0
  %1053 = vmatmul.mubr.bf16.gmra.mrb[0].mxu0 %v679
  %v1054 = vpop.f32.mrb[0].mxu0
  %v1055 = vadd.f32 %v193, %v1054
  %v1056 = vpop.f32.mrb[0].mxu0
  %v1057 = vpop.f32.mrb[0].mxu0
  %v1058 = vadd.f32 %v193, %v1057
  %v1059 = vpop.f32.mrb[0].mxu0
  %1060 = vmatprep.mubr.bf16.mxu0 0
  %1061 = vmatmul.mubr.bf16.gmra.mrb[0].mxu0 %v682
  %v1062 = vpop.f32.mrb[0].mxu0
  %v1063 = vadd.f32 %v193, %v1062
  %v1064 = vpop.f32.mrb[0].mxu0
  %v1065 = vpop.f32.mrb[0].mxu0
  %v1066 = vadd.f32 %v193, %v1065
  %v1067 = vpop.f32.mrb[0].mxu0
  %1068 = vmatprep.mubr.bf16.mxu0 0
  %1069 = vmatmul.mubr.bf16.gmra.mrb[0].mxu0 %v685
  %v1070 = vpop.f32.mrb[0].mxu0
  %v1071 = vadd.f32 %v193, %v1070
  %v1072 = vpop.f32.mrb[0].mxu0
  %v1073 = vpop.f32.mrb[0].mxu0
  %v1074 = vadd.f32 %v193, %v1073
  %v1075 = vpop.f32.mrb[0].mxu0
  %1076 = vmatprep.mubr.bf16.mxu0 0
  %1077 = vmatmul.mubr.bf16.gmra.mrb[0].mxu0 %v688
  %v1078 = vpop.f32.mrb[0].mxu0
  %v1079 = vadd.f32 %v193, %v1078
  %v1080 = vpop.f32.mrb[0].mxu0
  %v1081 = vpop.f32.mrb[0].mxu0
  %v1082 = vadd.f32 %v193, %v1081
  %v1083 = vpop.f32.mrb[0].mxu0
  %1084 = vmatprep.mubr.bf16.mxu0 0
  %1085 = vmatmul.mubr.bf16.gmra.mrb[0].mxu0 %v691
  %v1086 = vpop.f32.mrb[0].mxu0
  %v1087 = vadd.f32 %v193, %v1086
  %v1088 = vpop.f32.mrb[0].mxu0
  %v1089 = vpop.f32.mrb[0].mxu0
  %v1090 = vadd.f32 %v193, %v1089
  %v1091 = vpop.f32.mrb[0].mxu0
  %1092 = vmatprep.mubr.bf16.mxu0 0
  %1093 = vmatmul.mubr.bf16.gmra.mrb[0].mxu0 %v694
  %v1094 = vpop.f32.mrb[0].mxu0
  %v1095 = vadd.f32 %v193, %v1094
  %v1096 = vpop.f32.mrb[0].mxu0
  %v1097 = vpop.f32.mrb[0].mxu0
  %v1098 = vadd.f32 %v193, %v1097
  %v1099 = vpop.f32.mrb[0].mxu0
  %1100 = vmatprep.mubr.bf16.mxu0 0
  %1101 = vmatmul.mubr.bf16.gmra.mrb[0].mxu0 %v697
  %v1102 = vpop.f32.mrb[0].mxu0
  %v1103 = vadd.f32 %v193, %v1102
  %v1104 = vpop.f32.mrb[0].mxu0
  %v1105 = vpop.f32.mrb[0].mxu0
  %v1106 = vadd.f32 %v193, %v1105
  %v1107 = vpop.f32.mrb[0].mxu0
  %1108 = vmatprep.mubr.bf16.mxu0 0
  %1109 = vmatmul.mubr.bf16.gmra.mrb[0].mxu0 %v700
  %v1110 = vpop.f32.mrb[0].mxu0
  %v1111 = vadd.f32 %v193, %v1110
  %v1112 = vpop.f32.mrb[0].mxu0
  %v1113 = vpop.f32.mrb[0].mxu0
  %v1114 = vadd.f32 %v193, %v1113
  %v1115 = vpop.f32.mrb[0].mxu0
  %1116 = vmatprep.mubr.bf16.mxu0 0
  %1117 = vmatmul.mubr.bf16.gmra.mrb[0].mxu0 %v703
  %v1118 = vpop.f32.mrb[0].mxu0
  %v1119 = vadd.f32 %v193, %v1118
  %v1120 = vpop.f32.mrb[0].mxu0
  %v1121 = vpop.f32.mrb[0].mxu0
  %v1122 = vadd.f32 %v193, %v1121
  %v1123 = vpop.f32.mrb[0].mxu0
  %1124 = vmatprep.mubr.bf16.mxu0 0
  %1125 = vmatmul.mubr.bf16.gmra.mrb[0].mxu0 %v706
  %v1126 = vpop.f32.mrb[0].mxu0
  %v1127 = vadd.f32 %v193, %v1126
  %v1128 = vpop.f32.mrb[0].mxu0
  %v1129 = vpop.f32.mrb[0].mxu0
  %v1130 = vadd.f32 %v193, %v1129
  %v1131 = vpop.f32.mrb[0].mxu0
  %1132 = vmatprep.mubr.bf16.mxu0 0
  %1133 = vmatmul.mubr.bf16.gmra.mrb[0].mxu0 %v709
  %v1134 = vpop.f32.mrb[0].mxu0
  %v1135 = vadd.f32 %v193, %v1134
  %v1136 = vpop.f32.mrb[0].mxu0
  %v1137 = vpop.f32.mrb[0].mxu0
  %v1138 = vadd.f32 %v193, %v1137
  %v1139 = vpop.f32.mrb[0].mxu0
  %1140 = vmatprep.mubr.bf16.mxu0 0
  %1141 = vmatmul.mubr.bf16.gmra.mrb[0].mxu0 %v712
  %v1142 = vpop.f32.mrb[0].mxu0
  %v1143 = vadd.f32 %v193, %v1142
  %v1144 = vpop.f32.mrb[0].mxu0
  %v1145 = vpop.f32.mrb[0].mxu0
  %v1146 = vadd.f32 %v193, %v1145
  %v1147 = vpop.f32.mrb[0].mxu0
  %1148 = vmatprep.mubr.bf16.mxu0 0
  %1149 = vmatmul.mubr.bf16.gmra.mrb[0].mxu0 %v715
  %v1150 = vpop.f32.mrb[0].mxu0
  %v1151 = vadd.f32 %v193, %v1150
  %v1152 = vpop.f32.mrb[0].mxu0
  %v1153 = vpop.f32.mrb[0].mxu0
  %v1154 = vadd.f32 %v193, %v1153
  %v1155 = vpop.f32.mrb[0].mxu0
  %1156 = vmatprep.mubr.bf16.mxu0 0
  %1157 = vmatmul.mubr.bf16.gmra.mrb[0].mxu0 %v718
  %v1158 = vpop.f32.mrb[0].mxu0
  %v1159 = vadd.f32 %v193, %v1158
  %v1160 = vpop.f32.mrb[0].mxu0
  %v1161 = vpop.f32.mrb[0].mxu0
  %v1162 = vadd.f32 %v193, %v1161
  %v1163 = vpop.f32.mrb[0].mxu0
  %1164 = vmatprep.mubr.bf16.mxu0 0
  %1165 = vmatmul.mubr.bf16.gmra.mrb[0].mxu0 %v721
  %v1166 = vpop.f32.mrb[0].mxu0
  %v1167 = vadd.f32 %v193, %v1166
  %v1168 = vpop.f32.mrb[0].mxu0
  %v1169 = vpop.f32.mrb[0].mxu0
  %v1170 = vadd.f32 %v193, %v1169
  %v1171 = vpop.f32.mrb[0].mxu0
  %1172 = vmatprep.mubr.bf16.mxu0 0
  %1173 = vmatmul.mubr.bf16.gmra.mrb[0].mxu0 %v724
  %v1174 = vpop.f32.mrb[0].mxu0
  %v1175 = vadd.f32 %v193, %v1174
  %v1176 = vpop.f32.mrb[0].mxu0
  %v1177 = vpop.f32.mrb[0].mxu0
  %v1178 = vadd.f32 %v193, %v1177
  %v1179 = vpop.f32.mrb[0].mxu0
  %1180 = vmatprep.mubr.bf16.mxu0 0
  %1181 = vmatmul.mubr.bf16.gmra.mrb[0].mxu0 %v727
  %v1182 = vpop.f32.mrb[0].mxu0
  %v1183 = vadd.f32 %v193, %v1182
  %v1184 = vpop.f32.mrb[0].mxu0
  %v1185 = vpop.f32.mrb[0].mxu0
  %v1186 = vadd.f32 %v193, %v1185
  %v1187 = vpop.f32.mrb[0].mxu0
  %1188 = vmatprep.mubr.bf16.mxu0 0
  %1189 = vmatmul.mubr.bf16.gmra.mrb[0].mxu0 %v730
  %v1190 = vpop.f32.mrb[0].mxu0
  %v1191 = vadd.f32 %v193, %v1190
  %v1192 = vpop.f32.mrb[0].mxu0
  %v1193 = vpop.f32.mrb[0].mxu0
  %v1194 = vadd.f32 %v193, %v1193
  %v1195 = vpop.f32.mrb[0].mxu0
  %1196 = vmatprep.mubr.bf16.mxu0 0
  %1197 = vmatmul.mubr.bf16.gmra.mrb[0].mxu0 %v733
  %v1198 = vpop.f32.mrb[0].mxu0
  %v1199 = vadd.f32 %v193, %v1198
  %v1200 = vpop.f32.mrb[0].mxu0
  %v1201 = vpop.f32.mrb[0].mxu0
  %v1202 = vadd.f32 %v193, %v1201
  %v1203 = vpop.f32.mrb[0].mxu0
  %1204 = vmatprep.mubr.bf16.mxu0 0
  %1205 = vmatmul.mubr.bf16.gmra.mrb[0].mxu0 %v736
  %v1206 = vpop.f32.mrb[0].mxu0
  %v1207 = vadd.f32 %v193, %v1206
  %v1208 = vpop.f32.mrb[0].mxu0
  %v1209 = vpop.f32.mrb[0].mxu0
  %v1210 = vadd.f32 %v193, %v1209
  %v1211 = vpop.f32.mrb[0].mxu0
  %1212 = vmatprep.mubr.bf16.mxu0 0
  %1213 = vmatmul.mubr.bf16.gmra.mrb[0].mxu0 %v739
  %v1214 = vpop.f32.mrb[0].mxu0
  %v1215 = vadd.f32 %v193, %v1214
  %v1216 = vpop.f32.mrb[0].mxu0
  %v1217 = vpop.f32.mrb[0].mxu0
  %v1218 = vadd.f32 %v193, %v1217
  %v1219 = vpop.f32.mrb[0].mxu0
  %1220 = vmatprep.mubr.bf16.mxu0 0
  %1221 = vmatmul.mubr.bf16.gmra.mrb[0].mxu0 %v742
  %v1222 = vpop.f32.mrb[0].mxu0
  %v1223 = vadd.f32 %v193, %v1222
  %v1224 = vpop.f32.mrb[0].mxu0
  %v1225 = vpop.f32.mrb[0].mxu0
  %v1226 = vadd.f32 %v193, %v1225
  %v1227 = vpop.f32.mrb[0].mxu0
  %1228 = vmatprep.mubr.bf16.mxu0 0
  %1229 = vmatmul.mubr.bf16.gmra.mrb[0].mxu0 %v745
  %v1230 = vpop.f32.mrb[0].mxu0
  %v1231 = vadd.f32 %v193, %v1230
  %v1232 = vpop.f32.mrb[0].mxu0
  %v1233 = vpop.f32.mrb[0].mxu0
  %v1234 = vadd.f32 %v193, %v1233
  %v1235 = vpop.f32.mrb[0].mxu0
  %1236 = vmatprep.mubr.bf16.mxu0 0
  %1237 = vmatmul.mubr.bf16.gmra.mrb[0].mxu0 %v748
  %v1238 = vpop.f32.mrb[0].mxu0
  %v1239 = vadd.f32 %v193, %v1238
  %v1240 = vpop.f32.mrb[0].mxu0
  %v1241 = vpop.f32.mrb[0].mxu0
  %v1242 = vadd.f32 %v193, %v1241
  %v1243 = vpop.f32.mrb[0].mxu0
  %1244 = vmatprep.mubr.bf16.mxu0 0
  %1245 = vmatmul.mubr.bf16.gmra.mrb[0].mxu0 %v751
  %v1246 = vpop.f32.mrb[0].mxu0
  %v1247 = vadd.f32 %v193, %v1246
  %v1248 = vpop.f32.mrb[0].mxu0
  %v1249 = vpop.f32.mrb[0].mxu0
  %v1250 = vadd.f32 %v193, %v1249
  %v1251 = vpop.f32.mrb[0].mxu0
  %1252 = vmatprep.mubr.bf16.mxu0 0
  %1253 = vmatmul.mubr.bf16.gmra.mrb[0].mxu0 %v754
  %v1254 = vpop.f32.mrb[0].mxu0
  %v1255 = vadd.f32 %v193, %v1254
  %v1256 = vpop.f32.mrb[0].mxu0
  %v1257 = vpop.f32.mrb[0].mxu0
  %v1258 = vadd.f32 %v193, %v1257
  %v1259 = vpop.f32.mrb[0].mxu0
  %1260 = vmatprep.mubr.bf16.mxu0 0
  %1261 = vmatmul.mubr.bf16.gmra.mrb[0].mxu0 %v757
  %v1262 = vpop.f32.mrb[0].mxu0
  %v1263 = vadd.f32 %v193, %v1262
  %v1264 = vpop.f32.mrb[0].mxu0
  %v1265 = vpop.f32.mrb[0].mxu0
  %v1266 = vadd.f32 %v193, %v1265
  %v1267 = vpop.f32.mrb[0].mxu0
  %1268 = vmatprep.mubr.bf16.mxu0 0
  %1269 = vmatmul.mubr.bf16.gmra.mrb[0].mxu0 %v760
  %v1270 = vpop.f32.mrb[0].mxu0
  %v1271 = vadd.f32 %v193, %v1270
  %v1272 = vpop.f32.mrb[0].mxu0
  %v1273 = vpop.f32.mrb[0].mxu0
  %v1274 = vadd.f32 %v193, %v1273
  %v1275 = vpop.f32.mrb[0].mxu0
  %1276 = vmatprep.mubr.bf16.mxu0 0
  %1277 = vmatmul.mubr.bf16.gmra.mrb[0].mxu0 %v763
  %v1278 = vpop.f32.mrb[0].mxu0
  %v1279 = vadd.f32 %v193, %v1278
  %v1280 = vpop.f32.mrb[0].mxu0
  %v1281 = vpop.f32.mrb[0].mxu0
  %v1282 = vadd.f32 %v193, %v1281
  %v1283 = vpop.f32.mrb[0].mxu0
  %1284 = vmatprep.mubr.bf16.mxu0 0
  %1285 = vmatmul.mubr.bf16.gmra.mrb[0].mxu0 %v766
  %v1286 = vpop.f32.mrb[0].mxu0
  %v1287 = vadd.f32 %v193, %v1286
  %v1288 = vpop.f32.mrb[0].mxu0
  %v1289 = vpop.f32.mrb[0].mxu0
  %v1290 = vadd.f32 %v193, %v1289
  %v1291 = vpop.f32.mrb[0].mxu0
  %1292 = vmatprep.mubr.bf16.mxu0 0
  %1293 = vmatmul.mubr.bf16.gmra.mrb[0].mxu0 %v769
  %v1294 = vpop.f32.mrb[0].mxu0
  %v1295 = vadd.f32 %v193, %v1294
  %v1296 = vpop.f32.mrb[0].mxu0
  %v1297 = vpop.f32.mrb[0].mxu0
  %v1298 = vadd.f32 %v193, %v1297
  %v1299 = vpop.f32.mrb[0].mxu0
  %1300 = vmatprep.mubr.bf16.mxu0 0
  %1301 = vmatmul.mubr.bf16.gmra.mrb[0].mxu0 %v772
  %v1302 = vpop.f32.mrb[0].mxu0
  %v1303 = vadd.f32 %v193, %v1302
  %v1304 = vpop.f32.mrb[0].mxu0
  %v1305 = vpop.f32.mrb[0].mxu0
  %v1306 = vadd.f32 %v193, %v1305
  %v1307 = vpop.f32.mrb[0].mxu0
  %1308 = vmatprep.mubr.bf16.mxu0 0
  %1309 = vmatmul.mubr.bf16.gmra.mrb[0].mxu0 %v775
  %v1310 = vpop.f32.mrb[0].mxu0
  %v1311 = vadd.f32 %v193, %v1310
  %v1312 = vpop.f32.mrb[0].mxu0
  %v1313 = vpop.f32.mrb[0].mxu0
  %v1314 = vadd.f32 %v193, %v1313
  %v1315 = vpop.f32.mrb[0].mxu0
  %1316 = vmatprep.mubr.bf16.mxu0 0
  %1317 = vmatmul.mubr.bf16.gmra.mrb[0].mxu0 %v778
  %v1318 = vpop.f32.mrb[0].mxu0
  %v1319 = vadd.f32 %v193, %v1318
  %v1320 = vpop.f32.mrb[0].mxu0
  %v1321 = vpop.f32.mrb[0].mxu0
  %v1322 = vadd.f32 %v193, %v1321
  %v1323 = vpop.f32.mrb[0].mxu0
  %1324 = vmatprep.mubr.bf16.mxu0 0
  %1325 = vmatmul.mubr.bf16.gmra.mrb[0].mxu0 %v781
  %v1326 = vpop.f32.mrb[0].mxu0
  %v1327 = vadd.f32 %v193, %v1326
  %v1328 = vpop.f32.mrb[0].mxu0
  %v1329 = vpop.f32.mrb[0].mxu0
  %v1330 = vadd.f32 %v193, %v1329
  %v1331 = vpop.f32.mrb[0].mxu0
  %1332 = vmatprep.mubr.bf16.mxu0 0
  %1333 = vmatmul.mubr.bf16.gmra.mrb[0].mxu0 %v784
  %v1334 = vpop.f32.mrb[0].mxu0
  %v1335 = vadd.f32 %v193, %v1334
  %v1336 = vpop.f32.mrb[0].mxu0
  %v1337 = vpop.f32.mrb[0].mxu0
  %v1338 = vadd.f32 %v193, %v1337
  %v1339 = vpop.f32.mrb[0].mxu0
  %1340 = vmatprep.mubr.bf16.mxu0 0
  %1341 = vmatmul.mubr.bf16.gmra.mrb[0].mxu0 %v787
  %v1342 = vpop.f32.mrb[0].mxu0
  %v1343 = vadd.f32 %v193, %v1342
  %v1344 = vpop.f32.mrb[0].mxu0
  %v1345 = vpop.f32.mrb[0].mxu0
  %v1346 = vadd.f32 %v193, %v1345
  %v1347 = vpop.f32.mrb[0].mxu0
  %1348 = vmatprep.mubr.bf16.mxu0 0
  %1349 = vmatmul.mubr.bf16.gmra.mrb[0].mxu0 %v790
  %v1350 = vpop.f32.mrb[0].mxu0
  %v1351 = vadd.f32 %v193, %v1350
  %v1352 = vpop.f32.mrb[0].mxu0
  %v1353 = vpop.f32.mrb[0].mxu0
  %v1354 = vadd.f32 %v193, %v1353
  %v1355 = vpop.f32.mrb[0].mxu0
  %1356 = vmatprep.mubr.bf16.mxu0 0
  %1357 = vmatmul.mubr.bf16.gmra.mrb[0].mxu0 %v793
  %v1358 = vpop.f32.mrb[0].mxu0
  %v1359 = vadd.f32 %v193, %v1358
  %v1360 = vpop.f32.mrb[0].mxu0
  %v1361 = vpop.f32.mrb[0].mxu0
  %v1362 = vadd.f32 %v193, %v1361
  %v1363 = vpop.f32.mrb[0].mxu0
  %1364 = vmatprep.mubr.bf16.mxu0 0
  %1365 = vmatmul.mubr.bf16.gmra.mrb[0].mxu0 %v796
  %v1366 = vpop.f32.mrb[0].mxu0
  %v1367 = vadd.f32 %v193, %v1366
  %v1368 = vpop.f32.mrb[0].mxu0
  %v1369 = vpop.f32.mrb[0].mxu0
  %v1370 = vadd.f32 %v193, %v1369
  %v1371 = vpop.f32.mrb[0].mxu0
  %1372 = vmatprep.mubr.bf16.mxu0 0
  %1373 = vmatmul.mubr.bf16.gmra.mrb[0].mxu0 %v799
  %v1374 = vpop.f32.mrb[0].mxu0
  %v1375 = vadd.f32 %v193, %v1374
  %v1376 = vpop.f32.mrb[0].mxu0
  %v1377 = vpop.f32.mrb[0].mxu0
  %v1378 = vadd.f32 %v193, %v1377
  %v1379 = vpop.f32.mrb[0].mxu0
  %1380 = vmatprep.mubr.bf16.mxu0 0
  %1381 = vmatmul.mubr.bf16.gmra.mrb[0].mxu0 %v802
  %v1382 = vpop.f32.mrb[0].mxu0
  %v1383 = vadd.f32 %v193, %v1382
  %v1384 = vpop.f32.mrb[0].mxu0
  %v1385 = vpop.f32.mrb[0].mxu0
  %v1386 = vadd.f32 %v193, %v1385
  %v1387 = vpop.f32.mrb[0].mxu0
  %1388 = vmatprep.mubr.bf16.mxu0 0
  %1389 = vmatmul.mubr.bf16.gmra.mrb[0].mxu0 %v805
  %v1390 = vpop.f32.mrb[0].mxu0
  %v1391 = vadd.f32 %v193, %v1390
  %v1392 = vpop.f32.mrb[0].mxu0
  %v1393 = vpop.f32.mrb[0].mxu0
  %v1394 = vadd.f32 %v193, %v1393
  %v1395 = vpop.f32.mrb[0].mxu0
  %1396 = vmatprep.mubr.bf16.mxu0 0
  %1397 = vmatmul.mubr.bf16.gmra.mrb[0].mxu0 %v808
  %v1398 = vpop.f32.mrb[0].mxu0
  %v1399 = vadd.f32 %v193, %v1398
  %v1400 = vpop.f32.mrb[0].mxu0
  %v1401 = vpop.f32.mrb[0].mxu0
  %v1402 = vadd.f32 %v193, %v1401
  %v1403 = vpop.f32.mrb[0].mxu0
  %1404 = vmatprep.mubr.bf16.mxu0 0
  %1405 = vmatmul.mubr.bf16.gmra.mrb[0].mxu0 %v811
  %v1406 = vpop.f32.mrb[0].mxu0
  %v1407 = vadd.f32 %v193, %v1406
  %v1408 = vpop.f32.mrb[0].mxu0
  %v1409 = vpop.f32.mrb[0].mxu0
  %v1410 = vadd.f32 %v193, %v1409
  %v1411 = vpop.f32.mrb[0].mxu0
  %1412 = vmatprep.mubr.bf16.mxu0 0
  %1413 = vmatmul.mubr.bf16.gmra.mrb[0].mxu0 %v814
  %v1414 = vpop.f32.mrb[0].mxu0
  %v1415 = vadd.f32 %v193, %v1414
  %v1416 = vpop.f32.mrb[0].mxu0
  %v1417 = vpop.f32.mrb[0].mxu0
  %v1418 = vadd.f32 %v193, %v1417
  %v1419 = vpop.f32.mrb[0].mxu0
  %1420 = vmatprep.mubr.bf16.mxu0 0
  %1421 = vmatmul.mubr.bf16.gmra.mrb[0].mxu0 %v817
  %v1422 = vpop.f32.mrb[0].mxu0
  %v1423 = vadd.f32 %v193, %v1422
  %v1424 = vpop.f32.mrb[0].mxu0
  %v1425 = vpop.f32.mrb[0].mxu0
  %v1426 = vadd.f32 %v193, %v1425
  %v1427 = vpop.f32.mrb[0].mxu0
  %1428 = vmatprep.mubr.bf16.mxu0 0
  %1429 = vmatmul.mubr.bf16.gmra.mrb[0].mxu0 %v820
  %v1430 = vpop.f32.mrb[0].mxu0
  %v1431 = vadd.f32 %v193, %v1430
  %v1432 = vpop.f32.mrb[0].mxu0
  %v1433 = vpop.f32.mrb[0].mxu0
  %v1434 = vadd.f32 %v193, %v1433
  %v1435 = vpop.f32.mrb[0].mxu0
  %1436 = vmatprep.mubr.bf16.mxu0 0
  %1437 = vmatmul.mubr.bf16.gmra.mrb[0].mxu0 %v823
  %v1438 = vpop.f32.mrb[0].mxu0
  %v1439 = vadd.f32 %v193, %v1438
  %v1440 = vpop.f32.mrb[0].mxu0
  %v1441 = vpop.f32.mrb[0].mxu0
  %v1442 = vadd.f32 %v193, %v1441
  %v1443 = vpop.f32.mrb[0].mxu0
  %1444 = vmatprep.mubr.bf16.mxu0 0
  %1445 = vmatmul.mubr.bf16.gmra.mrb[0].mxu0 %v826
  %v1446 = vpop.f32.mrb[0].mxu0
  %v1447 = vadd.f32 %v193, %v1446
  %v1448 = vpop.f32.mrb[0].mxu0
  %v1449 = vpop.f32.mrb[0].mxu0
  %v1450 = vadd.f32 %v193, %v1449
  %v1451 = vpop.f32.mrb[0].mxu0
  %1452 = vmatprep.mubr.bf16.mxu0 0
  %1453 = vmatmul.mubr.bf16.gmra.mrb[0].mxu0 %v829
  %v1454 = vpop.f32.mrb[0].mxu0
  %v1455 = vadd.f32 %v193, %v1454
  %v1456 = vpop.f32.mrb[0].mxu0
  %v1457 = vpop.f32.mrb[0].mxu0
  %v1458 = vadd.f32 %v193, %v1457
  %v1459 = vpop.f32.mrb[0].mxu0
  %1460 = vmatprep.mubr.bf16.mxu0 0
  %1461 = vmatmul.mubr.bf16.gmra.mrb[0].mxu0 %v832
  %v1462 = vpop.f32.mrb[0].mxu0
  %v1463 = vadd.f32 %v193, %v1462
  %v1464 = vpop.f32.mrb[0].mxu0
  %v1465 = vpop.f32.mrb[0].mxu0
  %v1466 = vadd.f32 %v193, %v1465
  %v1467 = vpop.f32.mrb[0].mxu0
  %1468 = vmatprep.mubr.bf16.mxu0 0
  %1469 = vmatmul.mubr.bf16.gmra.mrb[0].mxu0 %v835
  %v1470 = vpop.f32.mrb[0].mxu0
  %v1471 = vadd.f32 %v193, %v1470
  %v1472 = vpop.f32.mrb[0].mxu0
  %v1473 = vpop.f32.mrb[0].mxu0
  %v1474 = vadd.f32 %v193, %v1473
  %v1475 = vpop.f32.mrb[0].mxu0
  %1476 = vmatprep.mubr.bf16.mxu0 0
  %1477 = vmatmul.mubr.bf16.gmra.mrb[0].mxu0 %v838
  %v1478 = vpop.f32.mrb[0].mxu0
  %v1479 = vadd.f32 %v193, %v1478
  %v1480 = vpop.f32.mrb[0].mxu0
  %v1481 = vpop.f32.mrb[0].mxu0
  %v1482 = vadd.f32 %v193, %v1481
  %v1483 = vpop.f32.mrb[0].mxu0
  %1484 = vmatprep.mubr.bf16.mxu0 0
  %1485 = vmatmul.mubr.bf16.gmra.mrb[0].mxu0 %v841
  %v1486 = vpop.f32.mrb[0].mxu0
  %v1487 = vadd.f32 %v193, %v1486
  %v1488 = vpop.f32.mrb[0].mxu0
  %v1489 = vpop.f32.mrb[0].mxu0
  %v1490 = vadd.f32 %v193, %v1489
  %v1491 = vpop.f32.mrb[0].mxu0
  %1492 = vmatprep.mubr.bf16.mxu0 0
  %1493 = vmatmul.mubr.bf16.gmra.mrb[0].mxu0 %v844
  %v1494 = vpop.f32.mrb[0].mxu0
  %v1495 = vadd.f32 %v193, %v1494
  %v1496 = vpop.f32.mrb[0].mxu0
  %v1497 = vpop.f32.mrb[0].mxu0
  %v1498 = vadd.f32 %v193, %v1497
  %v1499 = vpop.f32.mrb[0].mxu0
  %1500 = vmatprep.mubr.bf16.mxu0 0
  %1501 = vmatmul.mubr.bf16.gmra.mrb[0].mxu0 %v847
  %v1502 = vpop.f32.mrb[0].mxu0
  %v1503 = vadd.f32 %v193, %v1502
  %v1504 = vpop.f32.mrb[0].mxu0
  %v1505 = vpop.f32.mrb[0].mxu0
  %v1506 = vadd.f32 %v193, %v1505
  %v1507 = vpop.f32.mrb[0].mxu0
  %1508 = vmatprep.mubr.bf16.mxu0 0
  %1509 = vmatmul.mubr.bf16.gmra.mrb[0].mxu0 %v850
  %v1510 = vpop.f32.mrb[0].mxu0
  %v1511 = vadd.f32 %v193, %v1510
  %v1512 = vpop.f32.mrb[0].mxu0
  %v1513 = vpop.f32.mrb[0].mxu0
  %v1514 = vadd.f32 %v193, %v1513
  %v1515 = vpop.f32.mrb[0].mxu0
  %1516 = vmatprep.mubr.bf16.mxu0 0
  %1517 = vmatmul.mubr.bf16.gmra.mrb[0].mxu0 %v853
  %v1518 = vpop.f32.mrb[0].mxu0
  %v1519 = vadd.f32 %v193, %v1518
  %v1520 = vpop.f32.mrb[0].mxu0
  %v1521 = vpop.f32.mrb[0].mxu0
  %v1522 = vadd.f32 %v193, %v1521
  %v1523 = vpop.f32.mrb[0].mxu0
  %1524 = vmatprep.mubr.bf16.mxu0 0
  %1525 = vmatmul.mubr.bf16.gmra.mrb[0].mxu0 %v856
  %v1526 = vpop.f32.mrb[0].mxu0
  %v1527 = vadd.f32 %v193, %v1526
  %v1528 = vpop.f32.mrb[0].mxu0
  %v1529 = vpop.f32.mrb[0].mxu0
  %v1530 = vadd.f32 %v193, %v1529
  %v1531 = vpop.f32.mrb[0].mxu0
  %1532 = vmatprep.mubr.bf16.mxu0 0
  %1533 = vmatmul.mubr.bf16.gmra.mrb[0].mxu0 %v859
  %v1534 = vpop.f32.mrb[0].mxu0
  %v1535 = vadd.f32 %v193, %v1534
  %v1536 = vpop.f32.mrb[0].mxu0
  %v1537 = vpop.f32.mrb[0].mxu0
  %v1538 = vadd.f32 %v193, %v1537
  %v1539 = vpop.f32.mrb[0].mxu0
  %1540 = vmatprep.mubr.bf16.mxu0 0
  %1541 = vmatmul.mubr.bf16.gmra.mrb[0].mxu0 %v862
  %v1542 = vpop.f32.mrb[0].mxu0
  %v1543 = vadd.f32 %v193, %v1542
  %v1544 = vpop.f32.mrb[0].mxu0
  %v1545 = vpop.f32.mrb[0].mxu0
  %v1546 = vadd.f32 %v193, %v1545
  %v1547 = vpop.f32.mrb[0].mxu0
  %1548 = vmatprep.mubr.bf16.mxu0 0
  %1549 = vmatmul.mubr.bf16.gmra.mrb[0].mxu0 %v865
  %v1550 = vpop.f32.mrb[0].mxu0
  %v1551 = vadd.f32 %v193, %v1550
  %v1552 = vpop.f32.mrb[0].mxu0
  %v1553 = vpop.f32.mrb[0].mxu0
  %v1554 = vadd.f32 %v193, %v1553
  %v1555 = vpop.f32.mrb[0].mxu0
  %1556 = vmatprep.mubr.bf16.mxu0 0
  %1557 = vmatmul.mubr.bf16.gmra.mrb[0].mxu0 %v868
  %v1558 = vpop.f32.mrb[0].mxu0
  %v1559 = vadd.f32 %v193, %v1558
  %v1560 = vpop.f32.mrb[0].mxu0
  %v1561 = vpop.f32.mrb[0].mxu0
  %v1562 = vadd.f32 %v193, %v1561
  %v1563 = vpop.f32.mrb[0].mxu0
  %1564 = vmatprep.mubr.bf16.mxu0 0
  %1565 = vmatmul.mubr.bf16.gmra.mrb[0].mxu0 %v871
  %v1566 = vpop.f32.mrb[0].mxu0
  %v1567 = vadd.f32 %v193, %v1566
  %v1568 = vpop.f32.mrb[0].mxu0
  %v1569 = vpop.f32.mrb[0].mxu0
  %v1570 = vadd.f32 %v193, %v1569
  %v1571 = vpop.f32.mrb[0].mxu0
  %1572 = vmatprep.mubr.bf16.mxu0 0
  %1573 = vmatmul.mubr.bf16.gmra.mrb[0].mxu0 %v874
  %v1574 = vpop.f32.mrb[0].mxu0
  %v1575 = vadd.f32 %v193, %v1574
  %v1576 = vpop.f32.mrb[0].mxu0
  %v1577 = vpop.f32.mrb[0].mxu0
  %v1578 = vadd.f32 %v193, %v1577
  %v1579 = vpop.f32.mrb[0].mxu0
  %1580 = vmatprep.mubr.bf16.mxu0 0
  %1581 = vmatmul.mubr.bf16.gmra.mrb[0].mxu0 %v877
  %v1582 = vpop.f32.mrb[0].mxu0
  %v1583 = vadd.f32 %v193, %v1582
  %v1584 = vpop.f32.mrb[0].mxu0
  %v1585 = vpop.f32.mrb[0].mxu0
  %v1586 = vadd.f32 %v193, %v1585
  %v1587 = vpop.f32.mrb[0].mxu0
  %1588 = vmatprep.mubr.bf16.mxu0 0
  %1589 = vmatmul.mubr.bf16.gmra.mrb[0].mxu0 %v880
  %v1590 = vpop.f32.mrb[0].mxu0
  %v1591 = vadd.f32 %v193, %v1590
  %v1592 = vpop.f32.mrb[0].mxu0
  %v1593 = vpop.f32.mrb[0].mxu0
  %v1594 = vadd.f32 %v193, %v1593
  %v1595 = vpop.f32.mrb[0].mxu0
  %1596 = vmatprep.mubr.bf16.mxu0 0
  %1597 = vmatmul.mubr.bf16.gmra.mrb[0].mxu0 %v883
  %v1598 = vpop.f32.mrb[0].mxu0
  %v1599 = vadd.f32 %v193, %v1598
  %v1600 = vpop.f32.mrb[0].mxu0
  %v1601 = vpop.f32.mrb[0].mxu0
  %v1602 = vpop.f32.mrb[0].mxu0
  %1603 = vdwg.mxu0
  %v1604 = vmax.f32 %v927, 0.0
  %v1605 = vmax.f32 %v930, 0.0
  %v1606 = vmax.f32 %v935, 0.0
  %v1607 = vmax.f32 %v938, 0.0
  %v1608 = vmax.f32 %v943, 0.0
  %v1609 = vmax.f32 %v946, 0.0
  %v1610 = vmax.f32 %v951, 0.0
  %v1611 = vmax.f32 %v954, 0.0
  %v1612 = vmax.f32 %v959, 0.0
  %v1613 = vmax.f32 %v962, 0.0
  %v1614 = vmax.f32 %v967, 0.0
  %v1615 = vmax.f32 %v970, 0.0
  %v1616 = vmax.f32 %v975, 0.0
  %v1617 = vmax.f32 %v978, 0.0
  %v1618 = vmax.f32 %v983, 0.0
  %v1619 = vmax.f32 %v986, 0.0
  %v1620 = vmax.f32 %v991, 0.0
  %v1621 = vmax.f32 %v994, 0.0
  %v1622 = vmax.f32 %v999, 0.0
  %v1623 = vmax.f32 %v1002, 0.0
  %v1624 = vmax.f32 %v1007, 0.0
  %v1625 = vmax.f32 %v1010, 0.0
  %v1626 = vmax.f32 %v1015, 0.0
  %v1627 = vmax.f32 %v1018, 0.0
  %v1628 = vmax.f32 %v1023, 0.0
  %v1629 = vmax.f32 %v1026, 0.0
  %v1630 = vmax.f32 %v1031, 0.0
  %v1631 = vmax.f32 %v1034, 0.0
  %v1632 = vmax.f32 %v1039, 0.0
  %v1633 = vmax.f32 %v1042, 0.0
  %v1634 = vmax.f32 %v1047, 0.0
  %v1635 = vmax.f32 %v1050, 0.0
  %v1636 = vmax.f32 %v1055, 0.0
  %v1637 = vmax.f32 %v1058, 0.0
  %v1638 = vmax.f32 %v1063, 0.0
  %v1639 = vmax.f32 %v1066, 0.0
  %v1640 = vmax.f32 %v1071, 0.0
  %v1641 = vmax.f32 %v1074, 0.0
  %v1642 = vmax.f32 %v1079, 0.0
  %v1643 = vmax.f32 %v1082, 0.0
  %v1644 = vmax.f32 %v1087, 0.0
  %v1645 = vmax.f32 %v1090, 0.0
  %v1646 = vmax.f32 %v1095, 0.0
  %v1647 = vmax.f32 %v1098, 0.0
  %v1648 = vmax.f32 %v1103, 0.0
  %v1649 = vmax.f32 %v1106, 0.0
  %v1650 = vmax.f32 %v1111, 0.0
  %v1651 = vmax.f32 %v1114, 0.0
  %v1652 = vmax.f32 %v1119, 0.0
  %v1653 = vmax.f32 %v1122, 0.0
  %v1654 = vmax.f32 %v1127, 0.0
  %v1655 = vmax.f32 %v1130, 0.0
  %v1656 = vmax.f32 %v1135, 0.0
  %v1657 = vmax.f32 %v1138, 0.0
  %v1658 = vmax.f32 %v1143, 0.0
  %v1659 = vmax.f32 %v1146, 0.0
  %v1660 = vmax.f32 %v1151, 0.0
  %v1661 = vmax.f32 %v1154, 0.0
  %v1662 = vmax.f32 %v1159, 0.0
  %v1663 = vmax.f32 %v1162, 0.0
  %v1664 = vmax.f32 %v1167, 0.0
  %v1665 = vmax.f32 %v1170, 0.0
  %v1666 = vmax.f32 %v1175, 0.0
  %v1667 = vmax.f32 %v1178, 0.0
  %v1668 = vmax.f32 %v1183, 0.0
  %v1669 = vmax.f32 %v1186, 0.0
  %v1670 = vmax.f32 %v1191, 0.0
  %v1671 = vmax.f32 %v1194, 0.0
  %v1672 = vmax.f32 %v1199, 0.0
  %v1673 = vmax.f32 %v1202, 0.0
  %v1674 = vmax.f32 %v1207, 0.0
  %v1675 = vmax.f32 %v1210, 0.0
  %v1676 = vmax.f32 %v1215, 0.0
  %v1677 = vmax.f32 %v1218, 0.0
  %v1678 = vmax.f32 %v1223, 0.0
  %v1679 = vmax.f32 %v1226, 0.0
  %v1680 = vmax.f32 %v1231, 0.0
  %v1681 = vmax.f32 %v1234, 0.0
  %v1682 = vmax.f32 %v1239, 0.0
  %v1683 = vmax.f32 %v1242, 0.0
  %v1684 = vmax.f32 %v1247, 0.0
  %v1685 = vmax.f32 %v1250, 0.0
  %v1686 = vmax.f32 %v1255, 0.0
  %v1687 = vmax.f32 %v1258, 0.0
  %v1688 = vmax.f32 %v1263, 0.0
  %v1689 = vmax.f32 %v1266, 0.0
  %v1690 = vmax.f32 %v1271, 0.0
  %v1691 = vmax.f32 %v1274, 0.0
  %v1692 = vmax.f32 %v1279, 0.0
  %v1693 = vmax.f32 %v1282, 0.0
  %v1694 = vmax.f32 %v1287, 0.0
  %v1695 = vmax.f32 %v1290, 0.0
  %v1696 = vmax.f32 %v1295, 0.0
  %v1697 = vmax.f32 %v1298, 0.0
  %v1698 = vmax.f32 %v1303, 0.0
  %v1699 = vmax.f32 %v1306, 0.0
  %v1700 = vmax.f32 %v1311, 0.0
  %v1701 = vmax.f32 %v1314, 0.0
  %v1702 = vmax.f32 %v1319, 0.0
  %v1703 = vmax.f32 %v1322, 0.0
  %v1704 = vmax.f32 %v1327, 0.0
  %v1705 = vmax.f32 %v1330, 0.0
  %v1706 = vmax.f32 %v1335, 0.0
  %v1707 = vmax.f32 %v1338, 0.0
  %v1708 = vmax.f32 %v1343, 0.0
  %v1709 = vmax.f32 %v1346, 0.0
  %v1710 = vmax.f32 %v1351, 0.0
  %v1711 = vmax.f32 %v1354, 0.0
  %v1712 = vmax.f32 %v1359, 0.0
  %v1713 = vmax.f32 %v1362, 0.0
  %v1714 = vmax.f32 %v1367, 0.0
  %v1715 = vmax.f32 %v1370, 0.0
  %v1716 = vmax.f32 %v1375, 0.0
  %v1717 = vmax.f32 %v1378, 0.0
  %v1718 = vmax.f32 %v1383, 0.0
  %v1719 = vmax.f32 %v1386, 0.0
  %v1720 = vmax.f32 %v1391, 0.0
  %v1721 = vmax.f32 %v1394, 0.0
  %v1722 = vmax.f32 %v1399, 0.0
  %v1723 = vmax.f32 %v1402, 0.0
  %v1724 = vmax.f32 %v1407, 0.0
  %v1725 = vmax.f32 %v1410, 0.0
  %v1726 = vmax.f32 %v1415, 0.0
  %v1727 = vmax.f32 %v1418, 0.0
  %v1728 = vmax.f32 %v1423, 0.0
  %v1729 = vmax.f32 %v1426, 0.0
  %v1730 = vmax.f32 %v1431, 0.0
  %v1731 = vmax.f32 %v1434, 0.0
  %v1732 = vmax.f32 %v1439, 0.0
  %v1733 = vmax.f32 %v1442, 0.0
  %v1734 = vmax.f32 %v1447, 0.0
  %v1735 = vmax.f32 %v1450, 0.0
  %v1736 = vmax.f32 %v1455, 0.0
  %v1737 = vmax.f32 %v1458, 0.0
  %v1738 = vmax.f32 %v1463, 0.0
  %v1739 = vmax.f32 %v1466, 0.0
  %v1740 = vmax.f32 %v1471, 0.0
  %v1741 = vmax.f32 %v1474, 0.0
  %v1742 = vmax.f32 %v1479, 0.0
  %v1743 = vmax.f32 %v1482, 0.0
  %v1744 = vmax.f32 %v1487, 0.0
  %v1745 = vmax.f32 %v1490, 0.0
  %v1746 = vmax.f32 %v1495, 0.0
  %v1747 = vmax.f32 %v1498, 0.0
  %v1748 = vmax.f32 %v1503, 0.0
  %v1749 = vmax.f32 %v1506, 0.0
  %v1750 = vmax.f32 %v1511, 0.0
  %v1751 = vmax.f32 %v1514, 0.0
  %v1752 = vmax.f32 %v1519, 0.0
  %v1753 = vmax.f32 %v1522, 0.0
  %v1754 = vmax.f32 %v1527, 0.0
  %v1755 = vmax.f32 %v1530, 0.0
  %v1756 = vmax.f32 %v1535, 0.0
  %v1757 = vmax.f32 %v1538, 0.0
  %v1758 = vmax.f32 %v1543, 0.0
  %v1759 = vmax.f32 %v1546, 0.0
  %v1760 = vmax.f32 %v1551, 0.0
  %v1761 = vmax.f32 %v1554, 0.0
  %v1762 = vmax.f32 %v1559, 0.0
  %v1763 = vmax.f32 %v1562, 0.0
  %v1764 = vmax.f32 %v1567, 0.0
  %v1765 = vmax.f32 %v1570, 0.0
  %v1766 = vmax.f32 %v1575, 0.0
  %v1767 = vmax.f32 %v1578, 0.0
  %v1768 = vmax.f32 %v1583, 0.0
  %v1769 = vmax.f32 %v1586, 0.0
  %v1770 = vmax.f32 %v1591, 0.0
  %v1771 = vmax.f32 %v1594, 0.0
  %v1772 = vmax.f32 %v1599, 0.0
  %v1773 = vpack.c.bf16 %v1605, %v1604
  %v1774 = vpack.c.bf16 %v1607, %v1606
  %v1775 = vpack.c.bf16 %v1609, %v1608
  %v1776 = vpack.c.bf16 %v1611, %v1610
  %v1777 = vpack.c.bf16 %v1613, %v1612
  %v1778 = vpack.c.bf16 %v1615, %v1614
  %v1779 = vpack.c.bf16 %v1617, %v1616
  %v1780 = vpack.c.bf16 %v1619, %v1618
  %v1781 = vpack.c.bf16 %v1621, %v1620
  %v1782 = vpack.c.bf16 %v1623, %v1622
  %v1783 = vpack.c.bf16 %v1625, %v1624
  %v1784 = vpack.c.bf16 %v1627, %v1626
  %v1785 = vpack.c.bf16 %v1629, %v1628
  %v1786 = vpack.c.bf16 %v1631, %v1630
  %v1787 = vpack.c.bf16 %v1633, %v1632
  %v1788 = vpack.c.bf16 %v1635, %v1634
  %v1789 = vpack.c.bf16 %v1637, %v1636
  %v1790 = vpack.c.bf16 %v1639, %v1638
  %v1791 = vpack.c.bf16 %v1641, %v1640
  %v1792 = vpack.c.bf16 %v1643, %v1642
  %v1793 = vpack.c.bf16 %v1645, %v1644
  %v1794 = vpack.c.bf16 %v1647, %v1646
  %v1795 = vpack.c.bf16 %v1649, %v1648
  %v1796 = vpack.c.bf16 %v1651, %v1650
  %v1797 = vpack.c.bf16 %v1653, %v1652
  %v1798 = vpack.c.bf16 %v1655, %v1654
  %v1799 = vpack.c.bf16 %v1657, %v1656
  %v1800 = vpack.c.bf16 %v1659, %v1658
  %v1801 = vpack.c.bf16 %v1661, %v1660
  %v1802 = vpack.c.bf16 %v1663, %v1662
  %v1803 = vpack.c.bf16 %v1665, %v1664
  %v1804 = vpack.c.bf16 %v1667, %v1666
  %v1805 = vpack.c.bf16 %v1669, %v1668
  %v1806 = vpack.c.bf16 %v1671, %v1670
  %v1807 = vpack.c.bf16 %v1673, %v1672
  %v1808 = vpack.c.bf16 %v1675, %v1674
  %v1809 = vpack.c.bf16 %v1677, %v1676
  %v1810 = vpack.c.bf16 %v1679, %v1678
  %v1811 = vpack.c.bf16 %v1681, %v1680
  %v1812 = vpack.c.bf16 %v1683, %v1682
  %v1813 = vpack.c.bf16 %v1685, %v1684
  %v1814 = vpack.c.bf16 %v1687, %v1686
  %v1815 = vpack.c.bf16 %v1689, %v1688
  %v1816 = vpack.c.bf16 %v1691, %v1690
  %v1817 = vpack.c.bf16 %v1693, %v1692
  %v1818 = vpack.c.bf16 %v1695, %v1694
  %v1819 = vpack.c.bf16 %v1697, %v1696
  %v1820 = vpack.c.bf16 %v1699, %v1698
  %v1821 = vpack.c.bf16 %v1701, %v1700
  %v1822 = vpack.c.bf16 %v1703, %v1702
  %v1823 = vpack.c.bf16 %v1705, %v1704
  %v1824 = vpack.c.bf16 %v1707, %v1706
  %v1825 = vpack.c.bf16 %v1709, %v1708
  %v1826 = vpack.c.bf16 %v1711, %v1710
  %v1827 = vpack.c.bf16 %v1713, %v1712
  %v1828 = vpack.c.bf16 %v1715, %v1714
  %v1829 = vpack.c.bf16 %v1717, %v1716
  %v1830 = vpack.c.bf16 %v1719, %v1718
  %v1831 = vpack.c.bf16 %v1721, %v1720
  %v1832 = vpack.c.bf16 %v1723, %v1722
  %v1833 = vpack.c.bf16 %v1725, %v1724
  %v1834 = vpack.c.bf16 %v1727, %v1726
  %v1835 = vpack.c.bf16 %v1729, %v1728
  %v1836 = vpack.c.bf16 %v1731, %v1730
  %v1837 = vpack.c.bf16 %v1733, %v1732
  %v1838 = vpack.c.bf16 %v1735, %v1734
  %v1839 = vpack.c.bf16 %v1737, %v1736
  %v1840 = vpack.c.bf16 %v1739, %v1738
  %v1841 = vpack.c.bf16 %v1741, %v1740
  %v1842 = vpack.c.bf16 %v1743, %v1742
  %v1843 = vpack.c.bf16 %v1745, %v1744
  %v1844 = vpack.c.bf16 %v1747, %v1746
  %v1845 = vpack.c.bf16 %v1749, %v1748
  %v1846 = vpack.c.bf16 %v1751, %v1750
  %v1847 = vpack.c.bf16 %v1753, %v1752
  %v1848 = vpack.c.bf16 %v1755, %v1754
  %v1849 = vpack.c.bf16 %v1757, %v1756
  %v1850 = vpack.c.bf16 %v1759, %v1758
  %v1851 = vpack.c.bf16 %v1761, %v1760
  %v1852 = vpack.c.bf16 %v1763, %v1762
  %v1853 = vpack.c.bf16 %v1765, %v1764
  %v1854 = vpack.c.bf16 %v1767, %v1766
  %v1855 = vpack.c.bf16 %v1769, %v1768
  %v1856 = vpack.c.bf16 %v1771, %v1770
  %v1857 = vpack.c.bf16 %v1772, %v1772
  %v1943 = vunpack.c.l.b16 %v1773
  %v1944 = vunpack.c.h.b16 %v1773
  %v1945 = vunpack.c.l.b16 %v1774
  %v1946 = vunpack.c.h.b16 %v1774
  %v1947 = vunpack.c.l.b16 %v1775
  %v1948 = vunpack.c.h.b16 %v1775
  %v1949 = vunpack.c.l.b16 %v1776
  %v1950 = vunpack.c.h.b16 %v1776
  %v1951 = vunpack.c.l.b16 %v1777
  %v1952 = vunpack.c.h.b16 %v1777
  %v1953 = vunpack.c.l.b16 %v1778
  %v1954 = vunpack.c.h.b16 %v1778
  %v1955 = vunpack.c.l.b16 %v1779
  %v1956 = vunpack.c.h.b16 %v1779
  %v1957 = vunpack.c.l.b16 %v1780
  %v1958 = vunpack.c.h.b16 %v1780
  %v1959 = vunpack.c.l.b16 %v1781
  %v1960 = vunpack.c.h.b16 %v1781
  %v1961 = vunpack.c.l.b16 %v1782
  %v1962 = vunpack.c.h.b16 %v1782
  %v1963 = vunpack.c.l.b16 %v1783
  %v1964 = vunpack.c.h.b16 %v1783
  %v1965 = vunpack.c.l.b16 %v1784
  %v1966 = vunpack.c.h.b16 %v1784
  %v1967 = vunpack.c.l.b16 %v1785
  %v1968 = vunpack.c.h.b16 %v1785
  %v1969 = vunpack.c.l.b16 %v1786
  %v1970 = vunpack.c.h.b16 %v1786
  %v1971 = vunpack.c.l.b16 %v1787
  %v1972 = vunpack.c.h.b16 %v1787
  %v1973 = vunpack.c.l.b16 %v1788
  %v1974 = vunpack.c.h.b16 %v1788
  %v1975 = vunpack.c.l.b16 %v1789
  %v1976 = vunpack.c.h.b16 %v1789
  %v1977 = vunpack.c.l.b16 %v1790
  %v1978 = vunpack.c.h.b16 %v1790
  %v1979 = vunpack.c.l.b16 %v1791
  %v1980 = vunpack.c.h.b16 %v1791
  %v1981 = vunpack.c.l.b16 %v1792
  %v1982 = vunpack.c.h.b16 %v1792
  %v1983 = vunpack.c.l.b16 %v1793
  %v1984 = vunpack.c.h.b16 %v1793
  %v1985 = vunpack.c.l.b16 %v1794
  %v1986 = vunpack.c.h.b16 %v1794
  %v1987 = vunpack.c.l.b16 %v1795
  %v1988 = vunpack.c.h.b16 %v1795
  %v1989 = vunpack.c.l.b16 %v1796
  %v1990 = vunpack.c.h.b16 %v1796
  %v1991 = vunpack.c.l.b16 %v1797
  %v1992 = vunpack.c.h.b16 %v1797
  %v1993 = vunpack.c.l.b16 %v1798
  %v1994 = vunpack.c.h.b16 %v1798
  %v1995 = vunpack.c.l.b16 %v1799
  %v1996 = vunpack.c.h.b16 %v1799
  %v1997 = vunpack.c.l.b16 %v1800
  %v1998 = vunpack.c.h.b16 %v1800
  %v1999 = vunpack.c.l.b16 %v1801
  %v2000 = vunpack.c.h.b16 %v1801
  %v2001 = vunpack.c.l.b16 %v1802
  %v2002 = vunpack.c.h.b16 %v1802
  %v2003 = vunpack.c.l.b16 %v1803
  %v2004 = vunpack.c.h.b16 %v1803
  %v2005 = vunpack.c.l.b16 %v1804
  %v2006 = vunpack.c.h.b16 %v1804
  %v2007 = vunpack.c.l.b16 %v1805
  %v2008 = vunpack.c.h.b16 %v1805
  %v2009 = vunpack.c.l.b16 %v1806
  %v2010 = vunpack.c.h.b16 %v1806
  %v2011 = vunpack.c.l.b16 %v1807
  %v2012 = vunpack.c.h.b16 %v1807
  %v2013 = vunpack.c.l.b16 %v1808
  %v2014 = vunpack.c.h.b16 %v1808
  %v2015 = vunpack.c.l.b16 %v1809
  %v2016 = vunpack.c.h.b16 %v1809
  %v2017 = vunpack.c.l.b16 %v1810
  %v2018 = vunpack.c.h.b16 %v1810
  %v2019 = vunpack.c.l.b16 %v1811
  %v2020 = vunpack.c.h.b16 %v1811
  %v2021 = vunpack.c.l.b16 %v1812
  %v2022 = vunpack.c.h.b16 %v1812
  %v2023 = vunpack.c.l.b16 %v1813
  %v2024 = vunpack.c.h.b16 %v1813
  %v2025 = vunpack.c.l.b16 %v1814
  %v2026 = vunpack.c.h.b16 %v1814
  %v2027 = vunpack.c.l.b16 %v1815
  %v2028 = vunpack.c.h.b16 %v1815
  %v2029 = vunpack.c.l.b16 %v1816
  %v2030 = vunpack.c.h.b16 %v1816
  %v2031 = vunpack.c.l.b16 %v1817
  %v2032 = vunpack.c.h.b16 %v1817
  %v2033 = vunpack.c.l.b16 %v1818
  %v2034 = vunpack.c.h.b16 %v1818
  %v2035 = vunpack.c.l.b16 %v1819
  %v2036 = vunpack.c.h.b16 %v1819
  %v2037 = vunpack.c.l.b16 %v1820
  %v2038 = vunpack.c.h.b16 %v1820
  %v2039 = vunpack.c.l.b16 %v1821
  %v2040 = vunpack.c.h.b16 %v1821
  %v2041 = vunpack.c.l.b16 %v1822
  %v2042 = vunpack.c.h.b16 %v1822
  %v2043 = vunpack.c.l.b16 %v1823
  %v2044 = vunpack.c.h.b16 %v1823
  %v2045 = vunpack.c.l.b16 %v1824
  %v2046 = vunpack.c.h.b16 %v1824
  %v2047 = vunpack.c.l.b16 %v1825
  %v2048 = vunpack.c.h.b16 %v1825
  %v2049 = vunpack.c.l.b16 %v1826
  %v2050 = vunpack.c.h.b16 %v1826
  %v2051 = vunpack.c.l.b16 %v1827
  %v2052 = vunpack.c.h.b16 %v1827
  %v2053 = vunpack.c.l.b16 %v1828
  %v2054 = vunpack.c.h.b16 %v1828
  %v2055 = vunpack.c.l.b16 %v1829
  %v2056 = vunpack.c.h.b16 %v1829
  %v2057 = vunpack.c.l.b16 %v1830
  %v2058 = vunpack.c.h.b16 %v1830
  %v2059 = vunpack.c.l.b16 %v1831
  %v2060 = vunpack.c.h.b16 %v1831
  %v2061 = vunpack.c.l.b16 %v1832
  %v2062 = vunpack.c.h.b16 %v1832
  %v2063 = vunpack.c.l.b16 %v1833
  %v2064 = vunpack.c.h.b16 %v1833
  %v2065 = vunpack.c.l.b16 %v1834
  %v2066 = vunpack.c.h.b16 %v1834
  %v2067 = vunpack.c.l.b16 %v1835
  %v2068 = vunpack.c.h.b16 %v1835
  %v2069 = vunpack.c.l.b16 %v1836
  %v2070 = vunpack.c.h.b16 %v1836
  %v2071 = vunpack.c.l.b16 %v1837
  %v2072 = vunpack.c.h.b16 %v1837
  %v2073 = vunpack.c.l.b16 %v1838
  %v2074 = vunpack.c.h.b16 %v1838
  %v2075 = vunpack.c.l.b16 %v1839
  %v2076 = vunpack.c.h.b16 %v1839
  %v2077 = vunpack.c.l.b16 %v1840
  %v2078 = vunpack.c.h.b16 %v1840
  %v2079 = vunpack.c.l.b16 %v1841
  %v2080 = vunpack.c.h.b16 %v1841
  %v2081 = vunpack.c.l.b16 %v1842
  %v2082 = vunpack.c.h.b16 %v1842
  %v2083 = vunpack.c.l.b16 %v1843
  %v2084 = vunpack.c.h.b16 %v1843
  %v2085 = vunpack.c.l.b16 %v1844
  %v2086 = vunpack.c.h.b16 %v1844
  %v2087 = vunpack.c.l.b16 %v1845
  %v2088 = vunpack.c.h.b16 %v1845
  %v2089 = vunpack.c.l.b16 %v1846
  %v2090 = vunpack.c.h.b16 %v1846
  %v2091 = vunpack.c.l.b16 %v1847
  %v2092 = vunpack.c.h.b16 %v1847
  %v2093 = vunpack.c.l.b16 %v1848
  %v2094 = vunpack.c.h.b16 %v1848
  %v2095 = vunpack.c.l.b16 %v1849
  %v2096 = vunpack.c.h.b16 %v1849
  %v2097 = vunpack.c.l.b16 %v1850
  %v2098 = vunpack.c.h.b16 %v1850
  %v2099 = vunpack.c.l.b16 %v1851
  %v2100 = vunpack.c.h.b16 %v1851
  %v2101 = vunpack.c.l.b16 %v1852
  %v2102 = vunpack.c.h.b16 %v1852
  %v2103 = vunpack.c.l.b16 %v1853
  %v2104 = vunpack.c.h.b16 %v1853
  %v2105 = vunpack.c.l.b16 %v1854
  %v2106 = vunpack.c.h.b16 %v1854
  %v2107 = vunpack.c.l.b16 %v1855
  %v2108 = vunpack.c.h.b16 %v1855
  %v2109 = vunpack.c.l.b16 %v1856
  %v2110 = vunpack.c.h.b16 %v1856
  %v2111 = vunpack.c.l.b16 %v1857
  %v2112 = vpack.c.b16 %v1943, %v1943
  %v2113 = vpack.c.b16 %v1944, %v1944
  %v2114 = vpack.c.b16 %v1945, %v1945
  %v2115 = vpack.c.b16 %v1946, %v1946
  %v2116 = vpack.c.b16 %v1947, %v1947
  %v2117 = vpack.c.b16 %v1948, %v1948
  %v2118 = vpack.c.b16 %v1949, %v1949
  %v2119 = vpack.c.b16 %v1950, %v1950
  %v2120 = vpack.c.b16 %v1951, %v1951
  %v2121 = vpack.c.b16 %v1952, %v1952
  %v2122 = vpack.c.b16 %v1953, %v1953
  %v2123 = vpack.c.b16 %v1954, %v1954
  %v2124 = vpack.c.b16 %v1955, %v1955
  %v2125 = vpack.c.b16 %v1956, %v1956
  %v2126 = vpack.c.b16 %v1957, %v1957
  %v2127 = vpack.c.b16 %v1958, %v1958
  %v2128 = vpack.c.b16 %v1959, %v1959
  %v2129 = vpack.c.b16 %v1960, %v1960
  %v2130 = vpack.c.b16 %v1961, %v1961
  %v2131 = vpack.c.b16 %v1962, %v1962
  %v2132 = vpack.c.b16 %v1963, %v1963
  %v2133 = vpack.c.b16 %v1964, %v1964
  %v2134 = vpack.c.b16 %v1965, %v1965
  %v2135 = vpack.c.b16 %v1966, %v1966
  %v2136 = vpack.c.b16 %v1967, %v1967
  %v2137 = vpack.c.b16 %v1968, %v1968
  %v2138 = vpack.c.b16 %v1969, %v1969
  %v2139 = vpack.c.b16 %v1970, %v1970
  %v2140 = vpack.c.b16 %v1971, %v1971
  %v2141 = vpack.c.b16 %v1972, %v1972
  %v2142 = vpack.c.b16 %v1973, %v1973
  %v2143 = vpack.c.b16 %v1974, %v1974
  %v2144 = vpack.c.b16 %v1975, %v1975
  %v2145 = vpack.c.b16 %v1976, %v1976
  %v2146 = vpack.c.b16 %v1977, %v1977
  %v2147 = vpack.c.b16 %v1978, %v1978
  %v2148 = vpack.c.b16 %v1979, %v1979
  %v2149 = vpack.c.b16 %v1980, %v1980
  %v2150 = vpack.c.b16 %v1981, %v1981
  %v2151 = vpack.c.b16 %v1982, %v1982
  %v2152 = vpack.c.b16 %v1983, %v1983
  %v2153 = vpack.c.b16 %v1984, %v1984
  %v2154 = vpack.c.b16 %v1985, %v1985
  %v2155 = vpack.c.b16 %v1986, %v1986
  %v2156 = vpack.c.b16 %v1987, %v1987
  %v2157 = vpack.c.b16 %v1988, %v1988
  %v2158 = vpack.c.b16 %v1989, %v1989
  %v2159 = vpack.c.b16 %v1990, %v1990
  %v2160 = vpack.c.b16 %v1991, %v1991
  %v2161 = vpack.c.b16 %v1992, %v1992
  %v2162 = vpack.c.b16 %v1993, %v1993
  %v2163 = vpack.c.b16 %v1994, %v1994
  %v2164 = vpack.c.b16 %v1995, %v1995
  %v2165 = vpack.c.b16 %v1996, %v1996
  %v2166 = vpack.c.b16 %v1997, %v1997
  %v2167 = vpack.c.b16 %v1998, %v1998
  %v2168 = vpack.c.b16 %v1999, %v1999
  %v2169 = vpack.c.b16 %v2000, %v2000
  %v2170 = vpack.c.b16 %v2001, %v2001
  %v2171 = vpack.c.b16 %v2002, %v2002
  %v2172 = vpack.c.b16 %v2003, %v2003
  %v2173 = vpack.c.b16 %v2004, %v2004
  %v2174 = vpack.c.b16 %v2005, %v2005
  %v2175 = vpack.c.b16 %v2006, %v2006
  %v2176 = vpack.c.b16 %v2007, %v2007
  %v2177 = vpack.c.b16 %v2008, %v2008
  %v2178 = vpack.c.b16 %v2009, %v2009
  %v2179 = vpack.c.b16 %v2010, %v2010
  %v2180 = vpack.c.b16 %v2011, %v2011
  %v2181 = vpack.c.b16 %v2012, %v2012
  %v2182 = vpack.c.b16 %v2013, %v2013
  %v2183 = vpack.c.b16 %v2014, %v2014
  %v2184 = vpack.c.b16 %v2015, %v2015
  %v2185 = vpack.c.b16 %v2016, %v2016
  %v2186 = vpack.c.b16 %v2017, %v2017
  %v2187 = vpack.c.b16 %v2018, %v2018
  %v2188 = vpack.c.b16 %v2019, %v2019
  %v2189 = vpack.c.b16 %v2020, %v2020
  %v2190 = vpack.c.b16 %v2021, %v2021
  %v2191 = vpack.c.b16 %v2022, %v2022
  %v2192 = vpack.c.b16 %v2023, %v2023
  %v2193 = vpack.c.b16 %v2024, %v2024
  %v2194 = vpack.c.b16 %v2025, %v2025
  %v2195 = vpack.c.b16 %v2026, %v2026
  %v2196 = vpack.c.b16 %v2027, %v2027
  %v2197 = vpack.c.b16 %v2028, %v2028
  %v2198 = vpack.c.b16 %v2029, %v2029
  %v2199 = vpack.c.b16 %v2030, %v2030
  %v2200 = vpack.c.b16 %v2031, %v2031
  %v2201 = vpack.c.b16 %v2032, %v2032
  %v2202 = vpack.c.b16 %v2033, %v2033
  %v2203 = vpack.c.b16 %v2034, %v2034
  %v2204 = vpack.c.b16 %v2035, %v2035
  %v2205 = vpack.c.b16 %v2036, %v2036
  %v2206 = vpack.c.b16 %v2037, %v2037
  %v2207 = vpack.c.b16 %v2038, %v2038
  %v2208 = vpack.c.b16 %v2039, %v2039
  %v2209 = vpack.c.b16 %v2040, %v2040
  %v2210 = vpack.c.b16 %v2041, %v2041
  %v2211 = vpack.c.b16 %v2042, %v2042
  %v2212 = vpack.c.b16 %v2043, %v2043
  %v2213 = vpack.c.b16 %v2044, %v2044
  %v2214 = vpack.c.b16 %v2045, %v2045
  %v2215 = vpack.c.b16 %v2046, %v2046
  %v2216 = vpack.c.b16 %v2047, %v2047
  %v2217 = vpack.c.b16 %v2048, %v2048
  %v2218 = vpack.c.b16 %v2049, %v2049
  %v2219 = vpack.c.b16 %v2050, %v2050
  %v2220 = vpack.c.b16 %v2051, %v2051
  %v2221 = vpack.c.b16 %v2052, %v2052
  %v2222 = vpack.c.b16 %v2053, %v2053
  %v2223 = vpack.c.b16 %v2054, %v2054
  %v2224 = vpack.c.b16 %v2055, %v2055
  %v2225 = vpack.c.b16 %v2056, %v2056
  %v2226 = vpack.c.b16 %v2057, %v2057
  %v2227 = vpack.c.b16 %v2058, %v2058
  %v2228 = vpack.c.b16 %v2059, %v2059
  %v2229 = vpack.c.b16 %v2060, %v2060
  %v2230 = vpack.c.b16 %v2061, %v2061
  %v2231 = vpack.c.b16 %v2062, %v2062
  %v2232 = vpack.c.b16 %v2063, %v2063
  %v2233 = vpack.c.b16 %v2064, %v2064
  %v2234 = vpack.c.b16 %v2065, %v2065
  %v2235 = vpack.c.b16 %v2066, %v2066
  %v2236 = vpack.c.b16 %v2067, %v2067
  %v2237 = vpack.c.b16 %v2068, %v2068
  %v2238 = vpack.c.b16 %v2069, %v2069
  %v2239 = vpack.c.b16 %v2070, %v2070
  %v2240 = vpack.c.b16 %v2071, %v2071
  %v2241 = vpack.c.b16 %v2072, %v2072
  %v2242 = vpack.c.b16 %v2073, %v2073
  %v2243 = vpack.c.b16 %v2074, %v2074
  %v2244 = vpack.c.b16 %v2075, %v2075
  %v2245 = vpack.c.b16 %v2076, %v2076
  %v2246 = vpack.c.b16 %v2077, %v2077
  %v2247 = vpack.c.b16 %v2078, %v2078
  %v2248 = vpack.c.b16 %v2079, %v2079
  %v2249 = vpack.c.b16 %v2080, %v2080
  %v2250 = vpack.c.b16 %v2081, %v2081
  %v2251 = vpack.c.b16 %v2082, %v2082
  %v2252 = vpack.c.b16 %v2083, %v2083
  %v2253 = vpack.c.b16 %v2084, %v2084
  %v2254 = vpack.c.b16 %v2085, %v2085
  %v2255 = vpack.c.b16 %v2086, %v2086
  %v2256 = vpack.c.b16 %v2087, %v2087
  %v2257 = vpack.c.b16 %v2088, %v2088
  %v2258 = vpack.c.b16 %v2089, %v2089
  %v2259 = vpack.c.b16 %v2090, %v2090
  %v2260 = vpack.c.b16 %v2091, %v2091
  %v2261 = vpack.c.b16 %v2092, %v2092
  %v2262 = vpack.c.b16 %v2093, %v2093
  %v2263 = vpack.c.b16 %v2094, %v2094
  %v2264 = vpack.c.b16 %v2095, %v2095
  %v2265 = vpack.c.b16 %v2096, %v2096
  %v2266 = vpack.c.b16 %v2097, %v2097
  %v2267 = vpack.c.b16 %v2098, %v2098
  %v2268 = vpack.c.b16 %v2099, %v2099
  %v2269 = vpack.c.b16 %v2100, %v2100
  %v2270 = vpack.c.b16 %v2101, %v2101
  %v2271 = vpack.c.b16 %v2102, %v2102
  %v2272 = vpack.c.b16 %v2103, %v2103
  %v2273 = vpack.c.b16 %v2104, %v2104
  %v2274 = vpack.c.b16 %v2105, %v2105
  %v2275 = vpack.c.b16 %v2106, %v2106
  %v2276 = vpack.c.b16 %v2107, %v2107
  %v2277 = vpack.c.b16 %v2108, %v2108
  %v2278 = vpack.c.b16 %v2109, %v2109
  %v2279 = vpack.c.b16 %v2110, %v2110
  %v2280 = vpack.c.b16 %v2111, %v2111
  %vm2450 = vcmask 125952
  %2451 = vst.msk [vmem:[%s3] sm:$0xf] %vm2450, %v2112
  %2452 = vst.msk [vmem:[%s3 + $0x4] sm:$0xf] %vm2450, %v2113
  %2453 = vst.msk [vmem:[%s3 + $0x8] sm:$0xf] %vm2450, %v2114
  %2454 = vst.msk [vmem:[%s3 + $0xc] sm:$0xf] %vm2450, %v2115
  %2455 = vst.msk [vmem:[%s3 + $0x10] sm:$0xf] %vm2450, %v2116
  %2456 = vst.msk [vmem:[%s3 + $0x14] sm:$0xf] %vm2450, %v2117
  %2457 = vst.msk [vmem:[%s3 + $0x18] sm:$0xf] %vm2450, %v2118
  %2458 = vst.msk [vmem:[%s3 + $0x1c] sm:$0xf] %vm2450, %v2119
  %2459 = vst.msk [vmem:[%s3 + $0x20] sm:$0xf] %vm2450, %v2120
  %2460 = vst.msk [vmem:[%s3 + $0x24] sm:$0xf] %vm2450, %v2121
  %2461 = vst.msk [vmem:[%s3 + $0x28] sm:$0xf] %vm2450, %v2122
  %2462 = vst.msk [vmem:[%s3 + $0x2c] sm:$0xf] %vm2450, %v2123
  %2463 = vst.msk [vmem:[%s3 + $0x30] sm:$0xf] %vm2450, %v2124
  %2464 = vst.msk [vmem:[%s3 + $0x34] sm:$0xf] %vm2450, %v2125
  %2465 = vst.msk [vmem:[%s3 + $0x38] sm:$0xf] %vm2450, %v2126
  %2466 = vst.msk [vmem:[%s3 + $0x3c] sm:$0xf] %vm2450, %v2127
  %2467 = vst.msk [vmem:[%s3 + $0x40] sm:$0xf] %vm2450, %v2128
  %2468 = vst.msk [vmem:[%s3 + $0x44] sm:$0xf] %vm2450, %v2129
  %2469 = vst.msk [vmem:[%s3 + $0x48] sm:$0xf] %vm2450, %v2130
  %2470 = vst.msk [vmem:[%s3 + $0x4c] sm:$0xf] %vm2450, %v2131
  %2471 = vst.msk [vmem:[%s3 + $0x50] sm:$0xf] %vm2450, %v2132
  %2472 = vst.msk [vmem:[%s3 + $0x54] sm:$0xf] %vm2450, %v2133
  %2473 = vst.msk [vmem:[%s3 + $0x58] sm:$0xf] %vm2450, %v2134
  %2474 = vst.msk [vmem:[%s3 + $0x5c] sm:$0xf] %vm2450, %v2135
  %2475 = vst.msk [vmem:[%s3 + $0x60] sm:$0xf] %vm2450, %v2136
  %2476 = vst.msk [vmem:[%s3 + $0x64] sm:$0xf] %vm2450, %v2137
  %2477 = vst.msk [vmem:[%s3 + $0x68] sm:$0xf] %vm2450, %v2138
  %2478 = vst.msk [vmem:[%s3 + $0x6c] sm:$0xf] %vm2450, %v2139
  %2479 = vst.msk [vmem:[%s3 + $0x70] sm:$0xf] %vm2450, %v2140
  %2480 = vst.msk [vmem:[%s3 + $0x74] sm:$0xf] %vm2450, %v2141
  %2481 = vst.msk [vmem:[%s3 + $0x78] sm:$0xf] %vm2450, %v2142
  %2482 = vst.msk [vmem:[%s3 + $0x7c] sm:$0xf] %vm2450, %v2143
  %2483 = vst.msk [vmem:[%s3 + $0x80] sm:$0xf] %vm2450, %v2144
  %2484 = vst.msk [vmem:[%s3 + $0x84] sm:$0xf] %vm2450, %v2145
  %2485 = vst.msk [vmem:[%s3 + $0x88] sm:$0xf] %vm2450, %v2146
  %2486 = vst.msk [vmem:[%s3 + $0x8c] sm:$0xf] %vm2450, %v2147
  %2487 = vst.msk [vmem:[%s3 + $0x90] sm:$0xf] %vm2450, %v2148
  %2488 = vst.msk [vmem:[%s3 + $0x94] sm:$0xf] %vm2450, %v2149
  %2489 = vst.msk [vmem:[%s3 + $0x98] sm:$0xf] %vm2450, %v2150
  %2490 = vst.msk [vmem:[%s3 + $0x9c] sm:$0xf] %vm2450, %v2151
  %2491 = vst.msk [vmem:[%s3 + $0xa0] sm:$0xf] %vm2450, %v2152
  %2492 = vst.msk [vmem:[%s3 + $0xa4] sm:$0xf] %vm2450, %v2153
  %2493 = vst.msk [vmem:[%s3 + $0xa8] sm:$0xf] %vm2450, %v2154
  %2494 = vst.msk [vmem:[%s3 + $0xac] sm:$0xf] %vm2450, %v2155
  %2495 = vst.msk [vmem:[%s3 + $0xb0] sm:$0xf] %vm2450, %v2156
  %2496 = vst.msk [vmem:[%s3 + $0xb4] sm:$0xf] %vm2450, %v2157
  %2497 = vst.msk [vmem:[%s3 + $0xb8] sm:$0xf] %vm2450, %v2158
  %2498 = vst.msk [vmem:[%s3 + $0xbc] sm:$0xf] %vm2450, %v2159
  %2499 = vst.msk [vmem:[%s3 + $0xc0] sm:$0xf] %vm2450, %v2160
  %2500 = vst.msk [vmem:[%s3 + $0xc4] sm:$0xf] %vm2450, %v2161
  %2501 = vst.msk [vmem:[%s3 + $0xc8] sm:$0xf] %vm2450, %v2162
  %2502 = vst.msk [vmem:[%s3 + $0xcc] sm:$0xf] %vm2450, %v2163
  %2503 = vst.msk [vmem:[%s3 + $0xd0] sm:$0xf] %vm2450, %v2164
  %2504 = vst.msk [vmem:[%s3 + $0xd4] sm:$0xf] %vm2450, %v2165
  %2505 = vst.msk [vmem:[%s3 + $0xd8] sm:$0xf] %vm2450, %v2166
  %2506 = vst.msk [vmem:[%s3 + $0xdc] sm:$0xf] %vm2450, %v2167
  %2507 = vst.msk [vmem:[%s3 + $0xe0] sm:$0xf] %vm2450, %v2168
  %2508 = vst.msk [vmem:[%s3 + $0xe4] sm:$0xf] %vm2450, %v2169
  %2509 = vst.msk [vmem:[%s3 + $0xe8] sm:$0xf] %vm2450, %v2170
  %2510 = vst.msk [vmem:[%s3 + $0xec] sm:$0xf] %vm2450, %v2171
  %2511 = vst.msk [vmem:[%s3 + $0xf0] sm:$0xf] %vm2450, %v2172
  %2512 = vst.msk [vmem:[%s3 + $0xf4] sm:$0xf] %vm2450, %v2173
  %2513 = vst.msk [vmem:[%s3 + $0xf8] sm:$0xf] %vm2450, %v2174
  %2514 = vst.msk [vmem:[%s3 + $0xfc] sm:$0xf] %vm2450, %v2175
  %2515 = vst.msk [vmem:[%s3 + $0x100] sm:$0xf] %vm2450, %v2176
  %2516 = vst.msk [vmem:[%s3 + $0x104] sm:$0xf] %vm2450, %v2177
  %2517 = vst.msk [vmem:[%s3 + $0x108] sm:$0xf] %vm2450, %v2178
  %2518 = vst.msk [vmem:[%s3 + $0x10c] sm:$0xf] %vm2450, %v2179
  %2519 = vst.msk [vmem:[%s3 + $0x110] sm:$0xf] %vm2450, %v2180
  %2520 = vst.msk [vmem:[%s3 + $0x114] sm:$0xf] %vm2450, %v2181
  %2521 = vst.msk [vmem:[%s3 + $0x118] sm:$0xf] %vm2450, %v2182
  %2522 = vst.msk [vmem:[%s3 + $0x11c] sm:$0xf] %vm2450, %v2183
  %2523 = vst.msk [vmem:[%s3 + $0x120] sm:$0xf] %vm2450, %v2184
  %2524 = vst.msk [vmem:[%s3 + $0x124] sm:$0xf] %vm2450, %v2185
  %2525 = vst.msk [vmem:[%s3 + $0x128] sm:$0xf] %vm2450, %v2186
  %2526 = vst.msk [vmem:[%s3 + $0x12c] sm:$0xf] %vm2450, %v2187
  %2527 = vst.msk [vmem:[%s3 + $0x130] sm:$0xf] %vm2450, %v2188
  %2528 = vst.msk [vmem:[%s3 + $0x134] sm:$0xf] %vm2450, %v2189
  %2529 = vst.msk [vmem:[%s3 + $0x138] sm:$0xf] %vm2450, %v2190
  %2530 = vst.msk [vmem:[%s3 + $0x13c] sm:$0xf] %vm2450, %v2191
  %2531 = vst.msk [vmem:[%s3 + $0x140] sm:$0xf] %vm2450, %v2192
  %2532 = vst.msk [vmem:[%s3 + $0x144] sm:$0xf] %vm2450, %v2193
  %2533 = vst.msk [vmem:[%s3 + $0x148] sm:$0xf] %vm2450, %v2194
  %2534 = vst.msk [vmem:[%s3 + $0x14c] sm:$0xf] %vm2450, %v2195
  %2535 = vst.msk [vmem:[%s3 + $0x150] sm:$0xf] %vm2450, %v2196
  %2536 = vst.msk [vmem:[%s3 + $0x154] sm:$0xf] %vm2450, %v2197
  %2537 = vst.msk [vmem:[%s3 + $0x158] sm:$0xf] %vm2450, %v2198
  %2538 = vst.msk [vmem:[%s3 + $0x15c] sm:$0xf] %vm2450, %v2199
  %2539 = vst.msk [vmem:[%s3 + $0x160] sm:$0xf] %vm2450, %v2200
  %2540 = vst.msk [vmem:[%s3 + $0x164] sm:$0xf] %vm2450, %v2201
  %2541 = vst.msk [vmem:[%s3 + $0x168] sm:$0xf] %vm2450, %v2202
  %2542 = vst.msk [vmem:[%s3 + $0x16c] sm:$0xf] %vm2450, %v2203
  %2543 = vst.msk [vmem:[%s3 + $0x170] sm:$0xf] %vm2450, %v2204
  %2544 = vst.msk [vmem:[%s3 + $0x174] sm:$0xf] %vm2450, %v2205
  %2545 = vst.msk [vmem:[%s3 + $0x178] sm:$0xf] %vm2450, %v2206
  %2546 = vst.msk [vmem:[%s3 + $0x17c] sm:$0xf] %vm2450, %v2207
  %2547 = vst.msk [vmem:[%s3 + $0x180] sm:$0xf] %vm2450, %v2208
  %2548 = vst.msk [vmem:[%s3 + $0x184] sm:$0xf] %vm2450, %v2209
  %2549 = vst.msk [vmem:[%s3 + $0x188] sm:$0xf] %vm2450, %v2210
  %2550 = vst.msk [vmem:[%s3 + $0x18c] sm:$0xf] %vm2450, %v2211
  %2551 = vst.msk [vmem:[%s3 + $0x190] sm:$0xf] %vm2450, %v2212
  %2552 = vst.msk [vmem:[%s3 + $0x194] sm:$0xf] %vm2450, %v2213
  %2553 = vst.msk [vmem:[%s3 + $0x198] sm:$0xf] %vm2450, %v2214
  %2554 = vst.msk [vmem:[%s3 + $0x19c] sm:$0xf] %vm2450, %v2215
  %2555 = vst.msk [vmem:[%s3 + $0x1a0] sm:$0xf] %vm2450, %v2216
  %2556 = vst.msk [vmem:[%s3 + $0x1a4] sm:$0xf] %vm2450, %v2217
  %2557 = vst.msk [vmem:[%s3 + $0x1a8] sm:$0xf] %vm2450, %v2218
  %2558 = vst.msk [vmem:[%s3 + $0x1ac] sm:$0xf] %vm2450, %v2219
  %2559 = vst.msk [vmem:[%s3 + $0x1b0] sm:$0xf] %vm2450, %v2220
  %2560 = vst.msk [vmem:[%s3 + $0x1b4] sm:$0xf] %vm2450, %v2221
  %2561 = vst.msk [vmem:[%s3 + $0x1b8] sm:$0xf] %vm2450, %v2222
  %2562 = vst.msk [vmem:[%s3 + $0x1bc] sm:$0xf] %vm2450, %v2223
  %2563 = vst.msk [vmem:[%s3 + $0x1c0] sm:$0xf] %vm2450, %v2224
  %2564 = vst.msk [vmem:[%s3 + $0x1c4] sm:$0xf] %vm2450, %v2225
  %2565 = vst.msk [vmem:[%s3 + $0x1c8] sm:$0xf] %vm2450, %v2226
  %2566 = vst.msk [vmem:[%s3 + $0x1cc] sm:$0xf] %vm2450, %v2227
  %2567 = vst.msk [vmem:[%s3 + $0x1d0] sm:$0xf] %vm2450, %v2228
  %2568 = vst.msk [vmem:[%s3 + $0x1d4] sm:$0xf] %vm2450, %v2229
  %2569 = vst.msk [vmem:[%s3 + $0x1d8] sm:$0xf] %vm2450, %v2230
  %2570 = vst.msk [vmem:[%s3 + $0x1dc] sm:$0xf] %vm2450, %v2231
  %2571 = vst.msk [vmem:[%s3 + $0x1e0] sm:$0xf] %vm2450, %v2232
  %2572 = vst.msk [vmem:[%s3 + $0x1e4] sm:$0xf] %vm2450, %v2233
  %2573 = vst.msk [vmem:[%s3 + $0x1e8] sm:$0xf] %vm2450, %v2234
  %2574 = vst.msk [vmem:[%s3 + $0x1ec] sm:$0xf] %vm2450, %v2235
  %2575 = vst.msk [vmem:[%s3 + $0x1f0] sm:$0xf] %vm2450, %v2236
  %2576 = vst.msk [vmem:[%s3 + $0x1f4] sm:$0xf] %vm2450, %v2237
  %2577 = vst.msk [vmem:[%s3 + $0x1f8] sm:$0xf] %vm2450, %v2238
  %2578 = vst.msk [vmem:[%s3 + $0x1fc] sm:$0xf] %vm2450, %v2239
  %2579 = vst.msk [vmem:[%s3 + $0x200] sm:$0xf] %vm2450, %v2240
  %2580 = vst.msk [vmem:[%s3 + $0x204] sm:$0xf] %vm2450, %v2241
  %2581 = vst.msk [vmem:[%s3 + $0x208] sm:$0xf] %vm2450, %v2242
  %2582 = vst.msk [vmem:[%s3 + $0x20c] sm:$0xf] %vm2450, %v2243
  %2583 = vst.msk [vmem:[%s3 + $0x210] sm:$0xf] %vm2450, %v2244
  %2584 = vst.msk [vmem:[%s3 + $0x214] sm:$0xf] %vm2450, %v2245
  %2585 = vst.msk [vmem:[%s3 + $0x218] sm:$0xf] %vm2450, %v2246
  %2586 = vst.msk [vmem:[%s3 + $0x21c] sm:$0xf] %vm2450, %v2247
  %2587 = vst.msk [vmem:[%s3 + $0x220] sm:$0xf] %vm2450, %v2248
  %2588 = vst.msk [vmem:[%s3 + $0x224] sm:$0xf] %vm2450, %v2249
  %2589 = vst.msk [vmem:[%s3 + $0x228] sm:$0xf] %vm2450, %v2250
  %2590 = vst.msk [vmem:[%s3 + $0x22c] sm:$0xf] %vm2450, %v2251
  %2591 = vst.msk [vmem:[%s3 + $0x230] sm:$0xf] %vm2450, %v2252
  %2592 = vst.msk [vmem:[%s3 + $0x234] sm:$0xf] %vm2450, %v2253
  %2593 = vst.msk [vmem:[%s3 + $0x238] sm:$0xf] %vm2450, %v2254
  %2594 = vst.msk [vmem:[%s3 + $0x23c] sm:$0xf] %vm2450, %v2255
  %2595 = vst.msk [vmem:[%s3 + $0x240] sm:$0xf] %vm2450, %v2256
  %2596 = vst.msk [vmem:[%s3 + $0x244] sm:$0xf] %vm2450, %v2257
  %2597 = vst.msk [vmem:[%s3 + $0x248] sm:$0xf] %vm2450, %v2258
  %2598 = vst.msk [vmem:[%s3 + $0x24c] sm:$0xf] %vm2450, %v2259
  %2599 = vst.msk [vmem:[%s3 + $0x250] sm:$0xf] %vm2450, %v2260
  %2600 = vst.msk [vmem:[%s3 + $0x254] sm:$0xf] %vm2450, %v2261
  %2601 = vst.msk [vmem:[%s3 + $0x258] sm:$0xf] %vm2450, %v2262
  %2602 = vst.msk [vmem:[%s3 + $0x25c] sm:$0xf] %vm2450, %v2263
  %2603 = vst.msk [vmem:[%s3 + $0x260] sm:$0xf] %vm2450, %v2264
  %2604 = vst.msk [vmem:[%s3 + $0x264] sm:$0xf] %vm2450, %v2265
  %2605 = vst.msk [vmem:[%s3 + $0x268] sm:$0xf] %vm2450, %v2266
  %2606 = vst.msk [vmem:[%s3 + $0x26c] sm:$0xf] %vm2450, %v2267
  %2607 = vst.msk [vmem:[%s3 + $0x270] sm:$0xf] %vm2450, %v2268
  %2608 = vst.msk [vmem:[%s3 + $0x274] sm:$0xf] %vm2450, %v2269
  %2609 = vst.msk [vmem:[%s3 + $0x278] sm:$0xf] %vm2450, %v2270
  %2610 = vst.msk [vmem:[%s3 + $0x27c] sm:$0xf] %vm2450, %v2271
  %2611 = vst.msk [vmem:[%s3 + $0x280] sm:$0xf] %vm2450, %v2272
  %2612 = vst.msk [vmem:[%s3 + $0x284] sm:$0xf] %vm2450, %v2273
  %2613 = vst.msk [vmem:[%s3 + $0x288] sm:$0xf] %vm2450, %v2274
  %2614 = vst.msk [vmem:[%s3 + $0x28c] sm:$0xf] %vm2450, %v2275
  %2615 = vst.msk [vmem:[%s3 + $0x290] sm:$0xf] %vm2450, %v2276
  %2616 = vst.msk [vmem:[%s3 + $0x294] sm:$0xf] %vm2450, %v2277
  %2617 = vst.msk [vmem:[%s3 + $0x298] sm:$0xf] %vm2450, %v2278
  %2618 = vst.msk [vmem:[%s3 + $0x29c] sm:$0xf] %vm2450, %v2279
  %2619 = vst.msk [vmem:[%s3 + $0x2a0] sm:$0xf] %vm2450, %v2280
  // Predicated region
  $region14: #{regression_net_forward.3} parent=0 // pred_check
    _
  $region15: #{regression_net_forward.3} parent=0 // pred_check_branch
    %2621 = sbr.rel (0) target = $region17
  $region16: #{regression_net_forward.3} parent=0 // pred_region
    _
  $region17: #{regression_net_forward.3} parent=0 // pred_fallthru
    _
  // Predicated region
  $region18: #{regression_net_forward.3} parent=0 // pred_check
    _
  $region19: #{regression_net_forward.3} parent=0 // pred_check_branch
    %2623 = sbr.rel (0) target = $region21
  $region20: #{regression_net_forward.3} parent=0 // pred_region
    _
  $region21: #{regression_net_forward.3} parent=0 // pred_fallthru
    _

// kernel: regression_net_forward.4
$region0: #{regression_net_forward.4}
  #allocation0 [shape = 'u32[]', space=smem, size = 0x4, offset = 0x4, fixed_abs, tag = 'smem constant byte address 0x4 - core index']
  #allocation1 [shape = 'u32[144,128]{1,0:T(1,128)}', space=vmem, size = 0x12000, scoped, tag = 'internal scratch']
  %s0 = inlined_call_operand.vmem [shape: bf16[248,144], index: 0, kind: input, shape index: {}]
  %s1 = inlined_call_operand.vmem [shape: bf16[144,32], index: 1, kind: input, shape index: {}]
  %s2 = inlined_call_operand.vmem [shape: f32[1,32], index: 2, kind: input, shape index: {}]
  %s3 = inlined_call_operand.vmem [shape: bf16[248,32], index: 3, kind: output, shape index: {}]
  %s4 = sld [smem:[#allocation0]]
  $region22: #{regression_net_forward.4} parent=0
    _
  %s6 = ssub.s32 1, %s4
  %s7 = scalar_select 0, %s6, %s4
  // Predicated region
  $region2: #{regression_net_forward.4} parent=0 // pred_check
    _
  $region3: #{regression_net_forward.4} parent=0 // pred_check_branch
    %9 = sbr.rel (0) target = $region5
  $region4: #{regression_net_forward.4} parent=0 // pred_region
    _
  $region5: #{regression_net_forward.4} parent=0 // pred_fallthru
    _
  // Predicated region
  $region6: #{regression_net_forward.4} parent=0 // pred_check
    _
  $region7: #{regression_net_forward.4} parent=0 // pred_check_branch
    %11 = sbr.rel (0) target = $region9
  $region8: #{regression_net_forward.4} parent=0 // pred_region
    _
  $region9: #{regression_net_forward.4} parent=0 // pred_fallthru
    _
  // Predicated region
  $region10: #{regression_net_forward.4} parent=0 // pred_check
    _
  $region11: #{regression_net_forward.4} parent=0 // pred_check_branch
    %13 = sbr.rel (0) target = $region13
  $region12: #{regression_net_forward.4} parent=0 // pred_region
    _
  $region13: #{regression_net_forward.4} parent=0 // pred_fallthru
    _
  %v15 = vld [vmem:[%s0] sm:$0xff]
  %v16 = vld [vmem:[%s0 + $0x8] sm:$0xff]
  %v17 = vld [vmem:[%s0 + $0x10] sm:$0xff]
  %v18 = vld [vmem:[%s0 + $0x18] sm:$0xff]
  %v19 = vld [vmem:[%s0 + $0x20] sm:$0xff]
  %v20 = vld [vmem:[%s0 + $0x28] sm:$0xff]
  %v21 = vld [vmem:[%s0 + $0x30] sm:$0xff]
  %v22 = vld [vmem:[%s0 + $0x38] sm:$0xff]
  %v23 = vld [vmem:[%s0 + $0x40] sm:$0xff]
  %v24 = vld [vmem:[%s0 + $0x48] sm:$0xff]
  %v25 = vld [vmem:[%s0 + $0x50] sm:$0xff]
  %v26 = vld [vmem:[%s0 + $0x58] sm:$0xff]
  %v27 = vld [vmem:[%s0 + $0x60] sm:$0xff]
  %v28 = vld [vmem:[%s0 + $0x68] sm:$0xff]
  %v29 = vld [vmem:[%s0 + $0x70] sm:$0xff]
  %v30 = vld [vmem:[%s0 + $0x78] sm:$0xff]
  %v31 = vld [vmem:[%s0 + $0x80] sm:$0xff]
  %v32 = vld [vmem:[%s0 + $0x88] sm:$0xff]
  %v33 = vld [vmem:[%s0 + $0x90] sm:$0xff]
  %v34 = vld [vmem:[%s0 + $0x98] sm:$0xff]
  %v35 = vld [vmem:[%s0 + $0xa0] sm:$0xff]
  %v36 = vld [vmem:[%s0 + $0xa8] sm:$0xff]
  %v37 = vld [vmem:[%s0 + $0xb0] sm:$0xff]
  %v38 = vld [vmem:[%s0 + $0xb8] sm:$0xff]
  %v39 = vld [vmem:[%s0 + $0xc0] sm:$0xff]
  %v40 = vld [vmem:[%s0 + $0xc8] sm:$0xff]
  %v41 = vld [vmem:[%s0 + $0xd0] sm:$0xff]
  %v42 = vld [vmem:[%s0 + $0xd8] sm:$0xff]
  %v43 = vld [vmem:[%s0 + $0xe0] sm:$0xff]
  %v44 = vld [vmem:[%s0 + $0xe8] sm:$0xff]
  %v45 = vld [vmem:[%s0 + $0xf0] sm:$0xff]
  %v46 = vld [vmem:[%s1] sm:$0xf]
  %v47 = vld [vmem:[%s1 + $0x4] sm:$0xf]
  %v48 = vld [vmem:[%s1 + $0x8] sm:$0xf]
  %v49 = vld [vmem:[%s1 + $0xc] sm:$0xf]
  %v50 = vld [vmem:[%s1 + $0x10] sm:$0xf]
  %v51 = vld [vmem:[%s1 + $0x14] sm:$0xf]
  %v52 = vld [vmem:[%s1 + $0x18] sm:$0xf]
  %v53 = vld [vmem:[%s1 + $0x1c] sm:$0xf]
  %v54 = vld [vmem:[%s1 + $0x20] sm:$0xf]
  %v55 = vld [vmem:[%s1 + $0x24] sm:$0xf]
  %v56 = vld [vmem:[%s1 + $0x28] sm:$0xf]
  %v57 = vld [vmem:[%s1 + $0x2c] sm:$0xf]
  %v58 = vld [vmem:[%s1 + $0x30] sm:$0xf]
  %v59 = vld [vmem:[%s1 + $0x34] sm:$0xf]
  %v60 = vld [vmem:[%s1 + $0x38] sm:$0xf]
  %v61 = vld [vmem:[%s1 + $0x3c] sm:$0xf]
  %v62 = vld [vmem:[%s1 + $0x40] sm:$0xf]
  %v63 = vld [vmem:[%s1 + $0x44] sm:$0xf]
  %v64 = vld [vmem:[%s2] sm:$0x1]
  %v66 = vlaneseq
  %v67 = vshrl.u32 %v66, 7
  %v68 = vsub.s32 0, %v67
  %v69 = vrot.slane %v64, %v68
  %v102 = vunpack.c.l.b16 %v15
  %v103 = vunpack.c.h.b16 %v15
  %v104 = vunpack.c.l.b16 %v16
  %v105 = vunpack.c.h.b16 %v16
  %v106 = vunpack.c.l.b16 %v17
  %v107 = vunpack.c.h.b16 %v17
  %v108 = vunpack.c.l.b16 %v18
  %v109 = vunpack.c.h.b16 %v18
  %v110 = vunpack.c.l.b16 %v19
  %v111 = vunpack.c.h.b16 %v19
  %v112 = vunpack.c.l.b16 %v20
  %v113 = vunpack.c.h.b16 %v20
  %v114 = vunpack.c.l.b16 %v21
  %v115 = vunpack.c.h.b16 %v21
  %v116 = vunpack.c.l.b16 %v22
  %v117 = vunpack.c.h.b16 %v22
  %v118 = vunpack.c.l.b16 %v23
  %v119 = vunpack.c.h.b16 %v23
  %v120 = vunpack.c.l.b16 %v24
  %v121 = vunpack.c.h.b16 %v24
  %v122 = vunpack.c.l.b16 %v25
  %v123 = vunpack.c.h.b16 %v25
  %v124 = vunpack.c.l.b16 %v26
  %v125 = vunpack.c.h.b16 %v26
  %v126 = vunpack.c.l.b16 %v27
  %v127 = vunpack.c.h.b16 %v27
  %v128 = vunpack.c.l.b16 %v28
  %v129 = vunpack.c.h.b16 %v28
  %v130 = vunpack.c.l.b16 %v29
  %v131 = vunpack.c.h.b16 %v29
  %v132 = vunpack.c.l.b16 %v30
  %v133 = vunpack.c.h.b16 %v30
  %v134 = vunpack.c.l.b16 %v31
  %v135 = vunpack.c.h.b16 %v31
  %v136 = vunpack.c.l.b16 %v32
  %v137 = vunpack.c.h.b16 %v32
  %v138 = vunpack.c.l.b16 %v33
  %v139 = vunpack.c.h.b16 %v33
  %v140 = vunpack.c.l.b16 %v34
  %v141 = vunpack.c.h.b16 %v34
  %v142 = vunpack.c.l.b16 %v35
  %v143 = vunpack.c.h.b16 %v35
  %v144 = vunpack.c.l.b16 %v36
  %v145 = vunpack.c.h.b16 %v36
  %v146 = vunpack.c.l.b16 %v37
  %v147 = vunpack.c.h.b16 %v37
  %v148 = vunpack.c.l.b16 %v38
  %v149 = vunpack.c.h.b16 %v38
  %v150 = vunpack.c.l.b16 %v39
  %v151 = vunpack.c.h.b16 %v39
  %v152 = vunpack.c.l.b16 %v40
  %v153 = vunpack.c.h.b16 %v40
  %v154 = vunpack.c.l.b16 %v41
  %v155 = vunpack.c.h.b16 %v41
  %v156 = vunpack.c.l.b16 %v42
  %v157 = vunpack.c.h.b16 %v42
  %v158 = vunpack.c.l.b16 %v43
  %v159 = vunpack.c.h.b16 %v43
  %v160 = vunpack.c.l.b16 %v44
  %v161 = vunpack.c.h.b16 %v44
  %v162 = vunpack.c.l.b16 %v45
  %v163 = vunpack.c.h.b16 %v45
  %v164 = vpack.c.b16 %v104, %v102
  %v165 = vpack.c.b16 %v105, %v103
  %v166 = vpack.c.b16 %v108, %v106
  %v167 = vpack.c.b16 %v109, %v107
  %v168 = vpack.c.b16 %v112, %v110
  %v169 = vpack.c.b16 %v113, %v111
  %v170 = vpack.c.b16 %v116, %v114
  %v171 = vpack.c.b16 %v117, %v115
  %v172 = vpack.c.b16 %v120, %v118
  %v173 = vpack.c.b16 %v121, %v119
  %v174 = vpack.c.b16 %v124, %v122
  %v175 = vpack.c.b16 %v125, %v123
  %v176 = vpack.c.b16 %v128, %v126
  %v177 = vpack.c.b16 %v129, %v127
  %v178 = vpack.c.b16 %v132, %v130
  %v179 = vpack.c.b16 %v133, %v131
  %v180 = vpack.c.b16 %v136, %v134
  %v181 = vpack.c.b16 %v137, %v135
  %v182 = vpack.c.b16 %v140, %v138
  %v183 = vpack.c.b16 %v141, %v139
  %v184 = vpack.c.b16 %v144, %v142
  %v185 = vpack.c.b16 %v145, %v143
  %v186 = vpack.c.b16 %v148, %v146
  %v187 = vpack.c.b16 %v149, %v147
  %v188 = vpack.c.b16 %v152, %v150
  %v189 = vpack.c.b16 %v153, %v151
  %v190 = vpack.c.b16 %v156, %v154
  %v191 = vpack.c.b16 %v157, %v155
  %v192 = vpack.c.b16 %v160, %v158
  %v193 = vpack.c.b16 %v161, %v159
  %v194 = vpack.c.b16 %v162, %v162
  %v195 = vpack.c.b16 %v163, %v163
  %v230 = vunpack.c.l.b16 %v46
  %v231 = vunpack.c.l.b16 %v47
  %v232 = vunpack.c.l.b16 %v48
  %v233 = vunpack.c.l.b16 %v49
  %v234 = vunpack.c.l.b16 %v50
  %v235 = vunpack.c.l.b16 %v51
  %v236 = vunpack.c.l.b16 %v52
  %v237 = vunpack.c.l.b16 %v53
  %v238 = vunpack.c.l.b16 %v54
  %v239 = vunpack.c.l.b16 %v55
  %v240 = vunpack.c.l.b16 %v56
  %v241 = vunpack.c.l.b16 %v57
  %v242 = vunpack.c.l.b16 %v58
  %v243 = vunpack.c.l.b16 %v59
  %v244 = vunpack.c.l.b16 %v60
  %v245 = vunpack.c.l.b16 %v61
  %v246 = vunpack.c.l.b16 %v62
  %v247 = vunpack.c.l.b16 %v63
  %v248 = vpack.c.b16 %v231, %v230
  %v249 = vpack.c.b16 %v233, %v232
  %v250 = vpack.c.b16 %v235, %v234
  %v251 = vpack.c.b16 %v237, %v236
  %v252 = vpack.c.b16 %v239, %v238
  %v253 = vpack.c.b16 %v241, %v240
  %v254 = vpack.c.b16 %v243, %v242
  %v255 = vpack.c.b16 %v245, %v244
  %v256 = vpack.c.b16 %v247, %v246
  %vm266 = vcmask 130048
  %v268 = vsel %vm266, %v165, 0
  %v271 = vsel %vm266, %v167, 0
  %v274 = vsel %vm266, %v169, 0
  %v277 = vsel %vm266, %v171, 0
  %v280 = vsel %vm266, %v173, 0
  %v283 = vsel %vm266, %v175, 0
  %v286 = vsel %vm266, %v177, 0
  %v289 = vsel %vm266, %v179, 0
  %v292 = vsel %vm266, %v181, 0
  %v295 = vsel %vm266, %v183, 0
  %v298 = vsel %vm266, %v185, 0
  %v301 = vsel %vm266, %v187, 0
  %v304 = vsel %vm266, %v189, 0
  %v307 = vsel %vm266, %v191, 0
  %v310 = vsel %vm266, %v193, 0
  %v313 = vsel %vm266, %v195, 0
  %315 = vmatprep.subr.bf16.mxu0 0
  %316 = vmatpush1.bf16.msra.mxu0 %v248
  %317 = vmatprep.subr.bf16.mxu0 0
  %318 = vmatpush1.bf16.msra.mxu0 %v249
  %319 = vmatprep.subr.bf16.mxu0 0
  %320 = vmatpush1.bf16.msra.mxu0 %v250
  %321 = vmatprep.subr.bf16.mxu0 0
  %322 = vmatpush1.bf16.msra.mxu0 %v251
  %323 = vmatprep.subr.bf16.mxu0 0
  %324 = vmatpush1.bf16.msra.mxu0 %v252
  %325 = vmatprep.subr.bf16.mxu0 0
  %326 = vmatpush1.bf16.msra.mxu0 %v253
  %327 = vmatprep.subr.bf16.mxu0 0
  %328 = vmatpush1.bf16.msra.mxu0 %v254
  %329 = vmatprep.subr.bf16.mxu0 0
  %330 = vmatpush1.bf16.msra.mxu0 %v255
  %331 = vmatprep.subr.bf16.mxu0 0
  %332 = vmatpush1.bf16.msra.mxu0 %v256
  %333 = vmatprep.subr.bf16.mxu0 0
  %334 = vmatpush1.bf16.msra.mxu0 0
  %335 = vmatprep.subr.bf16.mxu0 0
  %336 = vmatpush1.bf16.msra.mxu0 0
  %337 = vmatprep.subr.bf16.mxu0 0
  %338 = vmatpush1.bf16.msra.mxu0 0
  %339 = vmatprep.subr.bf16.mxu0 0
  %340 = vmatpush1.bf16.msra.mxu0 0
  %341 = vmatprep.subr.bf16.mxu0 0
  %342 = vmatpush1.bf16.msra.mxu0 0
  %343 = vmatprep.subr.bf16.mxu0 0
  %344 = vmatpush1.bf16.msra.mxu0 0
  %345 = vmatprep.subr.bf16.mxu0 0
  %346 = vmatpush1.bf16.msra.mxu0 0
  %347 = vmatprep.mubr.bf16.mxu0 %v268
  %348 = vmatmul.mubr.bf16.gmra.mrb[0].mxu0 %v164
  %v349 = vpop.f32.mrb[0].mxu0
  %v350 = vadd.f32 %v69, %v349
  %v351 = vpop.f32.mrb[0].mxu0
  %v352 = vpop.f32.mrb[0].mxu0
  %v353 = vadd.f32 %v69, %v352
  %v354 = vpop.f32.mrb[0].mxu0
  %355 = vmatprep.mubr.bf16.mxu0 %v271
  %356 = vmatmul.mubr.bf16.gmra.mrb[0].mxu0 %v166
  %v357 = vpop.f32.mrb[0].mxu0
  %v358 = vadd.f32 %v69, %v357
  %v359 = vpop.f32.mrb[0].mxu0
  %v360 = vpop.f32.mrb[0].mxu0
  %v361 = vadd.f32 %v69, %v360
  %v362 = vpop.f32.mrb[0].mxu0
  %363 = vmatprep.mubr.bf16.mxu0 %v274
  %364 = vmatmul.mubr.bf16.gmra.mrb[0].mxu0 %v168
  %v365 = vpop.f32.mrb[0].mxu0
  %v366 = vadd.f32 %v69, %v365
  %v367 = vpop.f32.mrb[0].mxu0
  %v368 = vpop.f32.mrb[0].mxu0
  %v369 = vadd.f32 %v69, %v368
  %v370 = vpop.f32.mrb[0].mxu0
  %371 = vmatprep.mubr.bf16.mxu0 %v277
  %372 = vmatmul.mubr.bf16.gmra.mrb[0].mxu0 %v170
  %v373 = vpop.f32.mrb[0].mxu0
  %v374 = vadd.f32 %v69, %v373
  %v375 = vpop.f32.mrb[0].mxu0
  %v376 = vpop.f32.mrb[0].mxu0
  %v377 = vadd.f32 %v69, %v376
  %v378 = vpop.f32.mrb[0].mxu0
  %379 = vmatprep.mubr.bf16.mxu0 %v280
  %380 = vmatmul.mubr.bf16.gmra.mrb[0].mxu0 %v172
  %v381 = vpop.f32.mrb[0].mxu0
  %v382 = vadd.f32 %v69, %v381
  %v383 = vpop.f32.mrb[0].mxu0
  %v384 = vpop.f32.mrb[0].mxu0
  %v385 = vadd.f32 %v69, %v384
  %v386 = vpop.f32.mrb[0].mxu0
  %387 = vmatprep.mubr.bf16.mxu0 %v283
  %388 = vmatmul.mubr.bf16.gmra.mrb[0].mxu0 %v174
  %v389 = vpop.f32.mrb[0].mxu0
  %v390 = vadd.f32 %v69, %v389
  %v391 = vpop.f32.mrb[0].mxu0
  %v392 = vpop.f32.mrb[0].mxu0
  %v393 = vadd.f32 %v69, %v392
  %v394 = vpop.f32.mrb[0].mxu0
  %395 = vmatprep.mubr.bf16.mxu0 %v286
  %396 = vmatmul.mubr.bf16.gmra.mrb[0].mxu0 %v176
  %v397 = vpop.f32.mrb[0].mxu0
  %v398 = vadd.f32 %v69, %v397
  %v399 = vpop.f32.mrb[0].mxu0
  %v400 = vpop.f32.mrb[0].mxu0
  %v401 = vadd.f32 %v69, %v400
  %v402 = vpop.f32.mrb[0].mxu0
  %403 = vmatprep.mubr.bf16.mxu0 %v289
  %404 = vmatmul.mubr.bf16.gmra.mrb[0].mxu0 %v178
  %v405 = vpop.f32.mrb[0].mxu0
  %v406 = vadd.f32 %v69, %v405
  %v407 = vpop.f32.mrb[0].mxu0
  %v408 = vpop.f32.mrb[0].mxu0
  %v409 = vadd.f32 %v69, %v408
  %v410 = vpop.f32.mrb[0].mxu0
  %411 = vmatprep.mubr.bf16.mxu0 %v292
  %412 = vmatmul.mubr.bf16.gmra.mrb[0].mxu0 %v180
  %v413 = vpop.f32.mrb[0].mxu0
  %v414 = vadd.f32 %v69, %v413
  %v415 = vpop.f32.mrb[0].mxu0
  %v416 = vpop.f32.mrb[0].mxu0
  %v417 = vadd.f32 %v69, %v416
  %v418 = vpop.f32.mrb[0].mxu0
  %419 = vmatprep.mubr.bf16.mxu0 %v295
  %420 = vmatmul.mubr.bf16.gmra.mrb[0].mxu0 %v182
  %v421 = vpop.f32.mrb[0].mxu0
  %v422 = vadd.f32 %v69, %v421
  %v423 = vpop.f32.mrb[0].mxu0
  %v424 = vpop.f32.mrb[0].mxu0
  %v425 = vadd.f32 %v69, %v424
  %v426 = vpop.f32.mrb[0].mxu0
  %427 = vmatprep.mubr.bf16.mxu0 %v298
  %428 = vmatmul.mubr.bf16.gmra.mrb[0].mxu0 %v184
  %v429 = vpop.f32.mrb[0].mxu0
  %v430 = vadd.f32 %v69, %v429
  %v431 = vpop.f32.mrb[0].mxu0
  %v432 = vpop.f32.mrb[0].mxu0
  %v433 = vadd.f32 %v69, %v432
  %v434 = vpop.f32.mrb[0].mxu0
  %435 = vmatprep.mubr.bf16.mxu0 %v301
  %436 = vmatmul.mubr.bf16.gmra.mrb[0].mxu0 %v186
  %v437 = vpop.f32.mrb[0].mxu0
  %v438 = vadd.f32 %v69, %v437
  %v439 = vpop.f32.mrb[0].mxu0
  %v440 = vpop.f32.mrb[0].mxu0
  %v441 = vadd.f32 %v69, %v440
  %v442 = vpop.f32.mrb[0].mxu0
  %443 = vmatprep.mubr.bf16.mxu0 %v304
  %444 = vmatmul.mubr.bf16.gmra.mrb[0].mxu0 %v188
  %v445 = vpop.f32.mrb[0].mxu0
  %v446 = vadd.f32 %v69, %v445
  %v447 = vpop.f32.mrb[0].mxu0
  %v448 = vpop.f32.mrb[0].mxu0
  %v449 = vadd.f32 %v69, %v448
  %v450 = vpop.f32.mrb[0].mxu0
  %451 = vmatprep.mubr.bf16.mxu0 %v307
  %452 = vmatmul.mubr.bf16.gmra.mrb[0].mxu0 %v190
  %v453 = vpop.f32.mrb[0].mxu0
  %v454 = vadd.f32 %v69, %v453
  %v455 = vpop.f32.mrb[0].mxu0
  %v456 = vpop.f32.mrb[0].mxu0
  %v457 = vadd.f32 %v69, %v456
  %v458 = vpop.f32.mrb[0].mxu0
  %459 = vmatprep.mubr.bf16.mxu0 %v310
  %460 = vmatmul.mubr.bf16.gmra.mrb[0].mxu0 %v192
  %v461 = vpop.f32.mrb[0].mxu0
  %v462 = vadd.f32 %v69, %v461
  %v463 = vpop.f32.mrb[0].mxu0
  %v464 = vpop.f32.mrb[0].mxu0
  %v465 = vadd.f32 %v69, %v464
  %v466 = vpop.f32.mrb[0].mxu0
  %467 = vmatprep.mubr.bf16.mxu0 %v313
  %468 = vmatmul.mubr.bf16.gmra.mrb[0].mxu0 %v194
  %v469 = vpop.f32.mrb[0].mxu0
  %v470 = vadd.f32 %v69, %v469
  %v471 = vpop.f32.mrb[0].mxu0
  %v472 = vpop.f32.mrb[0].mxu0
  %v473 = vpop.f32.mrb[0].mxu0
  %474 = vdwg.mxu0
  %v475 = vmax.f32 %v350, 0.0
  %v476 = vmax.f32 %v353, 0.0
  %v477 = vmax.f32 %v358, 0.0
  %v478 = vmax.f32 %v361, 0.0
  %v479 = vmax.f32 %v366, 0.0
  %v480 = vmax.f32 %v369, 0.0
  %v481 = vmax.f32 %v374, 0.0
  %v482 = vmax.f32 %v377, 0.0
  %v483 = vmax.f32 %v382, 0.0
  %v484 = vmax.f32 %v385, 0.0
  %v485 = vmax.f32 %v390, 0.0
  %v486 = vmax.f32 %v393, 0.0
  %v487 = vmax.f32 %v398, 0.0
  %v488 = vmax.f32 %v401, 0.0
  %v489 = vmax.f32 %v406, 0.0
  %v490 = vmax.f32 %v409, 0.0
  %v491 = vmax.f32 %v414, 0.0
  %v492 = vmax.f32 %v417, 0.0
  %v493 = vmax.f32 %v422, 0.0
  %v494 = vmax.f32 %v425, 0.0
  %v495 = vmax.f32 %v430, 0.0
  %v496 = vmax.f32 %v433, 0.0
  %v497 = vmax.f32 %v438, 0.0
  %v498 = vmax.f32 %v441, 0.0
  %v499 = vmax.f32 %v446, 0.0
  %v500 = vmax.f32 %v449, 0.0
  %v501 = vmax.f32 %v454, 0.0
  %v502 = vmax.f32 %v457, 0.0
  %v503 = vmax.f32 %v462, 0.0
  %v504 = vmax.f32 %v465, 0.0
  %v505 = vmax.f32 %v470, 0.0
  %v506 = vpack.c.bf16 %v476, %v475
  %v507 = vpack.c.bf16 %v478, %v477
  %v508 = vpack.c.bf16 %v480, %v479
  %v509 = vpack.c.bf16 %v482, %v481
  %v510 = vpack.c.bf16 %v484, %v483
  %v511 = vpack.c.bf16 %v486, %v485
  %v512 = vpack.c.bf16 %v488, %v487
  %v513 = vpack.c.bf16 %v490, %v489
  %v514 = vpack.c.bf16 %v492, %v491
  %v515 = vpack.c.bf16 %v494, %v493
  %v516 = vpack.c.bf16 %v496, %v495
  %v517 = vpack.c.bf16 %v498, %v497
  %v518 = vpack.c.bf16 %v500, %v499
  %v519 = vpack.c.bf16 %v502, %v501
  %v520 = vpack.c.bf16 %v504, %v503
  %v521 = vpack.c.bf16 %v505, %v505
  %v538 = vunpack.c.l.b16 %v506
  %v539 = vunpack.c.h.b16 %v506
  %v540 = vunpack.c.l.b16 %v507
  %v541 = vunpack.c.h.b16 %v507
  %v542 = vunpack.c.l.b16 %v508
  %v543 = vunpack.c.h.b16 %v508
  %v544 = vunpack.c.l.b16 %v509
  %v545 = vunpack.c.h.b16 %v509
  %v546 = vunpack.c.l.b16 %v510
  %v547 = vunpack.c.h.b16 %v510
  %v548 = vunpack.c.l.b16 %v511
  %v549 = vunpack.c.h.b16 %v511
  %v550 = vunpack.c.l.b16 %v512
  %v551 = vunpack.c.h.b16 %v512
  %v552 = vunpack.c.l.b16 %v513
  %v553 = vunpack.c.h.b16 %v513
  %v554 = vunpack.c.l.b16 %v514
  %v555 = vunpack.c.h.b16 %v514
  %v556 = vunpack.c.l.b16 %v515
  %v557 = vunpack.c.h.b16 %v515
  %v558 = vunpack.c.l.b16 %v516
  %v559 = vunpack.c.h.b16 %v516
  %v560 = vunpack.c.l.b16 %v517
  %v561 = vunpack.c.h.b16 %v517
  %v562 = vunpack.c.l.b16 %v518
  %v563 = vunpack.c.h.b16 %v518
  %v564 = vunpack.c.l.b16 %v519
  %v565 = vunpack.c.h.b16 %v519
  %v566 = vunpack.c.l.b16 %v520
  %v567 = vunpack.c.h.b16 %v520
  %v568 = vunpack.c.l.b16 %v521
  %v569 = vpack.c.b16 %v538, %v538
  %v570 = vpack.c.b16 %v539, %v539
  %v571 = vpack.c.b16 %v540, %v540
  %v572 = vpack.c.b16 %v541, %v541
  %v573 = vpack.c.b16 %v542, %v542
  %v574 = vpack.c.b16 %v543, %v543
  %v575 = vpack.c.b16 %v544, %v544
  %v576 = vpack.c.b16 %v545, %v545
  %v577 = vpack.c.b16 %v546, %v546
  %v578 = vpack.c.b16 %v547, %v547
  %v579 = vpack.c.b16 %v548, %v548
  %v580 = vpack.c.b16 %v549, %v549
  %v581 = vpack.c.b16 %v550, %v550
  %v582 = vpack.c.b16 %v551, %v551
  %v583 = vpack.c.b16 %v552, %v552
  %v584 = vpack.c.b16 %v553, %v553
  %v585 = vpack.c.b16 %v554, %v554
  %v586 = vpack.c.b16 %v555, %v555
  %v587 = vpack.c.b16 %v556, %v556
  %v588 = vpack.c.b16 %v557, %v557
  %v589 = vpack.c.b16 %v558, %v558
  %v590 = vpack.c.b16 %v559, %v559
  %v591 = vpack.c.b16 %v560, %v560
  %v592 = vpack.c.b16 %v561, %v561
  %v593 = vpack.c.b16 %v562, %v562
  %v594 = vpack.c.b16 %v563, %v563
  %v595 = vpack.c.b16 %v564, %v564
  %v596 = vpack.c.b16 %v565, %v565
  %v597 = vpack.c.b16 %v566, %v566
  %v598 = vpack.c.b16 %v567, %v567
  %v599 = vpack.c.b16 %v568, %v568
  %vm631 = vcmask 257024
  %632 = vst.msk [vmem:[%s3] sm:$0xf] %vm631, %v569
  %633 = vst.msk [vmem:[%s3 + $0x4] sm:$0xf] %vm631, %v570
  %634 = vst.msk [vmem:[%s3 + $0x8] sm:$0xf] %vm631, %v571
  %635 = vst.msk [vmem:[%s3 + $0xc] sm:$0xf] %vm631, %v572
  %636 = vst.msk [vmem:[%s3 + $0x10] sm:$0xf] %vm631, %v573
  %637 = vst.msk [vmem:[%s3 + $0x14] sm:$0xf] %vm631, %v574
  %638 = vst.msk [vmem:[%s3 + $0x18] sm:$0xf] %vm631, %v575
  %639 = vst.msk [vmem:[%s3 + $0x1c] sm:$0xf] %vm631, %v576
  %640 = vst.msk [vmem:[%s3 + $0x20] sm:$0xf] %vm631, %v577
  %641 = vst.msk [vmem:[%s3 + $0x24] sm:$0xf] %vm631, %v578
  %642 = vst.msk [vmem:[%s3 + $0x28] sm:$0xf] %vm631, %v579
  %643 = vst.msk [vmem:[%s3 + $0x2c] sm:$0xf] %vm631, %v580
  %644 = vst.msk [vmem:[%s3 + $0x30] sm:$0xf] %vm631, %v581
  %645 = vst.msk [vmem:[%s3 + $0x34] sm:$0xf] %vm631, %v582
  %646 = vst.msk [vmem:[%s3 + $0x38] sm:$0xf] %vm631, %v583
  %647 = vst.msk [vmem:[%s3 + $0x3c] sm:$0xf] %vm631, %v584
  %648 = vst.msk [vmem:[%s3 + $0x40] sm:$0xf] %vm631, %v585
  %649 = vst.msk [vmem:[%s3 + $0x44] sm:$0xf] %vm631, %v586
  %650 = vst.msk [vmem:[%s3 + $0x48] sm:$0xf] %vm631, %v587
  %651 = vst.msk [vmem:[%s3 + $0x4c] sm:$0xf] %vm631, %v588
  %652 = vst.msk [vmem:[%s3 + $0x50] sm:$0xf] %vm631, %v589
  %653 = vst.msk [vmem:[%s3 + $0x54] sm:$0xf] %vm631, %v590
  %654 = vst.msk [vmem:[%s3 + $0x58] sm:$0xf] %vm631, %v591
  %655 = vst.msk [vmem:[%s3 + $0x5c] sm:$0xf] %vm631, %v592
  %656 = vst.msk [vmem:[%s3 + $0x60] sm:$0xf] %vm631, %v593
  %657 = vst.msk [vmem:[%s3 + $0x64] sm:$0xf] %vm631, %v594
  %658 = vst.msk [vmem:[%s3 + $0x68] sm:$0xf] %vm631, %v595
  %659 = vst.msk [vmem:[%s3 + $0x6c] sm:$0xf] %vm631, %v596
  %660 = vst.msk [vmem:[%s3 + $0x70] sm:$0xf] %vm631, %v597
  %661 = vst.msk [vmem:[%s3 + $0x74] sm:$0xf] %vm631, %v598
  %662 = vst.msk [vmem:[%s3 + $0x78] sm:$0xf] %vm631, %v599
  // Predicated region
  $region14: #{regression_net_forward.4} parent=0 // pred_check
    _
  $region15: #{regression_net_forward.4} parent=0 // pred_check_branch
    %664 = sbr.rel (0) target = $region17
  $region16: #{regression_net_forward.4} parent=0 // pred_region
    _
  $region17: #{regression_net_forward.4} parent=0 // pred_fallthru
    _
  // Predicated region
  $region18: #{regression_net_forward.4} parent=0 // pred_check
    _
  $region19: #{regression_net_forward.4} parent=0 // pred_check_branch
    %666 = sbr.rel (0) target = $region21
  $region20: #{regression_net_forward.4} parent=0 // pred_region
    _
  $region21: #{regression_net_forward.4} parent=0 // pred_fallthru
    _

// kernel: regression_net_forward.5
$region0: #{regression_net_forward.5}
  #allocation0 [shape = 'u32[]', space=smem, size = 0x4, offset = 0x4, fixed_abs, tag = 'smem constant byte address 0x4 - core index']
  #allocation1 [shape = 'u32[144,128]{1,0:T(1,128)}', space=vmem, size = 0x12000, scoped, tag = 'internal scratch']
  %s0 = inlined_call_operand.vmem [shape: bf16[8,800], index: 0, kind: input, shape index: {}]
  %s1 = inlined_call_operand.vmem [shape: bf16[800,1024], index: 1, kind: input, shape index: {}]
  %s2 = inlined_call_operand.vmem [shape: f32[1,1024], index: 2, kind: input, shape index: {}]
  %s3 = inlined_call_operand.vmem [shape: bf16[1024,8], index: 3, kind: input, shape index: {}]
  %s4 = inlined_call_operand.vmem [shape: f32[1,8], index: 4, kind: input, shape index: {}]
  %s5 = inlined_call_operand.vmem [shape: f32[8,8], index: 5, kind: output, shape index: {}]
  %s6 = sld [smem:[#allocation0]]
  $region30: #{regression_net_forward.5} parent=0
    _
  %s8 = ssub.s32 1, %s6
  %s9 = scalar_select 0, %s8, %s6
  // Predicated region
  $region2: #{regression_net_forward.5} parent=0 // pred_check
    _
  $region3: #{regression_net_forward.5} parent=0 // pred_check_branch
    %11 = sbr.rel (0) target = $region5
  $region4: #{regression_net_forward.5} parent=0 // pred_region
    _
  $region5: #{regression_net_forward.5} parent=0 // pred_fallthru
    _
  // Predicated region
  $region6: #{regression_net_forward.5} parent=0 // pred_check
    _
  $region7: #{regression_net_forward.5} parent=0 // pred_check_branch
    %13 = sbr.rel (0) target = $region9
  $region8: #{regression_net_forward.5} parent=0 // pred_region
    _
  $region9: #{regression_net_forward.5} parent=0 // pred_fallthru
    _
  // Predicated region
  $region10: #{regression_net_forward.5} parent=0 // pred_check
    _
  $region11: #{regression_net_forward.5} parent=0 // pred_check_branch
    %15 = sbr.rel (0) target = $region13
  $region12: #{regression_net_forward.5} parent=0 // pred_region
    _
  $region13: #{regression_net_forward.5} parent=0 // pred_fallthru
    _
  // Predicated region
  $region14: #{regression_net_forward.5} parent=0 // pred_check
    _
  $region15: #{regression_net_forward.5} parent=0 // pred_check_branch
    %17 = sbr.rel (0) target = $region17
  $region16: #{regression_net_forward.5} parent=0 // pred_region
    _
  $region17: #{regression_net_forward.5} parent=0 // pred_fallthru
    _
  // Predicated region
  $region18: #{regression_net_forward.5} parent=0 // pred_check
    _
  $region19: #{regression_net_forward.5} parent=0 // pred_check_branch
    %19 = sbr.rel (0) target = $region21
  $region20: #{regression_net_forward.5} parent=0 // pred_region
    _
  $region21: #{regression_net_forward.5} parent=0 // pred_fallthru
    _
  %v21 = vld [vmem:[%s0] sm:$0xff]
  %v22 = vld [vmem:[%s0 + $0x8] sm:$0xff]
  %v23 = vld [vmem:[%s0 + $0x10] sm:$0xff]
  %v24 = vld [vmem:[%s0 + $0x18] sm:$0xf]
  %v25 = vld [vmem:[%s1] sm:$0xff]
  %v26 = vld [vmem:[%s1 + $0x8] sm:$0xff]
  %v27 = vld [vmem:[%s1 + $0x10] sm:$0xff]
  %v28 = vld [vmem:[%s1 + $0x18] sm:$0xff]
  %v29 = vld [vmem:[%s1 + $0x20] sm:$0xff]
  %v30 = vld [vmem:[%s1 + $0x28] sm:$0xff]
  %v31 = vld [vmem:[%s1 + $0x30] sm:$0xff]
  %v32 = vld [vmem:[%s1 + $0x38] sm:$0xff]
  %v33 = vld [vmem:[%s1 + $0x40] sm:$0xff]
  %v34 = vld [vmem:[%s1 + $0x48] sm:$0xff]
  %v35 = vld [vmem:[%s1 + $0x50] sm:$0xff]
  %v36 = vld [vmem:[%s1 + $0x58] sm:$0xff]
  %v37 = vld [vmem:[%s1 + $0x60] sm:$0xff]
  %v38 = vld [vmem:[%s1 + $0x68] sm:$0xff]
  %v39 = vld [vmem:[%s1 + $0x70] sm:$0xff]
  %v40 = vld [vmem:[%s1 + $0x78] sm:$0xff]
  %v41 = vld [vmem:[%s1 + $0x80] sm:$0xff]
  %v42 = vld [vmem:[%s1 + $0x88] sm:$0xff]
  %v43 = vld [vmem:[%s1 + $0x90] sm:$0xff]
  %v44 = vld [vmem:[%s1 + $0x98] sm:$0xff]
  %v45 = vld [vmem:[%s1 + $0xa0] sm:$0xff]
  %v46 = vld [vmem:[%s1 + $0xa8] sm:$0xff]
  %v47 = vld [vmem:[%s1 + $0xb0] sm:$0xff]
  %v48 = vld [vmem:[%s1 + $0xb8] sm:$0xff]
  %v49 = vld [vmem:[%s1 + $0xc0] sm:$0xff]
  %v50 = vld [vmem:[%s1 + $0xc8] sm:$0xff]
  %v51 = vld [vmem:[%s1 + $0xd0] sm:$0xff]
  %v52 = vld [vmem:[%s1 + $0xd8] sm:$0xff]
  %v53 = vld [vmem:[%s1 + $0xe0] sm:$0xff]
  %v54 = vld [vmem:[%s1 + $0xe8] sm:$0xff]
  %v55 = vld [vmem:[%s1 + $0xf0] sm:$0xff]
  %v56 = vld [vmem:[%s1 + $0xf8] sm:$0xff]
  %v57 = vld [vmem:[%s1 + $0x100] sm:$0xff]
  %v58 = vld [vmem:[%s1 + $0x108] sm:$0xff]
  %v59 = vld [vmem:[%s1 + $0x110] sm:$0xff]
  %v60 = vld [vmem:[%s1 + $0x118] sm:$0xff]
  %v61 = vld [vmem:[%s1 + $0x120] sm:$0xff]
  %v62 = vld [vmem:[%s1 + $0x128] sm:$0xff]
  %v63 = vld [vmem:[%s1 + $0x130] sm:$0xff]
  %v64 = vld [vmem:[%s1 + $0x138] sm:$0xff]
  %v65 = vld [vmem:[%s1 + $0x140] sm:$0xff]
  %v66 = vld [vmem:[%s1 + $0x148] sm:$0xff]
  %v67 = vld [vmem:[%s1 + $0x150] sm:$0xff]
  %v68 = vld [vmem:[%s1 + $0x158] sm:$0xff]
  %v69 = vld [vmem:[%s1 + $0x160] sm:$0xff]
  %v70 = vld [vmem:[%s1 + $0x168] sm:$0xff]
  %v71 = vld [vmem:[%s1 + $0x170] sm:$0xff]
  %v72 = vld [vmem:[%s1 + $0x178] sm:$0xff]
  %v73 = vld [vmem:[%s1 + $0x180] sm:$0xff]
  %v74 = vld [vmem:[%s1 + $0x188] sm:$0xff]
  %v75 = vld [vmem:[%s1 + $0x190] sm:$0xff]
  %v76 = vld [vmem:[%s1 + $0x198] sm:$0xff]
  %v77 = vld [vmem:[%s1 + $0x1a0] sm:$0xff]
  %v78 = vld [vmem:[%s1 + $0x1a8] sm:$0xff]
  %v79 = vld [vmem:[%s1 + $0x1b0] sm:$0xff]
  %v80 = vld [vmem:[%s1 + $0x1b8] sm:$0xff]
  %v81 = vld [vmem:[%s1 + $0x1c0] sm:$0xff]
  %v82 = vld [vmem:[%s1 + $0x1c8] sm:$0xff]
  %v83 = vld [vmem:[%s1 + $0x1d0] sm:$0xff]
  %v84 = vld [vmem:[%s1 + $0x1d8] sm:$0xff]
  %v85 = vld [vmem:[%s1 + $0x1e0] sm:$0xff]
  %v86 = vld [vmem:[%s1 + $0x1e8] sm:$0xff]
  %v87 = vld [vmem:[%s1 + $0x1f0] sm:$0xff]
  %v88 = vld [vmem:[%s1 + $0x1f8] sm:$0xff]
  %v89 = vld [vmem:[%s1 + $0x200] sm:$0xff]
  %v90 = vld [vmem:[%s1 + $0x208] sm:$0xff]
  %v91 = vld [vmem:[%s1 + $0x210] sm:$0xff]
  %v92 = vld [vmem:[%s1 + $0x218] sm:$0xff]
  %v93 = vld [vmem:[%s1 + $0x220] sm:$0xff]
  %v94 = vld [vmem:[%s1 + $0x228] sm:$0xff]
  %v95 = vld [vmem:[%s1 + $0x230] sm:$0xff]
  %v96 = vld [vmem:[%s1 + $0x238] sm:$0xff]
  %v97 = vld [vmem:[%s1 + $0x240] sm:$0xff]
  %v98 = vld [vmem:[%s1 + $0x248] sm:$0xff]
  %v99 = vld [vmem:[%s1 + $0x250] sm:$0xff]
  %v100 = vld [vmem:[%s1 + $0x258] sm:$0xff]
  %v101 = vld [vmem:[%s1 + $0x260] sm:$0xff]
  %v102 = vld [vmem:[%s1 + $0x268] sm:$0xff]
  %v103 = vld [vmem:[%s1 + $0x270] sm:$0xff]
  %v104 = vld [vmem:[%s1 + $0x278] sm:$0xff]
  %v105 = vld [vmem:[%s1 + $0x280] sm:$0xff]
  %v106 = vld [vmem:[%s1 + $0x288] sm:$0xff]
  %v107 = vld [vmem:[%s1 + $0x290] sm:$0xff]
  %v108 = vld [vmem:[%s1 + $0x298] sm:$0xff]
  %v109 = vld [vmem:[%s1 + $0x2a0] sm:$0xff]
  %v110 = vld [vmem:[%s1 + $0x2a8] sm:$0xff]
  %v111 = vld [vmem:[%s1 + $0x2b0] sm:$0xff]
  %v112 = vld [vmem:[%s1 + $0x2b8] sm:$0xff]
  %v113 = vld [vmem:[%s1 + $0x2c0] sm:$0xff]
  %v114 = vld [vmem:[%s1 + $0x2c8] sm:$0xff]
  %v115 = vld [vmem:[%s1 + $0x2d0] sm:$0xff]
  %v116 = vld [vmem:[%s1 + $0x2d8] sm:$0xff]
  %v117 = vld [vmem:[%s1 + $0x2e0] sm:$0xff]
  %v118 = vld [vmem:[%s1 + $0x2e8] sm:$0xff]
  %v119 = vld [vmem:[%s1 + $0x2f0] sm:$0xff]
  %v120 = vld [vmem:[%s1 + $0x2f8] sm:$0xff]
  %v121 = vld [vmem:[%s1 + $0x300] sm:$0xff]
  %v122 = vld [vmem:[%s1 + $0x308] sm:$0xff]
  %v123 = vld [vmem:[%s1 + $0x310] sm:$0xff]
  %v124 = vld [vmem:[%s1 + $0x318] sm:$0xff]
  %v125 = vld [vmem:[%s1 + $0x320] sm:$0xff]
  %v126 = vld [vmem:[%s1 + $0x328] sm:$0xff]
  %v127 = vld [vmem:[%s1 + $0x330] sm:$0xff]
  %v128 = vld [vmem:[%s1 + $0x338] sm:$0xff]
  %v129 = vld [vmem:[%s1 + $0x340] sm:$0xff]
  %v130 = vld [vmem:[%s1 + $0x348] sm:$0xff]
  %v131 = vld [vmem:[%s1 + $0x350] sm:$0xff]
  %v132 = vld [vmem:[%s1 + $0x358] sm:$0xff]
  %v133 = vld [vmem:[%s1 + $0x360] sm:$0xff]
  %v134 = vld [vmem:[%s1 + $0x368] sm:$0xff]
  %v135 = vld [vmem:[%s1 + $0x370] sm:$0xff]
  %v136 = vld [vmem:[%s1 + $0x378] sm:$0xff]
  %v137 = vld [vmem:[%s1 + $0x380] sm:$0xff]
  %v138 = vld [vmem:[%s1 + $0x388] sm:$0xff]
  %v139 = vld [vmem:[%s1 + $0x390] sm:$0xff]
  %v140 = vld [vmem:[%s1 + $0x398] sm:$0xff]
  %v141 = vld [vmem:[%s1 + $0x3a0] sm:$0xff]
  %v142 = vld [vmem:[%s1 + $0x3a8] sm:$0xff]
  %v143 = vld [vmem:[%s1 + $0x3b0] sm:$0xff]
  %v144 = vld [vmem:[%s1 + $0x3b8] sm:$0xff]
  %v145 = vld [vmem:[%s1 + $0x3c0] sm:$0xff]
  %v146 = vld [vmem:[%s1 + $0x3c8] sm:$0xff]
  %v147 = vld [vmem:[%s1 + $0x3d0] sm:$0xff]
  %v148 = vld [vmem:[%s1 + $0x3d8] sm:$0xff]
  %v149 = vld [vmem:[%s1 + $0x3e0] sm:$0xff]
  %v150 = vld [vmem:[%s1 + $0x3e8] sm:$0xff]
  %v151 = vld [vmem:[%s1 + $0x3f0] sm:$0xff]
  %v152 = vld [vmem:[%s1 + $0x3f8] sm:$0xff]
  %v153 = vld [vmem:[%s1 + $0x400] sm:$0xff]
  %v154 = vld [vmem:[%s1 + $0x408] sm:$0xff]
  %v155 = vld [vmem:[%s1 + $0x410] sm:$0xff]
  %v156 = vld [vmem:[%s1 + $0x418] sm:$0xff]
  %v157 = vld [vmem:[%s1 + $0x420] sm:$0xff]
  %v158 = vld [vmem:[%s1 + $0x428] sm:$0xff]
  %v159 = vld [vmem:[%s1 + $0x430] sm:$0xff]
  %v160 = vld [vmem:[%s1 + $0x438] sm:$0xff]
  %v161 = vld [vmem:[%s1 + $0x440] sm:$0xff]
  %v162 = vld [vmem:[%s1 + $0x448] sm:$0xff]
  %v163 = vld [vmem:[%s1 + $0x450] sm:$0xff]
  %v164 = vld [vmem:[%s1 + $0x458] sm:$0xff]
  %v165 = vld [vmem:[%s1 + $0x460] sm:$0xff]
  %v166 = vld [vmem:[%s1 + $0x468] sm:$0xff]
  %v167 = vld [vmem:[%s1 + $0x470] sm:$0xff]
  %v168 = vld [vmem:[%s1 + $0x478] sm:$0xff]
  %v169 = vld [vmem:[%s1 + $0x480] sm:$0xff]
  %v170 = vld [vmem:[%s1 + $0x488] sm:$0xff]
  %v171 = vld [vmem:[%s1 + $0x490] sm:$0xff]
  %v172 = vld [vmem:[%s1 + $0x498] sm:$0xff]
  %v173 = vld [vmem:[%s1 + $0x4a0] sm:$0xff]
  %v174 = vld [vmem:[%s1 + $0x4a8] sm:$0xff]
  %v175 = vld [vmem:[%s1 + $0x4b0] sm:$0xff]
  %v176 = vld [vmem:[%s1 + $0x4b8] sm:$0xff]
  %v177 = vld [vmem:[%s1 + $0x4c0] sm:$0xff]
  %v178 = vld [vmem:[%s1 + $0x4c8] sm:$0xff]
  %v179 = vld [vmem:[%s1 + $0x4d0] sm:$0xff]
  %v180 = vld [vmem:[%s1 + $0x4d8] sm:$0xff]
  %v181 = vld [vmem:[%s1 + $0x4e0] sm:$0xff]
  %v182 = vld [vmem:[%s1 + $0x4e8] sm:$0xff]
  %v183 = vld [vmem:[%s1 + $0x4f0] sm:$0xff]
  %v184 = vld [vmem:[%s1 + $0x4f8] sm:$0xff]
  %v185 = vld [vmem:[%s1 + $0x500] sm:$0xff]
  %v186 = vld [vmem:[%s1 + $0x508] sm:$0xff]
  %v187 = vld [vmem:[%s1 + $0x510] sm:$0xff]
  %v188 = vld [vmem:[%s1 + $0x518] sm:$0xff]
  %v189 = vld [vmem:[%s1 + $0x520] sm:$0xff]
  %v190 = vld [vmem:[%s1 + $0x528] sm:$0xff]
  %v191 = vld [vmem:[%s1 + $0x530] sm:$0xff]
  %v192 = vld [vmem:[%s1 + $0x538] sm:$0xff]
  %v193 = vld [vmem:[%s1 + $0x540] sm:$0xff]
  %v194 = vld [vmem:[%s1 + $0x548] sm:$0xff]
  %v195 = vld [vmem:[%s1 + $0x550] sm:$0xff]
  %v196 = vld [vmem:[%s1 + $0x558] sm:$0xff]
  %v197 = vld [vmem:[%s1 + $0x560] sm:$0xff]
  %v198 = vld [vmem:[%s1 + $0x568] sm:$0xff]
  %v199 = vld [vmem:[%s1 + $0x570] sm:$0xff]
  %v200 = vld [vmem:[%s1 + $0x578] sm:$0xff]
  %v201 = vld [vmem:[%s1 + $0x580] sm:$0xff]
  %v202 = vld [vmem:[%s1 + $0x588] sm:$0xff]
  %v203 = vld [vmem:[%s1 + $0x590] sm:$0xff]
  %v204 = vld [vmem:[%s1 + $0x598] sm:$0xff]
  %v205 = vld [vmem:[%s1 + $0x5a0] sm:$0xff]
  %v206 = vld [vmem:[%s1 + $0x5a8] sm:$0xff]
  %v207 = vld [vmem:[%s1 + $0x5b0] sm:$0xff]
  %v208 = vld [vmem:[%s1 + $0x5b8] sm:$0xff]
  %v209 = vld [vmem:[%s1 + $0x5c0] sm:$0xff]
  %v210 = vld [vmem:[%s1 + $0x5c8] sm:$0xff]
  %v211 = vld [vmem:[%s1 + $0x5d0] sm:$0xff]
  %v212 = vld [vmem:[%s1 + $0x5d8] sm:$0xff]
  %v213 = vld [vmem:[%s1 + $0x5e0] sm:$0xff]
  %v214 = vld [vmem:[%s1 + $0x5e8] sm:$0xff]
  %v215 = vld [vmem:[%s1 + $0x5f0] sm:$0xff]
  %v216 = vld [vmem:[%s1 + $0x5f8] sm:$0xff]
  %v217 = vld [vmem:[%s1 + $0x600] sm:$0xff]
  %v218 = vld [vmem:[%s1 + $0x608] sm:$0xff]
  %v219 = vld [vmem:[%s1 + $0x610] sm:$0xff]
  %v220 = vld [vmem:[%s1 + $0x618] sm:$0xff]
  %v221 = vld [vmem:[%s1 + $0x620] sm:$0xff]
  %v222 = vld [vmem:[%s1 + $0x628] sm:$0xff]
  %v223 = vld [vmem:[%s1 + $0x630] sm:$0xff]
  %v224 = vld [vmem:[%s1 + $0x638] sm:$0xff]
  %v225 = vld [vmem:[%s1 + $0x640] sm:$0xff]
  %v226 = vld [vmem:[%s1 + $0x648] sm:$0xff]
  %v227 = vld [vmem:[%s1 + $0x650] sm:$0xff]
  %v228 = vld [vmem:[%s1 + $0x658] sm:$0xff]
  %v229 = vld [vmem:[%s1 + $0x660] sm:$0xff]
  %v230 = vld [vmem:[%s1 + $0x668] sm:$0xff]
  %v231 = vld [vmem:[%s1 + $0x670] sm:$0xff]
  %v232 = vld [vmem:[%s1 + $0x678] sm:$0xff]
  %v233 = vld [vmem:[%s1 + $0x680] sm:$0xff]
  %v234 = vld [vmem:[%s1 + $0x688] sm:$0xff]
  %v235 = vld [vmem:[%s1 + $0x690] sm:$0xff]
  %v236 = vld [vmem:[%s1 + $0x698] sm:$0xff]
  %v237 = vld [vmem:[%s1 + $0x6a0] sm:$0xff]
  %v238 = vld [vmem:[%s1 + $0x6a8] sm:$0xff]
  %v239 = vld [vmem:[%s1 + $0x6b0] sm:$0xff]
  %v240 = vld [vmem:[%s1 + $0x6b8] sm:$0xff]
  %v241 = vld [vmem:[%s1 + $0x6c0] sm:$0xff]
  %v242 = vld [vmem:[%s1 + $0x6c8] sm:$0xff]
  %v243 = vld [vmem:[%s1 + $0x6d0] sm:$0xff]
  %v244 = vld [vmem:[%s1 + $0x6d8] sm:$0xff]
  %v245 = vld [vmem:[%s1 + $0x6e0] sm:$0xff]
  %v246 = vld [vmem:[%s1 + $0x6e8] sm:$0xff]
  %v247 = vld [vmem:[%s1 + $0x6f0] sm:$0xff]
  %v248 = vld [vmem:[%s1 + $0x6f8] sm:$0xff]
  %v249 = vld [vmem:[%s1 + $0x700] sm:$0xff]
  %v250 = vld [vmem:[%s1 + $0x708] sm:$0xff]
  %v251 = vld [vmem:[%s1 + $0x710] sm:$0xff]
  %v252 = vld [vmem:[%s1 + $0x718] sm:$0xff]
  %v253 = vld [vmem:[%s1 + $0x720] sm:$0xff]
  %v254 = vld [vmem:[%s1 + $0x728] sm:$0xff]
  %v255 = vld [vmem:[%s1 + $0x730] sm:$0xff]
  %v256 = vld [vmem:[%s1 + $0x738] sm:$0xff]
  %v257 = vld [vmem:[%s1 + $0x740] sm:$0xff]
  %v258 = vld [vmem:[%s1 + $0x748] sm:$0xff]
  %v259 = vld [vmem:[%s1 + $0x750] sm:$0xff]
  %v260 = vld [vmem:[%s1 + $0x758] sm:$0xff]
  %v261 = vld [vmem:[%s1 + $0x760] sm:$0xff]
  %v262 = vld [vmem:[%s1 + $0x768] sm:$0xff]
  %v263 = vld [vmem:[%s1 + $0x770] sm:$0xff]
  %v264 = vld [vmem:[%s1 + $0x778] sm:$0xff]
  %v265 = vld [vmem:[%s1 + $0x780] sm:$0xff]
  %v266 = vld [vmem:[%s1 + $0x788] sm:$0xff]
  %v267 = vld [vmem:[%s1 + $0x790] sm:$0xff]
  %v268 = vld [vmem:[%s1 + $0x798] sm:$0xff]
  %v269 = vld [vmem:[%s1 + $0x7a0] sm:$0xff]
  %v270 = vld [vmem:[%s1 + $0x7a8] sm:$0xff]
  %v271 = vld [vmem:[%s1 + $0x7b0] sm:$0xff]
  %v272 = vld [vmem:[%s1 + $0x7b8] sm:$0xff]
  %v273 = vld [vmem:[%s1 + $0x7c0] sm:$0xff]
  %v274 = vld [vmem:[%s1 + $0x7c8] sm:$0xff]
  %v275 = vld [vmem:[%s1 + $0x7d0] sm:$0xff]
  %v276 = vld [vmem:[%s1 + $0x7d8] sm:$0xff]
  %v277 = vld [vmem:[%s1 + $0x7e0] sm:$0xff]
  %v278 = vld [vmem:[%s1 + $0x7e8] sm:$0xff]
  %v279 = vld [vmem:[%s1 + $0x7f0] sm:$0xff]
  %v280 = vld [vmem:[%s1 + $0x7f8] sm:$0xff]
  %v281 = vld [vmem:[%s1 + $0x800] sm:$0xff]
  %v282 = vld [vmem:[%s1 + $0x808] sm:$0xff]
  %v283 = vld [vmem:[%s1 + $0x810] sm:$0xff]
  %v284 = vld [vmem:[%s1 + $0x818] sm:$0xff]
  %v285 = vld [vmem:[%s1 + $0x820] sm:$0xff]
  %v286 = vld [vmem:[%s1 + $0x828] sm:$0xff]
  %v287 = vld [vmem:[%s1 + $0x830] sm:$0xff]
  %v288 = vld [vmem:[%s1 + $0x838] sm:$0xff]
  %v289 = vld [vmem:[%s1 + $0x840] sm:$0xff]
  %v290 = vld [vmem:[%s1 + $0x848] sm:$0xff]
  %v291 = vld [vmem:[%s1 + $0x850] sm:$0xff]
  %v292 = vld [vmem:[%s1 + $0x858] sm:$0xff]
  %v293 = vld [vmem:[%s1 + $0x860] sm:$0xff]
  %v294 = vld [vmem:[%s1 + $0x868] sm:$0xff]
  %v295 = vld [vmem:[%s1 + $0x870] sm:$0xff]
  %v296 = vld [vmem:[%s1 + $0x878] sm:$0xff]
  %v297 = vld [vmem:[%s1 + $0x880] sm:$0xff]
  %v298 = vld [vmem:[%s1 + $0x888] sm:$0xff]
  %v299 = vld [vmem:[%s1 + $0x890] sm:$0xff]
  %v300 = vld [vmem:[%s1 + $0x898] sm:$0xff]
  %v301 = vld [vmem:[%s1 + $0x8a0] sm:$0xff]
  %v302 = vld [vmem:[%s1 + $0x8a8] sm:$0xff]
  %v303 = vld [vmem:[%s1 + $0x8b0] sm:$0xff]
  %v304 = vld [vmem:[%s1 + $0x8b8] sm:$0xff]
  %v305 = vld [vmem:[%s1 + $0x8c0] sm:$0xff]
  %v306 = vld [vmem:[%s1 + $0x8c8] sm:$0xff]
  %v307 = vld [vmem:[%s1 + $0x8d0] sm:$0xff]
  %v308 = vld [vmem:[%s1 + $0x8d8] sm:$0xff]
  %v309 = vld [vmem:[%s1 + $0x8e0] sm:$0xff]
  %v310 = vld [vmem:[%s1 + $0x8e8] sm:$0xff]
  %v311 = vld [vmem:[%s1 + $0x8f0] sm:$0xff]
  %v312 = vld [vmem:[%s1 + $0x8f8] sm:$0xff]
  %v313 = vld [vmem:[%s1 + $0x900] sm:$0xff]
  %v314 = vld [vmem:[%s1 + $0x908] sm:$0xff]
  %v315 = vld [vmem:[%s1 + $0x910] sm:$0xff]
  %v316 = vld [vmem:[%s1 + $0x918] sm:$0xff]
  %v317 = vld [vmem:[%s1 + $0x920] sm:$0xff]
  %v318 = vld [vmem:[%s1 + $0x928] sm:$0xff]
  %v319 = vld [vmem:[%s1 + $0x930] sm:$0xff]
  %v320 = vld [vmem:[%s1 + $0x938] sm:$0xff]
  %v321 = vld [vmem:[%s1 + $0x940] sm:$0xff]
  %v322 = vld [vmem:[%s1 + $0x948] sm:$0xff]
  %v323 = vld [vmem:[%s1 + $0x950] sm:$0xff]
  %v324 = vld [vmem:[%s1 + $0x958] sm:$0xff]
  %v325 = vld [vmem:[%s1 + $0x960] sm:$0xff]
  %v326 = vld [vmem:[%s1 + $0x968] sm:$0xff]
  %v327 = vld [vmem:[%s1 + $0x970] sm:$0xff]
  %v328 = vld [vmem:[%s1 + $0x978] sm:$0xff]
  %v329 = vld [vmem:[%s1 + $0x980] sm:$0xff]
  %v330 = vld [vmem:[%s1 + $0x988] sm:$0xff]
  %v331 = vld [vmem:[%s1 + $0x990] sm:$0xff]
  %v332 = vld [vmem:[%s1 + $0x998] sm:$0xff]
  %v333 = vld [vmem:[%s1 + $0x9a0] sm:$0xff]
  %v334 = vld [vmem:[%s1 + $0x9a8] sm:$0xff]
  %v335 = vld [vmem:[%s1 + $0x9b0] sm:$0xff]
  %v336 = vld [vmem:[%s1 + $0x9b8] sm:$0xff]
  %v337 = vld [vmem:[%s1 + $0x9c0] sm:$0xff]
  %v338 = vld [vmem:[%s1 + $0x9c8] sm:$0xff]
  %v339 = vld [vmem:[%s1 + $0x9d0] sm:$0xff]
  %v340 = vld [vmem:[%s1 + $0x9d8] sm:$0xff]
  %v341 = vld [vmem:[%s1 + $0x9e0] sm:$0xff]
  %v342 = vld [vmem:[%s1 + $0x9e8] sm:$0xff]
  %v343 = vld [vmem:[%s1 + $0x9f0] sm:$0xff]
  %v344 = vld [vmem:[%s1 + $0x9f8] sm:$0xff]
  %v345 = vld [vmem:[%s1 + $0xa00] sm:$0xff]
  %v346 = vld [vmem:[%s1 + $0xa08] sm:$0xff]
  %v347 = vld [vmem:[%s1 + $0xa10] sm:$0xff]
  %v348 = vld [vmem:[%s1 + $0xa18] sm:$0xff]
  %v349 = vld [vmem:[%s1 + $0xa20] sm:$0xff]
  %v350 = vld [vmem:[%s1 + $0xa28] sm:$0xff]
  %v351 = vld [vmem:[%s1 + $0xa30] sm:$0xff]
  %v352 = vld [vmem:[%s1 + $0xa38] sm:$0xff]
  %v353 = vld [vmem:[%s1 + $0xa40] sm:$0xff]
  %v354 = vld [vmem:[%s1 + $0xa48] sm:$0xff]
  %v355 = vld [vmem:[%s1 + $0xa50] sm:$0xff]
  %v356 = vld [vmem:[%s1 + $0xa58] sm:$0xff]
  %v357 = vld [vmem:[%s1 + $0xa60] sm:$0xff]
  %v358 = vld [vmem:[%s1 + $0xa68] sm:$0xff]
  %v359 = vld [vmem:[%s1 + $0xa70] sm:$0xff]
  %v360 = vld [vmem:[%s1 + $0xa78] sm:$0xff]
  %v361 = vld [vmem:[%s1 + $0xa80] sm:$0xff]
  %v362 = vld [vmem:[%s1 + $0xa88] sm:$0xff]
  %v363 = vld [vmem:[%s1 + $0xa90] sm:$0xff]
  %v364 = vld [vmem:[%s1 + $0xa98] sm:$0xff]
  %v365 = vld [vmem:[%s1 + $0xaa0] sm:$0xff]
  %v366 = vld [vmem:[%s1 + $0xaa8] sm:$0xff]
  %v367 = vld [vmem:[%s1 + $0xab0] sm:$0xff]
  %v368 = vld [vmem:[%s1 + $0xab8] sm:$0xff]
  %v369 = vld [vmem:[%s1 + $0xac0] sm:$0xff]
  %v370 = vld [vmem:[%s1 + $0xac8] sm:$0xff]
  %v371 = vld [vmem:[%s1 + $0xad0] sm:$0xff]
  %v372 = vld [vmem:[%s1 + $0xad8] sm:$0xff]
  %v373 = vld [vmem:[%s1 + $0xae0] sm:$0xff]
  %v374 = vld [vmem:[%s1 + $0xae8] sm:$0xff]
  %v375 = vld [vmem:[%s1 + $0xaf0] sm:$0xff]
  %v376 = vld [vmem:[%s1 + $0xaf8] sm:$0xff]
  %v377 = vld [vmem:[%s1 + $0xb00] sm:$0xff]
  %v378 = vld [vmem:[%s1 + $0xb08] sm:$0xff]
  %v379 = vld [vmem:[%s1 + $0xb10] sm:$0xff]
  %v380 = vld [vmem:[%s1 + $0xb18] sm:$0xff]
  %v381 = vld [vmem:[%s1 + $0xb20] sm:$0xff]
  %v382 = vld [vmem:[%s1 + $0xb28] sm:$0xff]
  %v383 = vld [vmem:[%s1 + $0xb30] sm:$0xff]
  %v384 = vld [vmem:[%s1 + $0xb38] sm:$0xff]
  %v385 = vld [vmem:[%s1 + $0xb40] sm:$0xff]
  %v386 = vld [vmem:[%s1 + $0xb48] sm:$0xff]
  %v387 = vld [vmem:[%s1 + $0xb50] sm:$0xff]
  %v388 = vld [vmem:[%s1 + $0xb58] sm:$0xff]
  %v389 = vld [vmem:[%s1 + $0xb60] sm:$0xff]
  %v390 = vld [vmem:[%s1 + $0xb68] sm:$0xff]
  %v391 = vld [vmem:[%s1 + $0xb70] sm:$0xff]
  %v392 = vld [vmem:[%s1 + $0xb78] sm:$0xff]
  %v393 = vld [vmem:[%s1 + $0xb80] sm:$0xff]
  %v394 = vld [vmem:[%s1 + $0xb88] sm:$0xff]
  %v395 = vld [vmem:[%s1 + $0xb90] sm:$0xff]
  %v396 = vld [vmem:[%s1 + $0xb98] sm:$0xff]
  %v397 = vld [vmem:[%s1 + $0xba0] sm:$0xff]
  %v398 = vld [vmem:[%s1 + $0xba8] sm:$0xff]
  %v399 = vld [vmem:[%s1 + $0xbb0] sm:$0xff]
  %v400 = vld [vmem:[%s1 + $0xbb8] sm:$0xff]
  %v401 = vld [vmem:[%s1 + $0xbc0] sm:$0xff]
  %v402 = vld [vmem:[%s1 + $0xbc8] sm:$0xff]
  %v403 = vld [vmem:[%s1 + $0xbd0] sm:$0xff]
  %v404 = vld [vmem:[%s1 + $0xbd8] sm:$0xff]
  %v405 = vld [vmem:[%s1 + $0xbe0] sm:$0xff]
  %v406 = vld [vmem:[%s1 + $0xbe8] sm:$0xff]
  %v407 = vld [vmem:[%s1 + $0xbf0] sm:$0xff]
  %v408 = vld [vmem:[%s1 + $0xbf8] sm:$0xff]
  %v409 = vld [vmem:[%s1 + $0xc00] sm:$0xff]
  %v410 = vld [vmem:[%s1 + $0xc08] sm:$0xff]
  %v411 = vld [vmem:[%s1 + $0xc10] sm:$0xff]
  %v412 = vld [vmem:[%s1 + $0xc18] sm:$0xff]
  %v413 = vld [vmem:[%s1 + $0xc20] sm:$0xff]
  %v414 = vld [vmem:[%s1 + $0xc28] sm:$0xff]
  %v415 = vld [vmem:[%s1 + $0xc30] sm:$0xff]
  %v416 = vld [vmem:[%s1 + $0xc38] sm:$0xff]
  %v417 = vld [vmem:[%s1 + $0xc40] sm:$0xff]
  %v418 = vld [vmem:[%s1 + $0xc48] sm:$0xff]
  %v419 = vld [vmem:[%s1 + $0xc50] sm:$0xff]
  %v420 = vld [vmem:[%s1 + $0xc58] sm:$0xff]
  %v421 = vld [vmem:[%s1 + $0xc60] sm:$0xff]
  %v422 = vld [vmem:[%s1 + $0xc68] sm:$0xff]
  %v423 = vld [vmem:[%s1 + $0xc70] sm:$0xff]
  %v424 = vld [vmem:[%s1 + $0xc78] sm:$0xff]
  %v425 = vld [vmem:[%s2] sm:$0xff]
  %v427 = vlaneseq
  %v428 = vshrl.u32 %v427, 7
  %v429 = vsub.s32 0, %v428
  %v430 = vrot.slane %v425, %v429
  %v431 = vlaneseq
  %v432 = vshrl.u32 %v431, 7
  %v433 = vsub.s32 1, %v432
  %v434 = vrot.slane %v425, %v433
  %v435 = vlaneseq
  %v436 = vshrl.u32 %v435, 7
  %v437 = vsub.s32 2, %v436
  %v438 = vrot.slane %v425, %v437
  %v439 = vlaneseq
  %v440 = vshrl.u32 %v439, 7
  %v441 = vsub.s32 3, %v440
  %v442 = vrot.slane %v425, %v441
  %v443 = vlaneseq
  %v444 = vshrl.u32 %v443, 7
  %v445 = vsub.s32 4, %v444
  %v446 = vrot.slane %v425, %v445
  %v447 = vlaneseq
  %v448 = vshrl.u32 %v447, 7
  %v449 = vsub.s32 5, %v448
  %v450 = vrot.slane %v425, %v449
  %v451 = vlaneseq
  %v452 = vshrl.u32 %v451, 7
  %v453 = vsub.s32 6, %v452
  %v454 = vrot.slane %v425, %v453
  %v455 = vlaneseq
  %v456 = vshrl.u32 %v455, 7
  %v457 = vsub.s32 7, %v456
  %v458 = vrot.slane %v425, %v457
  %v471 = vunpack.c.l.b16 %v21
  %v472 = vunpack.c.h.b16 %v21
  %v473 = vunpack.c.l.b16 %v22
  %v474 = vunpack.c.h.b16 %v22
  %v475 = vunpack.c.l.b16 %v23
  %v476 = vunpack.c.h.b16 %v23
  %v477 = vunpack.c.l.b16 %v24
  %v478 = vpack.c.b16 %v471, %v471
  %v479 = vpack.c.b16 %v472, %v472
  %v480 = vpack.c.b16 %v473, %v473
  %v481 = vpack.c.b16 %v474, %v474
  %v482 = vpack.c.b16 %v475, %v475
  %v483 = vpack.c.b16 %v476, %v476
  %v484 = vpack.c.b16 %v477, %v477
  %v891 = vunpack.c.l.b16 %v25
  %v892 = vunpack.c.h.b16 %v25
  %v893 = vunpack.c.l.b16 %v26
  %v894 = vunpack.c.h.b16 %v26
  %v895 = vunpack.c.l.b16 %v27
  %v896 = vunpack.c.h.b16 %v27
  %v897 = vunpack.c.l.b16 %v28
  %v898 = vunpack.c.h.b16 %v28
  %v899 = vunpack.c.l.b16 %v29
  %v900 = vunpack.c.h.b16 %v29
  %v901 = vunpack.c.l.b16 %v30
  %v902 = vunpack.c.h.b16 %v30
  %v903 = vunpack.c.l.b16 %v31
  %v904 = vunpack.c.h.b16 %v31
  %v905 = vunpack.c.l.b16 %v32
  %v906 = vunpack.c.h.b16 %v32
  %v907 = vunpack.c.l.b16 %v33
  %v908 = vunpack.c.h.b16 %v33
  %v909 = vunpack.c.l.b16 %v34
  %v910 = vunpack.c.h.b16 %v34
  %v911 = vunpack.c.l.b16 %v35
  %v912 = vunpack.c.h.b16 %v35
  %v913 = vunpack.c.l.b16 %v36
  %v914 = vunpack.c.h.b16 %v36
  %v915 = vunpack.c.l.b16 %v37
  %v916 = vunpack.c.h.b16 %v37
  %v917 = vunpack.c.l.b16 %v38
  %v918 = vunpack.c.h.b16 %v38
  %v919 = vunpack.c.l.b16 %v39
  %v920 = vunpack.c.h.b16 %v39
  %v921 = vunpack.c.l.b16 %v40
  %v922 = vunpack.c.h.b16 %v40
  %v923 = vunpack.c.l.b16 %v41
  %v924 = vunpack.c.h.b16 %v41
  %v925 = vunpack.c.l.b16 %v42
  %v926 = vunpack.c.h.b16 %v42
  %v927 = vunpack.c.l.b16 %v43
  %v928 = vunpack.c.h.b16 %v43
  %v929 = vunpack.c.l.b16 %v44
  %v930 = vunpack.c.h.b16 %v44
  %v931 = vunpack.c.l.b16 %v45
  %v932 = vunpack.c.h.b16 %v45
  %v933 = vunpack.c.l.b16 %v46
  %v934 = vunpack.c.h.b16 %v46
  %v935 = vunpack.c.l.b16 %v47
  %v936 = vunpack.c.h.b16 %v47
  %v937 = vunpack.c.l.b16 %v48
  %v938 = vunpack.c.h.b16 %v48
  %v939 = vunpack.c.l.b16 %v49
  %v940 = vunpack.c.h.b16 %v49
  %v941 = vunpack.c.l.b16 %v50
  %v942 = vunpack.c.h.b16 %v50
  %v943 = vunpack.c.l.b16 %v51
  %v944 = vunpack.c.h.b16 %v51
  %v945 = vunpack.c.l.b16 %v52
  %v946 = vunpack.c.h.b16 %v52
  %v947 = vunpack.c.l.b16 %v53
  %v948 = vunpack.c.h.b16 %v53
  %v949 = vunpack.c.l.b16 %v54
  %v950 = vunpack.c.h.b16 %v54
  %v951 = vunpack.c.l.b16 %v55
  %v952 = vunpack.c.h.b16 %v55
  %v953 = vunpack.c.l.b16 %v56
  %v954 = vunpack.c.h.b16 %v56
  %v955 = vunpack.c.l.b16 %v57
  %v956 = vunpack.c.h.b16 %v57
  %v957 = vunpack.c.l.b16 %v58
  %v958 = vunpack.c.h.b16 %v58
  %v959 = vunpack.c.l.b16 %v59
  %v960 = vunpack.c.h.b16 %v59
  %v961 = vunpack.c.l.b16 %v60
  %v962 = vunpack.c.h.b16 %v60
  %v963 = vunpack.c.l.b16 %v61
  %v964 = vunpack.c.h.b16 %v61
  %v965 = vunpack.c.l.b16 %v62
  %v966 = vunpack.c.h.b16 %v62
  %v967 = vunpack.c.l.b16 %v63
  %v968 = vunpack.c.h.b16 %v63
  %v969 = vunpack.c.l.b16 %v64
  %v970 = vunpack.c.h.b16 %v64
  %v971 = vunpack.c.l.b16 %v65
  %v972 = vunpack.c.h.b16 %v65
  %v973 = vunpack.c.l.b16 %v66
  %v974 = vunpack.c.h.b16 %v66
  %v975 = vunpack.c.l.b16 %v67
  %v976 = vunpack.c.h.b16 %v67
  %v977 = vunpack.c.l.b16 %v68
  %v978 = vunpack.c.h.b16 %v68
  %v979 = vunpack.c.l.b16 %v69
  %v980 = vunpack.c.h.b16 %v69
  %v981 = vunpack.c.l.b16 %v70
  %v982 = vunpack.c.h.b16 %v70
  %v983 = vunpack.c.l.b16 %v71
  %v984 = vunpack.c.h.b16 %v71
  %v985 = vunpack.c.l.b16 %v72
  %v986 = vunpack.c.h.b16 %v72
  %v987 = vunpack.c.l.b16 %v73
  %v988 = vunpack.c.h.b16 %v73
  %v989 = vunpack.c.l.b16 %v74
  %v990 = vunpack.c.h.b16 %v74
  %v991 = vunpack.c.l.b16 %v75
  %v992 = vunpack.c.h.b16 %v75
  %v993 = vunpack.c.l.b16 %v76
  %v994 = vunpack.c.h.b16 %v76
  %v995 = vunpack.c.l.b16 %v77
  %v996 = vunpack.c.h.b16 %v77
  %v997 = vunpack.c.l.b16 %v78
  %v998 = vunpack.c.h.b16 %v78
  %v999 = vunpack.c.l.b16 %v79
  %v1000 = vunpack.c.h.b16 %v79
  %v1001 = vunpack.c.l.b16 %v80
  %v1002 = vunpack.c.h.b16 %v80
  %v1003 = vunpack.c.l.b16 %v81
  %v1004 = vunpack.c.h.b16 %v81
  %v1005 = vunpack.c.l.b16 %v82
  %v1006 = vunpack.c.h.b16 %v82
  %v1007 = vunpack.c.l.b16 %v83
  %v1008 = vunpack.c.h.b16 %v83
  %v1009 = vunpack.c.l.b16 %v84
  %v1010 = vunpack.c.h.b16 %v84
  %v1011 = vunpack.c.l.b16 %v85
  %v1012 = vunpack.c.h.b16 %v85
  %v1013 = vunpack.c.l.b16 %v86
  %v1014 = vunpack.c.h.b16 %v86
  %v1015 = vunpack.c.l.b16 %v87
  %v1016 = vunpack.c.h.b16 %v87
  %v1017 = vunpack.c.l.b16 %v88
  %v1018 = vunpack.c.h.b16 %v88
  %v1019 = vunpack.c.l.b16 %v89
  %v1020 = vunpack.c.h.b16 %v89
  %v1021 = vunpack.c.l.b16 %v90
  %v1022 = vunpack.c.h.b16 %v90
  %v1023 = vunpack.c.l.b16 %v91
  %v1024 = vunpack.c.h.b16 %v91
  %v1025 = vunpack.c.l.b16 %v92
  %v1026 = vunpack.c.h.b16 %v92
  %v1027 = vunpack.c.l.b16 %v93
  %v1028 = vunpack.c.h.b16 %v93
  %v1029 = vunpack.c.l.b16 %v94
  %v1030 = vunpack.c.h.b16 %v94
  %v1031 = vunpack.c.l.b16 %v95
  %v1032 = vunpack.c.h.b16 %v95
  %v1033 = vunpack.c.l.b16 %v96
  %v1034 = vunpack.c.h.b16 %v96
  %v1035 = vunpack.c.l.b16 %v97
  %v1036 = vunpack.c.h.b16 %v97
  %v1037 = vunpack.c.l.b16 %v98
  %v1038 = vunpack.c.h.b16 %v98
  %v1039 = vunpack.c.l.b16 %v99
  %v1040 = vunpack.c.h.b16 %v99
  %v1041 = vunpack.c.l.b16 %v100
  %v1042 = vunpack.c.h.b16 %v100
  %v1043 = vunpack.c.l.b16 %v101
  %v1044 = vunpack.c.h.b16 %v101
  %v1045 = vunpack.c.l.b16 %v102
  %v1046 = vunpack.c.h.b16 %v102
  %v1047 = vunpack.c.l.b16 %v103
  %v1048 = vunpack.c.h.b16 %v103
  %v1049 = vunpack.c.l.b16 %v104
  %v1050 = vunpack.c.h.b16 %v104
  %v1051 = vunpack.c.l.b16 %v105
  %v1052 = vunpack.c.h.b16 %v105
  %v1053 = vunpack.c.l.b16 %v106
  %v1054 = vunpack.c.h.b16 %v106
  %v1055 = vunpack.c.l.b16 %v107
  %v1056 = vunpack.c.h.b16 %v107
  %v1057 = vunpack.c.l.b16 %v108
  %v1058 = vunpack.c.h.b16 %v108
  %v1059 = vunpack.c.l.b16 %v109
  %v1060 = vunpack.c.h.b16 %v109
  %v1061 = vunpack.c.l.b16 %v110
  %v1062 = vunpack.c.h.b16 %v110
  %v1063 = vunpack.c.l.b16 %v111
  %v1064 = vunpack.c.h.b16 %v111
  %v1065 = vunpack.c.l.b16 %v112
  %v1066 = vunpack.c.h.b16 %v112
  %v1067 = vunpack.c.l.b16 %v113
  %v1068 = vunpack.c.h.b16 %v113
  %v1069 = vunpack.c.l.b16 %v114
  %v1070 = vunpack.c.h.b16 %v114
  %v1071 = vunpack.c.l.b16 %v115
  %v1072 = vunpack.c.h.b16 %v115
  %v1073 = vunpack.c.l.b16 %v116
  %v1074 = vunpack.c.h.b16 %v116
  %v1075 = vunpack.c.l.b16 %v117
  %v1076 = vunpack.c.h.b16 %v117
  %v1077 = vunpack.c.l.b16 %v118
  %v1078 = vunpack.c.h.b16 %v118
  %v1079 = vunpack.c.l.b16 %v119
  %v1080 = vunpack.c.h.b16 %v119
  %v1081 = vunpack.c.l.b16 %v120
  %v1082 = vunpack.c.h.b16 %v120
  %v1083 = vunpack.c.l.b16 %v121
  %v1084 = vunpack.c.h.b16 %v121
  %v1085 = vunpack.c.l.b16 %v122
  %v1086 = vunpack.c.h.b16 %v122
  %v1087 = vunpack.c.l.b16 %v123
  %v1088 = vunpack.c.h.b16 %v123
  %v1089 = vunpack.c.l.b16 %v124
  %v1090 = vunpack.c.h.b16 %v124
  %v1091 = vunpack.c.l.b16 %v125
  %v1092 = vunpack.c.h.b16 %v125
  %v1093 = vunpack.c.l.b16 %v126
  %v1094 = vunpack.c.h.b16 %v126
  %v1095 = vunpack.c.l.b16 %v127
  %v1096 = vunpack.c.h.b16 %v127
  %v1097 = vunpack.c.l.b16 %v128
  %v1098 = vunpack.c.h.b16 %v128
  %v1099 = vunpack.c.l.b16 %v129
  %v1100 = vunpack.c.h.b16 %v129
  %v1101 = vunpack.c.l.b16 %v130
  %v1102 = vunpack.c.h.b16 %v130
  %v1103 = vunpack.c.l.b16 %v131
  %v1104 = vunpack.c.h.b16 %v131
  %v1105 = vunpack.c.l.b16 %v132
  %v1106 = vunpack.c.h.b16 %v132
  %v1107 = vunpack.c.l.b16 %v133
  %v1108 = vunpack.c.h.b16 %v133
  %v1109 = vunpack.c.l.b16 %v134
  %v1110 = vunpack.c.h.b16 %v134
  %v1111 = vunpack.c.l.b16 %v135
  %v1112 = vunpack.c.h.b16 %v135
  %v1113 = vunpack.c.l.b16 %v136
  %v1114 = vunpack.c.h.b16 %v136
  %v1115 = vunpack.c.l.b16 %v137
  %v1116 = vunpack.c.h.b16 %v137
  %v1117 = vunpack.c.l.b16 %v138
  %v1118 = vunpack.c.h.b16 %v138
  %v1119 = vunpack.c.l.b16 %v139
  %v1120 = vunpack.c.h.b16 %v139
  %v1121 = vunpack.c.l.b16 %v140
  %v1122 = vunpack.c.h.b16 %v140
  %v1123 = vunpack.c.l.b16 %v141
  %v1124 = vunpack.c.h.b16 %v141
  %v1125 = vunpack.c.l.b16 %v142
  %v1126 = vunpack.c.h.b16 %v142
  %v1127 = vunpack.c.l.b16 %v143
  %v1128 = vunpack.c.h.b16 %v143
  %v1129 = vunpack.c.l.b16 %v144
  %v1130 = vunpack.c.h.b16 %v144
  %v1131 = vunpack.c.l.b16 %v145
  %v1132 = vunpack.c.h.b16 %v145
  %v1133 = vunpack.c.l.b16 %v146
  %v1134 = vunpack.c.h.b16 %v146
  %v1135 = vunpack.c.l.b16 %v147
  %v1136 = vunpack.c.h.b16 %v147
  %v1137 = vunpack.c.l.b16 %v148
  %v1138 = vunpack.c.h.b16 %v148
  %v1139 = vunpack.c.l.b16 %v149
  %v1140 = vunpack.c.h.b16 %v149
  %v1141 = vunpack.c.l.b16 %v150
  %v1142 = vunpack.c.h.b16 %v150
  %v1143 = vunpack.c.l.b16 %v151
  %v1144 = vunpack.c.h.b16 %v151
  %v1145 = vunpack.c.l.b16 %v152
  %v1146 = vunpack.c.h.b16 %v152
  %v1147 = vunpack.c.l.b16 %v153
  %v1148 = vunpack.c.h.b16 %v153
  %v1149 = vunpack.c.l.b16 %v154
  %v1150 = vunpack.c.h.b16 %v154
  %v1151 = vunpack.c.l.b16 %v155
  %v1152 = vunpack.c.h.b16 %v155
  %v1153 = vunpack.c.l.b16 %v156
  %v1154 = vunpack.c.h.b16 %v156
  %v1155 = vunpack.c.l.b16 %v157
  %v1156 = vunpack.c.h.b16 %v157
  %v1157 = vunpack.c.l.b16 %v158
  %v1158 = vunpack.c.h.b16 %v158
  %v1159 = vunpack.c.l.b16 %v159
  %v1160 = vunpack.c.h.b16 %v159
  %v1161 = vunpack.c.l.b16 %v160
  %v1162 = vunpack.c.h.b16 %v160
  %v1163 = vunpack.c.l.b16 %v161
  %v1164 = vunpack.c.h.b16 %v161
  %v1165 = vunpack.c.l.b16 %v162
  %v1166 = vunpack.c.h.b16 %v162
  %v1167 = vunpack.c.l.b16 %v163
  %v1168 = vunpack.c.h.b16 %v163
  %v1169 = vunpack.c.l.b16 %v164
  %v1170 = vunpack.c.h.b16 %v164
  %v1171 = vunpack.c.l.b16 %v165
  %v1172 = vunpack.c.h.b16 %v165
  %v1173 = vunpack.c.l.b16 %v166
  %v1174 = vunpack.c.h.b16 %v166
  %v1175 = vunpack.c.l.b16 %v167
  %v1176 = vunpack.c.h.b16 %v167
  %v1177 = vunpack.c.l.b16 %v168
  %v1178 = vunpack.c.h.b16 %v168
  %v1179 = vunpack.c.l.b16 %v169
  %v1180 = vunpack.c.h.b16 %v169
  %v1181 = vunpack.c.l.b16 %v170
  %v1182 = vunpack.c.h.b16 %v170
  %v1183 = vunpack.c.l.b16 %v171
  %v1184 = vunpack.c.h.b16 %v171
  %v1185 = vunpack.c.l.b16 %v172
  %v1186 = vunpack.c.h.b16 %v172
  %v1187 = vunpack.c.l.b16 %v173
  %v1188 = vunpack.c.h.b16 %v173
  %v1189 = vunpack.c.l.b16 %v174
  %v1190 = vunpack.c.h.b16 %v174
  %v1191 = vunpack.c.l.b16 %v175
  %v1192 = vunpack.c.h.b16 %v175
  %v1193 = vunpack.c.l.b16 %v176
  %v1194 = vunpack.c.h.b16 %v176
  %v1195 = vunpack.c.l.b16 %v177
  %v1196 = vunpack.c.h.b16 %v177
  %v1197 = vunpack.c.l.b16 %v178
  %v1198 = vunpack.c.h.b16 %v178
  %v1199 = vunpack.c.l.b16 %v179
  %v1200 = vunpack.c.h.b16 %v179
  %v1201 = vunpack.c.l.b16 %v180
  %v1202 = vunpack.c.h.b16 %v180
  %v1203 = vunpack.c.l.b16 %v181
  %v1204 = vunpack.c.h.b16 %v181
  %v1205 = vunpack.c.l.b16 %v182
  %v1206 = vunpack.c.h.b16 %v182
  %v1207 = vunpack.c.l.b16 %v183
  %v1208 = vunpack.c.h.b16 %v183
  %v1209 = vunpack.c.l.b16 %v184
  %v1210 = vunpack.c.h.b16 %v184
  %v1211 = vunpack.c.l.b16 %v185
  %v1212 = vunpack.c.h.b16 %v185
  %v1213 = vunpack.c.l.b16 %v186
  %v1214 = vunpack.c.h.b16 %v186
  %v1215 = vunpack.c.l.b16 %v187
  %v1216 = vunpack.c.h.b16 %v187
  %v1217 = vunpack.c.l.b16 %v188
  %v1218 = vunpack.c.h.b16 %v188
  %v1219 = vunpack.c.l.b16 %v189
  %v1220 = vunpack.c.h.b16 %v189
  %v1221 = vunpack.c.l.b16 %v190
  %v1222 = vunpack.c.h.b16 %v190
  %v1223 = vunpack.c.l.b16 %v191
  %v1224 = vunpack.c.h.b16 %v191
  %v1225 = vunpack.c.l.b16 %v192
  %v1226 = vunpack.c.h.b16 %v192
  %v1227 = vunpack.c.l.b16 %v193
  %v1228 = vunpack.c.h.b16 %v193
  %v1229 = vunpack.c.l.b16 %v194
  %v1230 = vunpack.c.h.b16 %v194
  %v1231 = vunpack.c.l.b16 %v195
  %v1232 = vunpack.c.h.b16 %v195
  %v1233 = vunpack.c.l.b16 %v196
  %v1234 = vunpack.c.h.b16 %v196
  %v1235 = vunpack.c.l.b16 %v197
  %v1236 = vunpack.c.h.b16 %v197
  %v1237 = vunpack.c.l.b16 %v198
  %v1238 = vunpack.c.h.b16 %v198
  %v1239 = vunpack.c.l.b16 %v199
  %v1240 = vunpack.c.h.b16 %v199
  %v1241 = vunpack.c.l.b16 %v200
  %v1242 = vunpack.c.h.b16 %v200
  %v1243 = vunpack.c.l.b16 %v201
  %v1244 = vunpack.c.h.b16 %v201
  %v1245 = vunpack.c.l.b16 %v202
  %v1246 = vunpack.c.h.b16 %v202
  %v1247 = vunpack.c.l.b16 %v203
  %v1248 = vunpack.c.h.b16 %v203
  %v1249 = vunpack.c.l.b16 %v204
  %v1250 = vunpack.c.h.b16 %v204
  %v1251 = vunpack.c.l.b16 %v205
  %v1252 = vunpack.c.h.b16 %v205
  %v1253 = vunpack.c.l.b16 %v206
  %v1254 = vunpack.c.h.b16 %v206
  %v1255 = vunpack.c.l.b16 %v207
  %v1256 = vunpack.c.h.b16 %v207
  %v1257 = vunpack.c.l.b16 %v208
  %v1258 = vunpack.c.h.b16 %v208
  %v1259 = vunpack.c.l.b16 %v209
  %v1260 = vunpack.c.h.b16 %v209
  %v1261 = vunpack.c.l.b16 %v210
  %v1262 = vunpack.c.h.b16 %v210
  %v1263 = vunpack.c.l.b16 %v211
  %v1264 = vunpack.c.h.b16 %v211
  %v1265 = vunpack.c.l.b16 %v212
  %v1266 = vunpack.c.h.b16 %v212
  %v1267 = vunpack.c.l.b16 %v213
  %v1268 = vunpack.c.h.b16 %v213
  %v1269 = vunpack.c.l.b16 %v214
  %v1270 = vunpack.c.h.b16 %v214
  %v1271 = vunpack.c.l.b16 %v215
  %v1272 = vunpack.c.h.b16 %v215
  %v1273 = vunpack.c.l.b16 %v216
  %v1274 = vunpack.c.h.b16 %v216
  %v1275 = vunpack.c.l.b16 %v217
  %v1276 = vunpack.c.h.b16 %v217
  %v1277 = vunpack.c.l.b16 %v218
  %v1278 = vunpack.c.h.b16 %v218
  %v1279 = vunpack.c.l.b16 %v219
  %v1280 = vunpack.c.h.b16 %v219
  %v1281 = vunpack.c.l.b16 %v220
  %v1282 = vunpack.c.h.b16 %v220
  %v1283 = vunpack.c.l.b16 %v221
  %v1284 = vunpack.c.h.b16 %v221
  %v1285 = vunpack.c.l.b16 %v222
  %v1286 = vunpack.c.h.b16 %v222
  %v1287 = vunpack.c.l.b16 %v223
  %v1288 = vunpack.c.h.b16 %v223
  %v1289 = vunpack.c.l.b16 %v224
  %v1290 = vunpack.c.h.b16 %v224
  %v1291 = vunpack.c.l.b16 %v225
  %v1292 = vunpack.c.h.b16 %v225
  %v1293 = vunpack.c.l.b16 %v226
  %v1294 = vunpack.c.h.b16 %v226
  %v1295 = vunpack.c.l.b16 %v227
  %v1296 = vunpack.c.h.b16 %v227
  %v1297 = vunpack.c.l.b16 %v228
  %v1298 = vunpack.c.h.b16 %v228
  %v1299 = vunpack.c.l.b16 %v229
  %v1300 = vunpack.c.h.b16 %v229
  %v1301 = vunpack.c.l.b16 %v230
  %v1302 = vunpack.c.h.b16 %v230
  %v1303 = vunpack.c.l.b16 %v231
  %v1304 = vunpack.c.h.b16 %v231
  %v1305 = vunpack.c.l.b16 %v232
  %v1306 = vunpack.c.h.b16 %v232
  %v1307 = vunpack.c.l.b16 %v233
  %v1308 = vunpack.c.h.b16 %v233
  %v1309 = vunpack.c.l.b16 %v234
  %v1310 = vunpack.c.h.b16 %v234
  %v1311 = vunpack.c.l.b16 %v235
  %v1312 = vunpack.c.h.b16 %v235
  %v1313 = vunpack.c.l.b16 %v236
  %v1314 = vunpack.c.h.b16 %v236
  %v1315 = vunpack.c.l.b16 %v237
  %v1316 = vunpack.c.h.b16 %v237
  %v1317 = vunpack.c.l.b16 %v238
  %v1318 = vunpack.c.h.b16 %v238
  %v1319 = vunpack.c.l.b16 %v239
  %v1320 = vunpack.c.h.b16 %v239
  %v1321 = vunpack.c.l.b16 %v240
  %v1322 = vunpack.c.h.b16 %v240
  %v1323 = vunpack.c.l.b16 %v241
  %v1324 = vunpack.c.h.b16 %v241
  %v1325 = vunpack.c.l.b16 %v242
  %v1326 = vunpack.c.h.b16 %v242
  %v1327 = vunpack.c.l.b16 %v243
  %v1328 = vunpack.c.h.b16 %v243
  %v1329 = vunpack.c.l.b16 %v244
  %v1330 = vunpack.c.h.b16 %v244
  %v1331 = vunpack.c.l.b16 %v245
  %v1332 = vunpack.c.h.b16 %v245
  %v1333 = vunpack.c.l.b16 %v246
  %v1334 = vunpack.c.h.b16 %v246
  %v1335 = vunpack.c.l.b16 %v247
  %v1336 = vunpack.c.h.b16 %v247
  %v1337 = vunpack.c.l.b16 %v248
  %v1338 = vunpack.c.h.b16 %v248
  %v1339 = vunpack.c.l.b16 %v249
  %v1340 = vunpack.c.h.b16 %v249
  %v1341 = vunpack.c.l.b16 %v250
  %v1342 = vunpack.c.h.b16 %v250
  %v1343 = vunpack.c.l.b16 %v251
  %v1344 = vunpack.c.h.b16 %v251
  %v1345 = vunpack.c.l.b16 %v252
  %v1346 = vunpack.c.h.b16 %v252
  %v1347 = vunpack.c.l.b16 %v253
  %v1348 = vunpack.c.h.b16 %v253
  %v1349 = vunpack.c.l.b16 %v254
  %v1350 = vunpack.c.h.b16 %v254
  %v1351 = vunpack.c.l.b16 %v255
  %v1352 = vunpack.c.h.b16 %v255
  %v1353 = vunpack.c.l.b16 %v256
  %v1354 = vunpack.c.h.b16 %v256
  %v1355 = vunpack.c.l.b16 %v257
  %v1356 = vunpack.c.h.b16 %v257
  %v1357 = vunpack.c.l.b16 %v258
  %v1358 = vunpack.c.h.b16 %v258
  %v1359 = vunpack.c.l.b16 %v259
  %v1360 = vunpack.c.h.b16 %v259
  %v1361 = vunpack.c.l.b16 %v260
  %v1362 = vunpack.c.h.b16 %v260
  %v1363 = vunpack.c.l.b16 %v261
  %v1364 = vunpack.c.h.b16 %v261
  %v1365 = vunpack.c.l.b16 %v262
  %v1366 = vunpack.c.h.b16 %v262
  %v1367 = vunpack.c.l.b16 %v263
  %v1368 = vunpack.c.h.b16 %v263
  %v1369 = vunpack.c.l.b16 %v264
  %v1370 = vunpack.c.h.b16 %v264
  %v1371 = vunpack.c.l.b16 %v265
  %v1372 = vunpack.c.h.b16 %v265
  %v1373 = vunpack.c.l.b16 %v266
  %v1374 = vunpack.c.h.b16 %v266
  %v1375 = vunpack.c.l.b16 %v267
  %v1376 = vunpack.c.h.b16 %v267
  %v1377 = vunpack.c.l.b16 %v268
  %v1378 = vunpack.c.h.b16 %v268
  %v1379 = vunpack.c.l.b16 %v269
  %v1380 = vunpack.c.h.b16 %v269
  %v1381 = vunpack.c.l.b16 %v270
  %v1382 = vunpack.c.h.b16 %v270
  %v1383 = vunpack.c.l.b16 %v271
  %v1384 = vunpack.c.h.b16 %v271
  %v1385 = vunpack.c.l.b16 %v272
  %v1386 = vunpack.c.h.b16 %v272
  %v1387 = vunpack.c.l.b16 %v273
  %v1388 = vunpack.c.h.b16 %v273
  %v1389 = vunpack.c.l.b16 %v274
  %v1390 = vunpack.c.h.b16 %v274
  %v1391 = vunpack.c.l.b16 %v275
  %v1392 = vunpack.c.h.b16 %v275
  %v1393 = vunpack.c.l.b16 %v276
  %v1394 = vunpack.c.h.b16 %v276
  %v1395 = vunpack.c.l.b16 %v277
  %v1396 = vunpack.c.h.b16 %v277
  %v1397 = vunpack.c.l.b16 %v278
  %v1398 = vunpack.c.h.b16 %v278
  %v1399 = vunpack.c.l.b16 %v279
  %v1400 = vunpack.c.h.b16 %v279
  %v1401 = vunpack.c.l.b16 %v280
  %v1402 = vunpack.c.h.b16 %v280
  %v1403 = vunpack.c.l.b16 %v281
  %v1404 = vunpack.c.h.b16 %v281
  %v1405 = vunpack.c.l.b16 %v282
  %v1406 = vunpack.c.h.b16 %v282
  %v1407 = vunpack.c.l.b16 %v283
  %v1408 = vunpack.c.h.b16 %v283
  %v1409 = vunpack.c.l.b16 %v284
  %v1410 = vunpack.c.h.b16 %v284
  %v1411 = vunpack.c.l.b16 %v285
  %v1412 = vunpack.c.h.b16 %v285
  %v1413 = vunpack.c.l.b16 %v286
  %v1414 = vunpack.c.h.b16 %v286
  %v1415 = vunpack.c.l.b16 %v287
  %v1416 = vunpack.c.h.b16 %v287
  %v1417 = vunpack.c.l.b16 %v288
  %v1418 = vunpack.c.h.b16 %v288
  %v1419 = vunpack.c.l.b16 %v289
  %v1420 = vunpack.c.h.b16 %v289
  %v1421 = vunpack.c.l.b16 %v290
  %v1422 = vunpack.c.h.b16 %v290
  %v1423 = vunpack.c.l.b16 %v291
  %v1424 = vunpack.c.h.b16 %v291
  %v1425 = vunpack.c.l.b16 %v292
  %v1426 = vunpack.c.h.b16 %v292
  %v1427 = vunpack.c.l.b16 %v293
  %v1428 = vunpack.c.h.b16 %v293
  %v1429 = vunpack.c.l.b16 %v294
  %v1430 = vunpack.c.h.b16 %v294
  %v1431 = vunpack.c.l.b16 %v295
  %v1432 = vunpack.c.h.b16 %v295
  %v1433 = vunpack.c.l.b16 %v296
  %v1434 = vunpack.c.h.b16 %v296
  %v1435 = vunpack.c.l.b16 %v297
  %v1436 = vunpack.c.h.b16 %v297
  %v1437 = vunpack.c.l.b16 %v298
  %v1438 = vunpack.c.h.b16 %v298
  %v1439 = vunpack.c.l.b16 %v299
  %v1440 = vunpack.c.h.b16 %v299
  %v1441 = vunpack.c.l.b16 %v300
  %v1442 = vunpack.c.h.b16 %v300
  %v1443 = vunpack.c.l.b16 %v301
  %v1444 = vunpack.c.h.b16 %v301
  %v1445 = vunpack.c.l.b16 %v302
  %v1446 = vunpack.c.h.b16 %v302
  %v1447 = vunpack.c.l.b16 %v303
  %v1448 = vunpack.c.h.b16 %v303
  %v1449 = vunpack.c.l.b16 %v304
  %v1450 = vunpack.c.h.b16 %v304
  %v1451 = vunpack.c.l.b16 %v305
  %v1452 = vunpack.c.h.b16 %v305
  %v1453 = vunpack.c.l.b16 %v306
  %v1454 = vunpack.c.h.b16 %v306
  %v1455 = vunpack.c.l.b16 %v307
  %v1456 = vunpack.c.h.b16 %v307
  %v1457 = vunpack.c.l.b16 %v308
  %v1458 = vunpack.c.h.b16 %v308
  %v1459 = vunpack.c.l.b16 %v309
  %v1460 = vunpack.c.h.b16 %v309
  %v1461 = vunpack.c.l.b16 %v310
  %v1462 = vunpack.c.h.b16 %v310
  %v1463 = vunpack.c.l.b16 %v311
  %v1464 = vunpack.c.h.b16 %v311
  %v1465 = vunpack.c.l.b16 %v312
  %v1466 = vunpack.c.h.b16 %v312
  %v1467 = vunpack.c.l.b16 %v313
  %v1468 = vunpack.c.h.b16 %v313
  %v1469 = vunpack.c.l.b16 %v314
  %v1470 = vunpack.c.h.b16 %v314
  %v1471 = vunpack.c.l.b16 %v315
  %v1472 = vunpack.c.h.b16 %v315
  %v1473 = vunpack.c.l.b16 %v316
  %v1474 = vunpack.c.h.b16 %v316
  %v1475 = vunpack.c.l.b16 %v317
  %v1476 = vunpack.c.h.b16 %v317
  %v1477 = vunpack.c.l.b16 %v318
  %v1478 = vunpack.c.h.b16 %v318
  %v1479 = vunpack.c.l.b16 %v319
  %v1480 = vunpack.c.h.b16 %v319
  %v1481 = vunpack.c.l.b16 %v320
  %v1482 = vunpack.c.h.b16 %v320
  %v1483 = vunpack.c.l.b16 %v321
  %v1484 = vunpack.c.h.b16 %v321
  %v1485 = vunpack.c.l.b16 %v322
  %v1486 = vunpack.c.h.b16 %v322
  %v1487 = vunpack.c.l.b16 %v323
  %v1488 = vunpack.c.h.b16 %v323
  %v1489 = vunpack.c.l.b16 %v324
  %v1490 = vunpack.c.h.b16 %v324
  %v1491 = vunpack.c.l.b16 %v325
  %v1492 = vunpack.c.h.b16 %v325
  %v1493 = vunpack.c.l.b16 %v326
  %v1494 = vunpack.c.h.b16 %v326
  %v1495 = vunpack.c.l.b16 %v327
  %v1496 = vunpack.c.h.b16 %v327
  %v1497 = vunpack.c.l.b16 %v328
  %v1498 = vunpack.c.h.b16 %v328
  %v1499 = vunpack.c.l.b16 %v329
  %v1500 = vunpack.c.h.b16 %v329
  %v1501 = vunpack.c.l.b16 %v330
  %v1502 = vunpack.c.h.b16 %v330
  %v1503 = vunpack.c.l.b16 %v331
  %v1504 = vunpack.c.h.b16 %v331
  %v1505 = vunpack.c.l.b16 %v332
  %v1506 = vunpack.c.h.b16 %v332
  %v1507 = vunpack.c.l.b16 %v333
  %v1508 = vunpack.c.h.b16 %v333
  %v1509 = vunpack.c.l.b16 %v334
  %v1510 = vunpack.c.h.b16 %v334
  %v1511 = vunpack.c.l.b16 %v335
  %v1512 = vunpack.c.h.b16 %v335
  %v1513 = vunpack.c.l.b16 %v336
  %v1514 = vunpack.c.h.b16 %v336
  %v1515 = vunpack.c.l.b16 %v337
  %v1516 = vunpack.c.h.b16 %v337
  %v1517 = vunpack.c.l.b16 %v338
  %v1518 = vunpack.c.h.b16 %v338
  %v1519 = vunpack.c.l.b16 %v339
  %v1520 = vunpack.c.h.b16 %v339
  %v1521 = vunpack.c.l.b16 %v340
  %v1522 = vunpack.c.h.b16 %v340
  %v1523 = vunpack.c.l.b16 %v341
  %v1524 = vunpack.c.h.b16 %v341
  %v1525 = vunpack.c.l.b16 %v342
  %v1526 = vunpack.c.h.b16 %v342
  %v1527 = vunpack.c.l.b16 %v343
  %v1528 = vunpack.c.h.b16 %v343
  %v1529 = vunpack.c.l.b16 %v344
  %v1530 = vunpack.c.h.b16 %v344
  %v1531 = vunpack.c.l.b16 %v345
  %v1532 = vunpack.c.h.b16 %v345
  %v1533 = vunpack.c.l.b16 %v346
  %v1534 = vunpack.c.h.b16 %v346
  %v1535 = vunpack.c.l.b16 %v347
  %v1536 = vunpack.c.h.b16 %v347
  %v1537 = vunpack.c.l.b16 %v348
  %v1538 = vunpack.c.h.b16 %v348
  %v1539 = vunpack.c.l.b16 %v349
  %v1540 = vunpack.c.h.b16 %v349
  %v1541 = vunpack.c.l.b16 %v350
  %v1542 = vunpack.c.h.b16 %v350
  %v1543 = vunpack.c.l.b16 %v351
  %v1544 = vunpack.c.h.b16 %v351
  %v1545 = vunpack.c.l.b16 %v352
  %v1546 = vunpack.c.h.b16 %v352
  %v1547 = vunpack.c.l.b16 %v353
  %v1548 = vunpack.c.h.b16 %v353
  %v1549 = vunpack.c.l.b16 %v354
  %v1550 = vunpack.c.h.b16 %v354
  %v1551 = vunpack.c.l.b16 %v355
  %v1552 = vunpack.c.h.b16 %v355
  %v1553 = vunpack.c.l.b16 %v356
  %v1554 = vunpack.c.h.b16 %v356
  %v1555 = vunpack.c.l.b16 %v357
  %v1556 = vunpack.c.h.b16 %v357
  %v1557 = vunpack.c.l.b16 %v358
  %v1558 = vunpack.c.h.b16 %v358
  %v1559 = vunpack.c.l.b16 %v359
  %v1560 = vunpack.c.h.b16 %v359
  %v1561 = vunpack.c.l.b16 %v360
  %v1562 = vunpack.c.h.b16 %v360
  %v1563 = vunpack.c.l.b16 %v361
  %v1564 = vunpack.c.h.b16 %v361
  %v1565 = vunpack.c.l.b16 %v362
  %v1566 = vunpack.c.h.b16 %v362
  %v1567 = vunpack.c.l.b16 %v363
  %v1568 = vunpack.c.h.b16 %v363
  %v1569 = vunpack.c.l.b16 %v364
  %v1570 = vunpack.c.h.b16 %v364
  %v1571 = vunpack.c.l.b16 %v365
  %v1572 = vunpack.c.h.b16 %v365
  %v1573 = vunpack.c.l.b16 %v366
  %v1574 = vunpack.c.h.b16 %v366
  %v1575 = vunpack.c.l.b16 %v367
  %v1576 = vunpack.c.h.b16 %v367
  %v1577 = vunpack.c.l.b16 %v368
  %v1578 = vunpack.c.h.b16 %v368
  %v1579 = vunpack.c.l.b16 %v369
  %v1580 = vunpack.c.h.b16 %v369
  %v1581 = vunpack.c.l.b16 %v370
  %v1582 = vunpack.c.h.b16 %v370
  %v1583 = vunpack.c.l.b16 %v371
  %v1584 = vunpack.c.h.b16 %v371
  %v1585 = vunpack.c.l.b16 %v372
  %v1586 = vunpack.c.h.b16 %v372
  %v1587 = vunpack.c.l.b16 %v373
  %v1588 = vunpack.c.h.b16 %v373
  %v1589 = vunpack.c.l.b16 %v374
  %v1590 = vunpack.c.h.b16 %v374
  %v1591 = vunpack.c.l.b16 %v375
  %v1592 = vunpack.c.h.b16 %v375
  %v1593 = vunpack.c.l.b16 %v376
  %v1594 = vunpack.c.h.b16 %v376
  %v1595 = vunpack.c.l.b16 %v377
  %v1596 = vunpack.c.h.b16 %v377
  %v1597 = vunpack.c.l.b16 %v378
  %v1598 = vunpack.c.h.b16 %v378
  %v1599 = vunpack.c.l.b16 %v379
  %v1600 = vunpack.c.h.b16 %v379
  %v1601 = vunpack.c.l.b16 %v380
  %v1602 = vunpack.c.h.b16 %v380
  %v1603 = vunpack.c.l.b16 %v381
  %v1604 = vunpack.c.h.b16 %v381
  %v1605 = vunpack.c.l.b16 %v382
  %v1606 = vunpack.c.h.b16 %v382
  %v1607 = vunpack.c.l.b16 %v383
  %v1608 = vunpack.c.h.b16 %v383
  %v1609 = vunpack.c.l.b16 %v384
  %v1610 = vunpack.c.h.b16 %v384
  %v1611 = vunpack.c.l.b16 %v385
  %v1612 = vunpack.c.h.b16 %v385
  %v1613 = vunpack.c.l.b16 %v386
  %v1614 = vunpack.c.h.b16 %v386
  %v1615 = vunpack.c.l.b16 %v387
  %v1616 = vunpack.c.h.b16 %v387
  %v1617 = vunpack.c.l.b16 %v388
  %v1618 = vunpack.c.h.b16 %v388
  %v1619 = vunpack.c.l.b16 %v389
  %v1620 = vunpack.c.h.b16 %v389
  %v1621 = vunpack.c.l.b16 %v390
  %v1622 = vunpack.c.h.b16 %v390
  %v1623 = vunpack.c.l.b16 %v391
  %v1624 = vunpack.c.h.b16 %v391
  %v1625 = vunpack.c.l.b16 %v392
  %v1626 = vunpack.c.h.b16 %v392
  %v1627 = vunpack.c.l.b16 %v393
  %v1628 = vunpack.c.h.b16 %v393
  %v1629 = vunpack.c.l.b16 %v394
  %v1630 = vunpack.c.h.b16 %v394
  %v1631 = vunpack.c.l.b16 %v395
  %v1632 = vunpack.c.h.b16 %v395
  %v1633 = vunpack.c.l.b16 %v396
  %v1634 = vunpack.c.h.b16 %v396
  %v1635 = vunpack.c.l.b16 %v397
  %v1636 = vunpack.c.h.b16 %v397
  %v1637 = vunpack.c.l.b16 %v398
  %v1638 = vunpack.c.h.b16 %v398
  %v1639 = vunpack.c.l.b16 %v399
  %v1640 = vunpack.c.h.b16 %v399
  %v1641 = vunpack.c.l.b16 %v400
  %v1642 = vunpack.c.h.b16 %v400
  %v1643 = vunpack.c.l.b16 %v401
  %v1644 = vunpack.c.h.b16 %v401
  %v1645 = vunpack.c.l.b16 %v402
  %v1646 = vunpack.c.h.b16 %v402
  %v1647 = vunpack.c.l.b16 %v403
  %v1648 = vunpack.c.h.b16 %v403
  %v1649 = vunpack.c.l.b16 %v404
  %v1650 = vunpack.c.h.b16 %v404
  %v1651 = vunpack.c.l.b16 %v405
  %v1652 = vunpack.c.h.b16 %v405
  %v1653 = vunpack.c.l.b16 %v406
  %v1654 = vunpack.c.h.b16 %v406
  %v1655 = vunpack.c.l.b16 %v407
  %v1656 = vunpack.c.h.b16 %v407
  %v1657 = vunpack.c.l.b16 %v408
  %v1658 = vunpack.c.h.b16 %v408
  %v1659 = vunpack.c.l.b16 %v409
  %v1660 = vunpack.c.h.b16 %v409
  %v1661 = vunpack.c.l.b16 %v410
  %v1662 = vunpack.c.h.b16 %v410
  %v1663 = vunpack.c.l.b16 %v411
  %v1664 = vunpack.c.h.b16 %v411
  %v1665 = vunpack.c.l.b16 %v412
  %v1666 = vunpack.c.h.b16 %v412
  %v1667 = vunpack.c.l.b16 %v413
  %v1668 = vunpack.c.h.b16 %v413
  %v1669 = vunpack.c.l.b16 %v414
  %v1670 = vunpack.c.h.b16 %v414
  %v1671 = vunpack.c.l.b16 %v415
  %v1672 = vunpack.c.h.b16 %v415
  %v1673 = vunpack.c.l.b16 %v416
  %v1674 = vunpack.c.h.b16 %v416
  %v1675 = vunpack.c.l.b16 %v417
  %v1676 = vunpack.c.h.b16 %v417
  %v1677 = vunpack.c.l.b16 %v418
  %v1678 = vunpack.c.h.b16 %v418
  %v1679 = vunpack.c.l.b16 %v419
  %v1680 = vunpack.c.h.b16 %v419
  %v1681 = vunpack.c.l.b16 %v420
  %v1682 = vunpack.c.h.b16 %v420
  %v1683 = vunpack.c.l.b16 %v421
  %v1684 = vunpack.c.h.b16 %v421
  %v1685 = vunpack.c.l.b16 %v422
  %v1686 = vunpack.c.h.b16 %v422
  %v1687 = vunpack.c.l.b16 %v423
  %v1688 = vunpack.c.h.b16 %v423
  %v1689 = vunpack.c.l.b16 %v424
  %v1690 = vunpack.c.h.b16 %v424
  %v1691 = vpack.c.b16 %v899, %v891
  %v1692 = vpack.c.b16 %v900, %v892
  %v1693 = vpack.c.b16 %v901, %v893
  %v1694 = vpack.c.b16 %v902, %v894
  %v1695 = vpack.c.b16 %v903, %v895
  %v1696 = vpack.c.b16 %v904, %v896
  %v1697 = vpack.c.b16 %v905, %v897
  %v1698 = vpack.c.b16 %v906, %v898
  %v1699 = vpack.c.b16 %v915, %v907
  %v1700 = vpack.c.b16 %v916, %v908
  %v1701 = vpack.c.b16 %v917, %v909
  %v1702 = vpack.c.b16 %v918, %v910
  %v1703 = vpack.c.b16 %v919, %v911
  %v1704 = vpack.c.b16 %v920, %v912
  %v1705 = vpack.c.b16 %v921, %v913
  %v1706 = vpack.c.b16 %v922, %v914
  %v1707 = vpack.c.b16 %v931, %v923
  %v1708 = vpack.c.b16 %v932, %v924
  %v1709 = vpack.c.b16 %v933, %v925
  %v1710 = vpack.c.b16 %v934, %v926
  %v1711 = vpack.c.b16 %v935, %v927
  %v1712 = vpack.c.b16 %v936, %v928
  %v1713 = vpack.c.b16 %v937, %v929
  %v1714 = vpack.c.b16 %v938, %v930
  %v1715 = vpack.c.b16 %v947, %v939
  %v1716 = vpack.c.b16 %v948, %v940
  %v1717 = vpack.c.b16 %v949, %v941
  %v1718 = vpack.c.b16 %v950, %v942
  %v1719 = vpack.c.b16 %v951, %v943
  %v1720 = vpack.c.b16 %v952, %v944
  %v1721 = vpack.c.b16 %v953, %v945
  %v1722 = vpack.c.b16 %v954, %v946
  %v1723 = vpack.c.b16 %v963, %v955
  %v1724 = vpack.c.b16 %v964, %v956
  %v1725 = vpack.c.b16 %v965, %v957
  %v1726 = vpack.c.b16 %v966, %v958
  %v1727 = vpack.c.b16 %v967, %v959
  %v1728 = vpack.c.b16 %v968, %v960
  %v1729 = vpack.c.b16 %v969, %v961
  %v1730 = vpack.c.b16 %v970, %v962
  %v1731 = vpack.c.b16 %v979, %v971
  %v1732 = vpack.c.b16 %v980, %v972
  %v1733 = vpack.c.b16 %v981, %v973
  %v1734 = vpack.c.b16 %v982, %v974
  %v1735 = vpack.c.b16 %v983, %v975
  %v1736 = vpack.c.b16 %v984, %v976
  %v1737 = vpack.c.b16 %v985, %v977
  %v1738 = vpack.c.b16 %v986, %v978
  %v1739 = vpack.c.b16 %v995, %v987
  %v1740 = vpack.c.b16 %v996, %v988
  %v1741 = vpack.c.b16 %v997, %v989
  %v1742 = vpack.c.b16 %v998, %v990
  %v1743 = vpack.c.b16 %v999, %v991
  %v1744 = vpack.c.b16 %v1000, %v992
  %v1745 = vpack.c.b16 %v1001, %v993
  %v1746 = vpack.c.b16 %v1002, %v994
  %v1747 = vpack.c.b16 %v1011, %v1003
  %v1748 = vpack.c.b16 %v1012, %v1004
  %v1749 = vpack.c.b16 %v1013, %v1005
  %v1750 = vpack.c.b16 %v1014, %v1006
  %v1751 = vpack.c.b16 %v1015, %v1007
  %v1752 = vpack.c.b16 %v1016, %v1008
  %v1753 = vpack.c.b16 %v1017, %v1009
  %v1754 = vpack.c.b16 %v1018, %v1010
  %v1755 = vpack.c.b16 %v1027, %v1019
  %v1756 = vpack.c.b16 %v1028, %v1020
  %v1757 = vpack.c.b16 %v1029, %v1021
  %v1758 = vpack.c.b16 %v1030, %v1022
  %v1759 = vpack.c.b16 %v1031, %v1023
  %v1760 = vpack.c.b16 %v1032, %v1024
  %v1761 = vpack.c.b16 %v1033, %v1025
  %v1762 = vpack.c.b16 %v1034, %v1026
  %v1763 = vpack.c.b16 %v1043, %v1035
  %v1764 = vpack.c.b16 %v1044, %v1036
  %v1765 = vpack.c.b16 %v1045, %v1037
  %v1766 = vpack.c.b16 %v1046, %v1038
  %v1767 = vpack.c.b16 %v1047, %v1039
  %v1768 = vpack.c.b16 %v1048, %v1040
  %v1769 = vpack.c.b16 %v1049, %v1041
  %v1770 = vpack.c.b16 %v1050, %v1042
  %v1771 = vpack.c.b16 %v1059, %v1051
  %v1772 = vpack.c.b16 %v1060, %v1052
  %v1773 = vpack.c.b16 %v1061, %v1053
  %v1774 = vpack.c.b16 %v1062, %v1054
  %v1775 = vpack.c.b16 %v1063, %v1055
  %v1776 = vpack.c.b16 %v1064, %v1056
  %v1777 = vpack.c.b16 %v1065, %v1057
  %v1778 = vpack.c.b16 %v1066, %v1058
  %v1779 = vpack.c.b16 %v1075, %v1067
  %v1780 = vpack.c.b16 %v1076, %v1068
  %v1781 = vpack.c.b16 %v1077, %v1069
  %v1782 = vpack.c.b16 %v1078, %v1070
  %v1783 = vpack.c.b16 %v1079, %v1071
  %v1784 = vpack.c.b16 %v1080, %v1072
  %v1785 = vpack.c.b16 %v1081, %v1073
  %v1786 = vpack.c.b16 %v1082, %v1074
  %v1787 = vpack.c.b16 %v1091, %v1083
  %v1788 = vpack.c.b16 %v1092, %v1084
  %v1789 = vpack.c.b16 %v1093, %v1085
  %v1790 = vpack.c.b16 %v1094, %v1086
  %v1791 = vpack.c.b16 %v1095, %v1087
  %v1792 = vpack.c.b16 %v1096, %v1088
  %v1793 = vpack.c.b16 %v1097, %v1089
  %v1794 = vpack.c.b16 %v1098, %v1090
  %v1795 = vpack.c.b16 %v1107, %v1099
  %v1796 = vpack.c.b16 %v1108, %v1100
  %v1797 = vpack.c.b16 %v1109, %v1101
  %v1798 = vpack.c.b16 %v1110, %v1102
  %v1799 = vpack.c.b16 %v1111, %v1103
  %v1800 = vpack.c.b16 %v1112, %v1104
  %v1801 = vpack.c.b16 %v1113, %v1105
  %v1802 = vpack.c.b16 %v1114, %v1106
  %v1803 = vpack.c.b16 %v1123, %v1115
  %v1804 = vpack.c.b16 %v1124, %v1116
  %v1805 = vpack.c.b16 %v1125, %v1117
  %v1806 = vpack.c.b16 %v1126, %v1118
  %v1807 = vpack.c.b16 %v1127, %v1119
  %v1808 = vpack.c.b16 %v1128, %v1120
  %v1809 = vpack.c.b16 %v1129, %v1121
  %v1810 = vpack.c.b16 %v1130, %v1122
  %v1811 = vpack.c.b16 %v1139, %v1131
  %v1812 = vpack.c.b16 %v1140, %v1132
  %v1813 = vpack.c.b16 %v1141, %v1133
  %v1814 = vpack.c.b16 %v1142, %v1134
  %v1815 = vpack.c.b16 %v1143, %v1135
  %v1816 = vpack.c.b16 %v1144, %v1136
  %v1817 = vpack.c.b16 %v1145, %v1137
  %v1818 = vpack.c.b16 %v1146, %v1138
  %v1819 = vpack.c.b16 %v1155, %v1147
  %v1820 = vpack.c.b16 %v1156, %v1148
  %v1821 = vpack.c.b16 %v1157, %v1149
  %v1822 = vpack.c.b16 %v1158, %v1150
  %v1823 = vpack.c.b16 %v1159, %v1151
  %v1824 = vpack.c.b16 %v1160, %v1152
  %v1825 = vpack.c.b16 %v1161, %v1153
  %v1826 = vpack.c.b16 %v1162, %v1154
  %v1827 = vpack.c.b16 %v1171, %v1163
  %v1828 = vpack.c.b16 %v1172, %v1164
  %v1829 = vpack.c.b16 %v1173, %v1165
  %v1830 = vpack.c.b16 %v1174, %v1166
  %v1831 = vpack.c.b16 %v1175, %v1167
  %v1832 = vpack.c.b16 %v1176, %v1168
  %v1833 = vpack.c.b16 %v1177, %v1169
  %v1834 = vpack.c.b16 %v1178, %v1170
  %v1835 = vpack.c.b16 %v1187, %v1179
  %v1836 = vpack.c.b16 %v1188, %v1180
  %v1837 = vpack.c.b16 %v1189, %v1181
  %v1838 = vpack.c.b16 %v1190, %v1182
  %v1839 = vpack.c.b16 %v1191, %v1183
  %v1840 = vpack.c.b16 %v1192, %v1184
  %v1841 = vpack.c.b16 %v1193, %v1185
  %v1842 = vpack.c.b16 %v1194, %v1186
  %v1843 = vpack.c.b16 %v1203, %v1195
  %v1844 = vpack.c.b16 %v1204, %v1196
  %v1845 = vpack.c.b16 %v1205, %v1197
  %v1846 = vpack.c.b16 %v1206, %v1198
  %v1847 = vpack.c.b16 %v1207, %v1199
  %v1848 = vpack.c.b16 %v1208, %v1200
  %v1849 = vpack.c.b16 %v1209, %v1201
  %v1850 = vpack.c.b16 %v1210, %v1202
  %v1851 = vpack.c.b16 %v1219, %v1211
  %v1852 = vpack.c.b16 %v1220, %v1212
  %v1853 = vpack.c.b16 %v1221, %v1213
  %v1854 = vpack.c.b16 %v1222, %v1214
  %v1855 = vpack.c.b16 %v1223, %v1215
  %v1856 = vpack.c.b16 %v1224, %v1216
  %v1857 = vpack.c.b16 %v1225, %v1217
  %v1858 = vpack.c.b16 %v1226, %v1218
  %v1859 = vpack.c.b16 %v1235, %v1227
  %v1860 = vpack.c.b16 %v1236, %v1228
  %v1861 = vpack.c.b16 %v1237, %v1229
  %v1862 = vpack.c.b16 %v1238, %v1230
  %v1863 = vpack.c.b16 %v1239, %v1231
  %v1864 = vpack.c.b16 %v1240, %v1232
  %v1865 = vpack.c.b16 %v1241, %v1233
  %v1866 = vpack.c.b16 %v1242, %v1234
  %v1867 = vpack.c.b16 %v1251, %v1243
  %v1868 = vpack.c.b16 %v1252, %v1244
  %v1869 = vpack.c.b16 %v1253, %v1245
  %v1870 = vpack.c.b16 %v1254, %v1246
  %v1871 = vpack.c.b16 %v1255, %v1247
  %v1872 = vpack.c.b16 %v1256, %v1248
  %v1873 = vpack.c.b16 %v1257, %v1249
  %v1874 = vpack.c.b16 %v1258, %v1250
  %v1875 = vpack.c.b16 %v1267, %v1259
  %v1876 = vpack.c.b16 %v1268, %v1260
  %v1877 = vpack.c.b16 %v1269, %v1261
  %v1878 = vpack.c.b16 %v1270, %v1262
  %v1879 = vpack.c.b16 %v1271, %v1263
  %v1880 = vpack.c.b16 %v1272, %v1264
  %v1881 = vpack.c.b16 %v1273, %v1265
  %v1882 = vpack.c.b16 %v1274, %v1266
  %v1883 = vpack.c.b16 %v1283, %v1275
  %v1884 = vpack.c.b16 %v1284, %v1276
  %v1885 = vpack.c.b16 %v1285, %v1277
  %v1886 = vpack.c.b16 %v1286, %v1278
  %v1887 = vpack.c.b16 %v1287, %v1279
  %v1888 = vpack.c.b16 %v1288, %v1280
  %v1889 = vpack.c.b16 %v1289, %v1281
  %v1890 = vpack.c.b16 %v1290, %v1282
  %v1891 = vpack.c.b16 %v1299, %v1291
  %v1892 = vpack.c.b16 %v1300, %v1292
  %v1893 = vpack.c.b16 %v1301, %v1293
  %v1894 = vpack.c.b16 %v1302, %v1294
  %v1895 = vpack.c.b16 %v1303, %v1295
  %v1896 = vpack.c.b16 %v1304, %v1296
  %v1897 = vpack.c.b16 %v1305, %v1297
  %v1898 = vpack.c.b16 %v1306, %v1298
  %v1899 = vpack.c.b16 %v1315, %v1307
  %v1900 = vpack.c.b16 %v1316, %v1308
  %v1901 = vpack.c.b16 %v1317, %v1309
  %v1902 = vpack.c.b16 %v1318, %v1310
  %v1903 = vpack.c.b16 %v1319, %v1311
  %v1904 = vpack.c.b16 %v1320, %v1312
  %v1905 = vpack.c.b16 %v1321, %v1313
  %v1906 = vpack.c.b16 %v1322, %v1314
  %v1907 = vpack.c.b16 %v1331, %v1323
  %v1908 = vpack.c.b16 %v1332, %v1324
  %v1909 = vpack.c.b16 %v1333, %v1325
  %v1910 = vpack.c.b16 %v1334, %v1326
  %v1911 = vpack.c.b16 %v1335, %v1327
  %v1912 = vpack.c.b16 %v1336, %v1328
  %v1913 = vpack.c.b16 %v1337, %v1329
  %v1914 = vpack.c.b16 %v1338, %v1330
  %v1915 = vpack.c.b16 %v1347, %v1339
  %v1916 = vpack.c.b16 %v1348, %v1340
  %v1917 = vpack.c.b16 %v1349, %v1341
  %v1918 = vpack.c.b16 %v1350, %v1342
  %v1919 = vpack.c.b16 %v1351, %v1343
  %v1920 = vpack.c.b16 %v1352, %v1344
  %v1921 = vpack.c.b16 %v1353, %v1345
  %v1922 = vpack.c.b16 %v1354, %v1346
  %v1923 = vpack.c.b16 %v1363, %v1355
  %v1924 = vpack.c.b16 %v1364, %v1356
  %v1925 = vpack.c.b16 %v1365, %v1357
  %v1926 = vpack.c.b16 %v1366, %v1358
  %v1927 = vpack.c.b16 %v1367, %v1359
  %v1928 = vpack.c.b16 %v1368, %v1360
  %v1929 = vpack.c.b16 %v1369, %v1361
  %v1930 = vpack.c.b16 %v1370, %v1362
  %v1931 = vpack.c.b16 %v1379, %v1371
  %v1932 = vpack.c.b16 %v1380, %v1372
  %v1933 = vpack.c.b16 %v1381, %v1373
  %v1934 = vpack.c.b16 %v1382, %v1374
  %v1935 = vpack.c.b16 %v1383, %v1375
  %v1936 = vpack.c.b16 %v1384, %v1376
  %v1937 = vpack.c.b16 %v1385, %v1377
  %v1938 = vpack.c.b16 %v1386, %v1378
  %v1939 = vpack.c.b16 %v1395, %v1387
  %v1940 = vpack.c.b16 %v1396, %v1388
  %v1941 = vpack.c.b16 %v1397, %v1389
  %v1942 = vpack.c.b16 %v1398, %v1390
  %v1943 = vpack.c.b16 %v1399, %v1391
  %v1944 = vpack.c.b16 %v1400, %v1392
  %v1945 = vpack.c.b16 %v1401, %v1393
  %v1946 = vpack.c.b16 %v1402, %v1394
  %v1947 = vpack.c.b16 %v1411, %v1403
  %v1948 = vpack.c.b16 %v1412, %v1404
  %v1949 = vpack.c.b16 %v1413, %v1405
  %v1950 = vpack.c.b16 %v1414, %v1406
  %v1951 = vpack.c.b16 %v1415, %v1407
  %v1952 = vpack.c.b16 %v1416, %v1408
  %v1953 = vpack.c.b16 %v1417, %v1409
  %v1954 = vpack.c.b16 %v1418, %v1410
  %v1955 = vpack.c.b16 %v1427, %v1419
  %v1956 = vpack.c.b16 %v1428, %v1420
  %v1957 = vpack.c.b16 %v1429, %v1421
  %v1958 = vpack.c.b16 %v1430, %v1422
  %v1959 = vpack.c.b16 %v1431, %v1423
  %v1960 = vpack.c.b16 %v1432, %v1424
  %v1961 = vpack.c.b16 %v1433, %v1425
  %v1962 = vpack.c.b16 %v1434, %v1426
  %v1963 = vpack.c.b16 %v1443, %v1435
  %v1964 = vpack.c.b16 %v1444, %v1436
  %v1965 = vpack.c.b16 %v1445, %v1437
  %v1966 = vpack.c.b16 %v1446, %v1438
  %v1967 = vpack.c.b16 %v1447, %v1439
  %v1968 = vpack.c.b16 %v1448, %v1440
  %v1969 = vpack.c.b16 %v1449, %v1441
  %v1970 = vpack.c.b16 %v1450, %v1442
  %v1971 = vpack.c.b16 %v1459, %v1451
  %v1972 = vpack.c.b16 %v1460, %v1452
  %v1973 = vpack.c.b16 %v1461, %v1453
  %v1974 = vpack.c.b16 %v1462, %v1454
  %v1975 = vpack.c.b16 %v1463, %v1455
  %v1976 = vpack.c.b16 %v1464, %v1456
  %v1977 = vpack.c.b16 %v1465, %v1457
  %v1978 = vpack.c.b16 %v1466, %v1458
  %v1979 = vpack.c.b16 %v1475, %v1467
  %v1980 = vpack.c.b16 %v1476, %v1468
  %v1981 = vpack.c.b16 %v1477, %v1469
  %v1982 = vpack.c.b16 %v1478, %v1470
  %v1983 = vpack.c.b16 %v1479, %v1471
  %v1984 = vpack.c.b16 %v1480, %v1472
  %v1985 = vpack.c.b16 %v1481, %v1473
  %v1986 = vpack.c.b16 %v1482, %v1474
  %v1987 = vpack.c.b16 %v1491, %v1483
  %v1988 = vpack.c.b16 %v1492, %v1484
  %v1989 = vpack.c.b16 %v1493, %v1485
  %v1990 = vpack.c.b16 %v1494, %v1486
  %v1991 = vpack.c.b16 %v1495, %v1487
  %v1992 = vpack.c.b16 %v1496, %v1488
  %v1993 = vpack.c.b16 %v1497, %v1489
  %v1994 = vpack.c.b16 %v1498, %v1490
  %v1995 = vpack.c.b16 %v1507, %v1499
  %v1996 = vpack.c.b16 %v1508, %v1500
  %v1997 = vpack.c.b16 %v1509, %v1501
  %v1998 = vpack.c.b16 %v1510, %v1502
  %v1999 = vpack.c.b16 %v1511, %v1503
  %v2000 = vpack.c.b16 %v1512, %v1504
  %v2001 = vpack.c.b16 %v1513, %v1505
  %v2002 = vpack.c.b16 %v1514, %v1506
  %v2003 = vpack.c.b16 %v1523, %v1515
  %v2004 = vpack.c.b16 %v1524, %v1516
  %v2005 = vpack.c.b16 %v1525, %v1517
  %v2006 = vpack.c.b16 %v1526, %v1518
  %v2007 = vpack.c.b16 %v1527, %v1519
  %v2008 = vpack.c.b16 %v1528, %v1520
  %v2009 = vpack.c.b16 %v1529, %v1521
  %v2010 = vpack.c.b16 %v1530, %v1522
  %v2011 = vpack.c.b16 %v1539, %v1531
  %v2012 = vpack.c.b16 %v1540, %v1532
  %v2013 = vpack.c.b16 %v1541, %v1533
  %v2014 = vpack.c.b16 %v1542, %v1534
  %v2015 = vpack.c.b16 %v1543, %v1535
  %v2016 = vpack.c.b16 %v1544, %v1536
  %v2017 = vpack.c.b16 %v1545, %v1537
  %v2018 = vpack.c.b16 %v1546, %v1538
  %v2019 = vpack.c.b16 %v1555, %v1547
  %v2020 = vpack.c.b16 %v1556, %v1548
  %v2021 = vpack.c.b16 %v1557, %v1549
  %v2022 = vpack.c.b16 %v1558, %v1550
  %v2023 = vpack.c.b16 %v1559, %v1551
  %v2024 = vpack.c.b16 %v1560, %v1552
  %v2025 = vpack.c.b16 %v1561, %v1553
  %v2026 = vpack.c.b16 %v1562, %v1554
  %v2027 = vpack.c.b16 %v1571, %v1563
  %v2028 = vpack.c.b16 %v1572, %v1564
  %v2029 = vpack.c.b16 %v1573, %v1565
  %v2030 = vpack.c.b16 %v1574, %v1566
  %v2031 = vpack.c.b16 %v1575, %v1567
  %v2032 = vpack.c.b16 %v1576, %v1568
  %v2033 = vpack.c.b16 %v1577, %v1569
  %v2034 = vpack.c.b16 %v1578, %v1570
  %v2035 = vpack.c.b16 %v1587, %v1579
  %v2036 = vpack.c.b16 %v1588, %v1580
  %v2037 = vpack.c.b16 %v1589, %v1581
  %v2038 = vpack.c.b16 %v1590, %v1582
  %v2039 = vpack.c.b16 %v1591, %v1583
  %v2040 = vpack.c.b16 %v1592, %v1584
  %v2041 = vpack.c.b16 %v1593, %v1585
  %v2042 = vpack.c.b16 %v1594, %v1586
  %v2043 = vpack.c.b16 %v1603, %v1595
  %v2044 = vpack.c.b16 %v1604, %v1596
  %v2045 = vpack.c.b16 %v1605, %v1597
  %v2046 = vpack.c.b16 %v1606, %v1598
  %v2047 = vpack.c.b16 %v1607, %v1599
  %v2048 = vpack.c.b16 %v1608, %v1600
  %v2049 = vpack.c.b16 %v1609, %v1601
  %v2050 = vpack.c.b16 %v1610, %v1602
  %v2051 = vpack.c.b16 %v1619, %v1611
  %v2052 = vpack.c.b16 %v1620, %v1612
  %v2053 = vpack.c.b16 %v1621, %v1613
  %v2054 = vpack.c.b16 %v1622, %v1614
  %v2055 = vpack.c.b16 %v1623, %v1615
  %v2056 = vpack.c.b16 %v1624, %v1616
  %v2057 = vpack.c.b16 %v1625, %v1617
  %v2058 = vpack.c.b16 %v1626, %v1618
  %v2059 = vpack.c.b16 %v1635, %v1627
  %v2060 = vpack.c.b16 %v1636, %v1628
  %v2061 = vpack.c.b16 %v1637, %v1629
  %v2062 = vpack.c.b16 %v1638, %v1630
  %v2063 = vpack.c.b16 %v1639, %v1631
  %v2064 = vpack.c.b16 %v1640, %v1632
  %v2065 = vpack.c.b16 %v1641, %v1633
  %v2066 = vpack.c.b16 %v1642, %v1634
  %v2067 = vpack.c.b16 %v1651, %v1643
  %v2068 = vpack.c.b16 %v1652, %v1644
  %v2069 = vpack.c.b16 %v1653, %v1645
  %v2070 = vpack.c.b16 %v1654, %v1646
  %v2071 = vpack.c.b16 %v1655, %v1647
  %v2072 = vpack.c.b16 %v1656, %v1648
  %v2073 = vpack.c.b16 %v1657, %v1649
  %v2074 = vpack.c.b16 %v1658, %v1650
  %v2075 = vpack.c.b16 %v1667, %v1659
  %v2076 = vpack.c.b16 %v1668, %v1660
  %v2077 = vpack.c.b16 %v1669, %v1661
  %v2078 = vpack.c.b16 %v1670, %v1662
  %v2079 = vpack.c.b16 %v1671, %v1663
  %v2080 = vpack.c.b16 %v1672, %v1664
  %v2081 = vpack.c.b16 %v1673, %v1665
  %v2082 = vpack.c.b16 %v1674, %v1666
  %v2083 = vpack.c.b16 %v1683, %v1675
  %v2084 = vpack.c.b16 %v1684, %v1676
  %v2085 = vpack.c.b16 %v1685, %v1677
  %v2086 = vpack.c.b16 %v1686, %v1678
  %v2087 = vpack.c.b16 %v1687, %v1679
  %v2088 = vpack.c.b16 %v1688, %v1680
  %v2089 = vpack.c.b16 %v1689, %v1681
  %v2090 = vpack.c.b16 %v1690, %v1682
  %vm2491 = vcmask 261120
  %v2493 = vsel %vm2491, %v484, 0
  %2495 = vmatprep.subr.bf16.mxu0 %v1692
  %2496 = vmatpush1.bf16.msra.mxu0 %v1691
  %2497 = vmatprep.subr.bf16.mxu0 %v1700
  %2498 = vmatpush1.bf16.msra.mxu0 %v1699
  %2499 = vmatprep.subr.bf16.mxu0 %v1708
  %2500 = vmatpush1.bf16.msra.mxu0 %v1707
  %2501 = vmatprep.subr.bf16.mxu0 %v1716
  %2502 = vmatpush1.bf16.msra.mxu0 %v1715
  %2503 = vmatprep.subr.bf16.mxu0 %v1724
  %2504 = vmatpush1.bf16.msra.mxu0 %v1723
  %2505 = vmatprep.subr.bf16.mxu0 %v1732
  %2506 = vmatpush1.bf16.msra.mxu0 %v1731
  %2507 = vmatprep.subr.bf16.mxu0 %v1740
  %2508 = vmatpush1.bf16.msra.mxu0 %v1739
  %2509 = vmatprep.subr.bf16.mxu0 %v1748
  %2510 = vmatpush1.bf16.msra.mxu0 %v1747
  %2511 = vmatprep.subr.bf16.mxu0 %v1756
  %2512 = vmatpush1.bf16.msra.mxu0 %v1755
  %2513 = vmatprep.subr.bf16.mxu0 %v1764
  %2514 = vmatpush1.bf16.msra.mxu0 %v1763
  %2515 = vmatprep.subr.bf16.mxu0 %v1772
  %2516 = vmatpush1.bf16.msra.mxu0 %v1771
  %2517 = vmatprep.subr.bf16.mxu0 %v1780
  %2518 = vmatpush1.bf16.msra.mxu0 %v1779
  %2519 = vmatprep.subr.bf16.mxu0 %v1788
  %2520 = vmatpush1.bf16.msra.mxu0 %v1787
  %2521 = vmatprep.subr.bf16.mxu0 %v1796
  %2522 = vmatpush1.bf16.msra.mxu0 %v1795
  %2523 = vmatprep.subr.bf16.mxu0 %v1804
  %2524 = vmatpush1.bf16.msra.mxu0 %v1803
  %2525 = vmatprep.subr.bf16.mxu0 %v1812
  %2526 = vmatpush1.bf16.msra.mxu0 %v1811
  %2527 = vmatprep.mubr.bf16.mxu0 %v479
  %2528 = vmatmul.mubr.bf16.gmra.mrb[0].mxu0 %v478
  %v2529 = vpop.f32.mrb[0].mxu0
  %v2530 = vadd.f32 %v430, %v2529
  %v2531 = vpop.f32.mrb[0].mxu0
  %v2532 = vadd.f32 %v434, %v2531
  %v2533 = vpop.f32.mrb[0].mxu0
  %v2534 = vpop.f32.mrb[0].mxu0
  %2535 = vdwg.mxu0
  %2536 = vmatprep.subr.bf16.mxu0 %v1820
  %2537 = vmatpush1.bf16.msra.mxu0 %v1819
  %2538 = vmatprep.subr.bf16.mxu0 %v1828
  %2539 = vmatpush1.bf16.msra.mxu0 %v1827
  %2540 = vmatprep.subr.bf16.mxu0 %v1836
  %2541 = vmatpush1.bf16.msra.mxu0 %v1835
  %2542 = vmatprep.subr.bf16.mxu0 %v1844
  %2543 = vmatpush1.bf16.msra.mxu0 %v1843
  %2544 = vmatprep.subr.bf16.mxu0 %v1852
  %2545 = vmatpush1.bf16.msra.mxu0 %v1851
  %2546 = vmatprep.subr.bf16.mxu0 %v1860
  %2547 = vmatpush1.bf16.msra.mxu0 %v1859
  %2548 = vmatprep.subr.bf16.mxu0 %v1868
  %2549 = vmatpush1.bf16.msra.mxu0 %v1867
  %2550 = vmatprep.subr.bf16.mxu0 %v1876
  %2551 = vmatpush1.bf16.msra.mxu0 %v1875
  %2552 = vmatprep.subr.bf16.mxu0 %v1884
  %2553 = vmatpush1.bf16.msra.mxu0 %v1883
  %2554 = vmatprep.subr.bf16.mxu0 %v1892
  %2555 = vmatpush1.bf16.msra.mxu0 %v1891
  %2556 = vmatprep.subr.bf16.mxu0 %v1900
  %2557 = vmatpush1.bf16.msra.mxu0 %v1899
  %2558 = vmatprep.subr.bf16.mxu0 %v1908
  %2559 = vmatpush1.bf16.msra.mxu0 %v1907
  %2560 = vmatprep.subr.bf16.mxu0 %v1916
  %2561 = vmatpush1.bf16.msra.mxu0 %v1915
  %2562 = vmatprep.subr.bf16.mxu0 %v1924
  %2563 = vmatpush1.bf16.msra.mxu0 %v1923
  %2564 = vmatprep.subr.bf16.mxu0 %v1932
  %2565 = vmatpush1.bf16.msra.mxu0 %v1931
  %2566 = vmatprep.subr.bf16.mxu0 %v1940
  %2567 = vmatpush1.bf16.msra.mxu0 %v1939
  %2568 = vmatprep.mubr.bf16.mxu0 %v481
  %2569 = vmatmul.mubr.bf16.gmra.mrb[0].mxu0 %v480
  %v2570 = vpop.f32.mrb[0].mxu0
  %v2571 = vadd.f32 %v2530, %v2570
  %v2572 = vpop.f32.mrb[0].mxu0
  %v2573 = vadd.f32 %v2532, %v2572
  %v2574 = vpop.f32.mrb[0].mxu0
  %v2575 = vpop.f32.mrb[0].mxu0
  %2576 = vdwg.mxu0
  %2577 = vmatprep.subr.bf16.mxu0 %v1948
  %2578 = vmatpush1.bf16.msra.mxu0 %v1947
  %2579 = vmatprep.subr.bf16.mxu0 %v1956
  %2580 = vmatpush1.bf16.msra.mxu0 %v1955
  %2581 = vmatprep.subr.bf16.mxu0 %v1964
  %2582 = vmatpush1.bf16.msra.mxu0 %v1963
  %2583 = vmatprep.subr.bf16.mxu0 %v1972
  %2584 = vmatpush1.bf16.msra.mxu0 %v1971
  %2585 = vmatprep.subr.bf16.mxu0 %v1980
  %2586 = vmatpush1.bf16.msra.mxu0 %v1979
  %2587 = vmatprep.subr.bf16.mxu0 %v1988
  %2588 = vmatpush1.bf16.msra.mxu0 %v1987
  %2589 = vmatprep.subr.bf16.mxu0 %v1996
  %2590 = vmatpush1.bf16.msra.mxu0 %v1995
  %2591 = vmatprep.subr.bf16.mxu0 %v2004
  %2592 = vmatpush1.bf16.msra.mxu0 %v2003
  %2593 = vmatprep.subr.bf16.mxu0 %v2012
  %2594 = vmatpush1.bf16.msra.mxu0 %v2011
  %2595 = vmatprep.subr.bf16.mxu0 %v2020
  %2596 = vmatpush1.bf16.msra.mxu0 %v2019
  %2597 = vmatprep.subr.bf16.mxu0 %v2028
  %2598 = vmatpush1.bf16.msra.mxu0 %v2027
  %2599 = vmatprep.subr.bf16.mxu0 %v2036
  %2600 = vmatpush1.bf16.msra.mxu0 %v2035
  %2601 = vmatprep.subr.bf16.mxu0 %v2044
  %2602 = vmatpush1.bf16.msra.mxu0 %v2043
  %2603 = vmatprep.subr.bf16.mxu0 %v2052
  %2604 = vmatpush1.bf16.msra.mxu0 %v2051
  %2605 = vmatprep.subr.bf16.mxu0 %v2060
  %2606 = vmatpush1.bf16.msra.mxu0 %v2059
  %2607 = vmatprep.subr.bf16.mxu0 %v2068
  %2608 = vmatpush1.bf16.msra.mxu0 %v2067
  %2609 = vmatprep.mubr.bf16.mxu0 %v483
  %2610 = vmatmul.mubr.bf16.gmra.mrb[0].mxu0 %v482
  %v2611 = vpop.f32.mrb[0].mxu0
  %v2612 = vadd.f32 %v2571, %v2611
  %v2613 = vpop.f32.mrb[0].mxu0
  %v2614 = vadd.f32 %v2573, %v2613
  %v2615 = vpop.f32.mrb[0].mxu0
  %v2616 = vpop.f32.mrb[0].mxu0
  %2617 = vdwg.mxu0
  %2618 = vmatprep.subr.bf16.mxu0 %v2076
  %2619 = vmatpush1.bf16.msra.mxu0 %v2075
  %2620 = vmatprep.subr.bf16.mxu0 %v2084
  %2621 = vmatpush1.bf16.msra.mxu0 %v2083
  %2622 = vmatprep.subr.bf16.mxu0 0
  %2623 = vmatpush1.bf16.msra.mxu0 0
  %2624 = vmatprep.subr.bf16.mxu0 0
  %2625 = vmatpush1.bf16.msra.mxu0 0
  %2626 = vmatprep.subr.bf16.mxu0 0
  %2627 = vmatpush1.bf16.msra.mxu0 0
  %2628 = vmatprep.subr.bf16.mxu0 0
  %2629 = vmatpush1.bf16.msra.mxu0 0
  %2630 = vmatprep.subr.bf16.mxu0 0
  %2631 = vmatpush1.bf16.msra.mxu0 0
  %2632 = vmatprep.subr.bf16.mxu0 0
  %2633 = vmatpush1.bf16.msra.mxu0 0
  %2634 = vmatprep.subr.bf16.mxu0 0
  %2635 = vmatpush1.bf16.msra.mxu0 0
  %2636 = vmatprep.subr.bf16.mxu0 0
  %2637 = vmatpush1.bf16.msra.mxu0 0
  %2638 = vmatprep.subr.bf16.mxu0 0
  %2639 = vmatpush1.bf16.msra.mxu0 0
  %2640 = vmatprep.subr.bf16.mxu0 0
  %2641 = vmatpush1.bf16.msra.mxu0 0
  %2642 = vmatprep.subr.bf16.mxu0 0
  %2643 = vmatpush1.bf16.msra.mxu0 0
  %2644 = vmatprep.subr.bf16.mxu0 0
  %2645 = vmatpush1.bf16.msra.mxu0 0
  %2646 = vmatprep.subr.bf16.mxu0 0
  %2647 = vmatpush1.bf16.msra.mxu0 0
  %2648 = vmatprep.subr.bf16.mxu0 0
  %2649 = vmatpush1.bf16.msra.mxu0 0
  %2650 = vmatprep.mubr.bf16.mxu0 0
  %2651 = vmatmul.mubr.bf16.gmra.mrb[0].mxu0 %v2493
  %v2652 = vpop.f32.mrb[0].mxu0
  %v2653 = vadd.f32 %v2612, %v2652
  %v2654 = vpop.f32.mrb[0].mxu0
  %v2655 = vadd.f32 %v2614, %v2654
  %v2656 = vpop.f32.mrb[0].mxu0
  %v2657 = vpop.f32.mrb[0].mxu0
  %2658 = vdwg.mxu0
  %2659 = vmatprep.subr.bf16.mxu0 %v1694
  %2660 = vmatpush1.bf16.msra.mxu0 %v1693
  %2661 = vmatprep.subr.bf16.mxu0 %v1702
  %2662 = vmatpush1.bf16.msra.mxu0 %v1701
  %2663 = vmatprep.subr.bf16.mxu0 %v1710
  %2664 = vmatpush1.bf16.msra.mxu0 %v1709
  %2665 = vmatprep.subr.bf16.mxu0 %v1718
  %2666 = vmatpush1.bf16.msra.mxu0 %v1717
  %2667 = vmatprep.subr.bf16.mxu0 %v1726
  %2668 = vmatpush1.bf16.msra.mxu0 %v1725
  %2669 = vmatprep.subr.bf16.mxu0 %v1734
  %2670 = vmatpush1.bf16.msra.mxu0 %v1733
  %2671 = vmatprep.subr.bf16.mxu0 %v1742
  %2672 = vmatpush1.bf16.msra.mxu0 %v1741
  %2673 = vmatprep.subr.bf16.mxu0 %v1750
  %2674 = vmatpush1.bf16.msra.mxu0 %v1749
  %2675 = vmatprep.subr.bf16.mxu0 %v1758
  %2676 = vmatpush1.bf16.msra.mxu0 %v1757
  %2677 = vmatprep.subr.bf16.mxu0 %v1766
  %2678 = vmatpush1.bf16.msra.mxu0 %v1765
  %2679 = vmatprep.subr.bf16.mxu0 %v1774
  %2680 = vmatpush1.bf16.msra.mxu0 %v1773
  %2681 = vmatprep.subr.bf16.mxu0 %v1782
  %2682 = vmatpush1.bf16.msra.mxu0 %v1781
  %2683 = vmatprep.subr.bf16.mxu0 %v1790
  %2684 = vmatpush1.bf16.msra.mxu0 %v1789
  %2685 = vmatprep.subr.bf16.mxu0 %v1798
  %2686 = vmatpush1.bf16.msra.mxu0 %v1797
  %2687 = vmatprep.subr.bf16.mxu0 %v1806
  %2688 = vmatpush1.bf16.msra.mxu0 %v1805
  %2689 = vmatprep.subr.bf16.mxu0 %v1814
  %2690 = vmatpush1.bf16.msra.mxu0 %v1813
  %2691 = vmatprep.mubr.bf16.mxu0 %v479
  %2692 = vmatmul.mubr.bf16.gmra.mrb[0].mxu0 %v478
  %v2693 = vpop.f32.mrb[0].mxu0
  %v2694 = vadd.f32 %v438, %v2693
  %v2695 = vpop.f32.mrb[0].mxu0
  %v2696 = vadd.f32 %v442, %v2695
  %v2697 = vpop.f32.mrb[0].mxu0
  %v2698 = vpop.f32.mrb[0].mxu0
  %2699 = vdwg.mxu0
  %2700 = vmatprep.subr.bf16.mxu0 %v1822
  %2701 = vmatpush1.bf16.msra.mxu0 %v1821
  %2702 = vmatprep.subr.bf16.mxu0 %v1830
  %2703 = vmatpush1.bf16.msra.mxu0 %v1829
  %2704 = vmatprep.subr.bf16.mxu0 %v1838
  %2705 = vmatpush1.bf16.msra.mxu0 %v1837
  %2706 = vmatprep.subr.bf16.mxu0 %v1846
  %2707 = vmatpush1.bf16.msra.mxu0 %v1845
  %2708 = vmatprep.subr.bf16.mxu0 %v1854
  %2709 = vmatpush1.bf16.msra.mxu0 %v1853
  %2710 = vmatprep.subr.bf16.mxu0 %v1862
  %2711 = vmatpush1.bf16.msra.mxu0 %v1861
  %2712 = vmatprep.subr.bf16.mxu0 %v1870
  %2713 = vmatpush1.bf16.msra.mxu0 %v1869
  %2714 = vmatprep.subr.bf16.mxu0 %v1878
  %2715 = vmatpush1.bf16.msra.mxu0 %v1877
  %2716 = vmatprep.subr.bf16.mxu0 %v1886
  %2717 = vmatpush1.bf16.msra.mxu0 %v1885
  %2718 = vmatprep.subr.bf16.mxu0 %v1894
  %2719 = vmatpush1.bf16.msra.mxu0 %v1893
  %2720 = vmatprep.subr.bf16.mxu0 %v1902
  %2721 = vmatpush1.bf16.msra.mxu0 %v1901
  %2722 = vmatprep.subr.bf16.mxu0 %v1910
  %2723 = vmatpush1.bf16.msra.mxu0 %v1909
  %2724 = vmatprep.subr.bf16.mxu0 %v1918
  %2725 = vmatpush1.bf16.msra.mxu0 %v1917
  %2726 = vmatprep.subr.bf16.mxu0 %v1926
  %2727 = vmatpush1.bf16.msra.mxu0 %v1925
  %2728 = vmatprep.subr.bf16.mxu0 %v1934
  %2729 = vmatpush1.bf16.msra.mxu0 %v1933
  %2730 = vmatprep.subr.bf16.mxu0 %v1942
  %2731 = vmatpush1.bf16.msra.mxu0 %v1941
  %2732 = vmatprep.mubr.bf16.mxu0 %v481
  %2733 = vmatmul.mubr.bf16.gmra.mrb[0].mxu0 %v480
  %v2734 = vpop.f32.mrb[0].mxu0
  %v2735 = vadd.f32 %v2694, %v2734
  %v2736 = vpop.f32.mrb[0].mxu0
  %v2737 = vadd.f32 %v2696, %v2736
  %v2738 = vpop.f32.mrb[0].mxu0
  %v2739 = vpop.f32.mrb[0].mxu0
  %2740 = vdwg.mxu0
  %2741 = vmatprep.subr.bf16.mxu0 %v1950
  %2742 = vmatpush1.bf16.msra.mxu0 %v1949
  %2743 = vmatprep.subr.bf16.mxu0 %v1958
  %2744 = vmatpush1.bf16.msra.mxu0 %v1957
  %2745 = vmatprep.subr.bf16.mxu0 %v1966
  %2746 = vmatpush1.bf16.msra.mxu0 %v1965
  %2747 = vmatprep.subr.bf16.mxu0 %v1974
  %2748 = vmatpush1.bf16.msra.mxu0 %v1973
  %2749 = vmatprep.subr.bf16.mxu0 %v1982
  %2750 = vmatpush1.bf16.msra.mxu0 %v1981
  %2751 = vmatprep.subr.bf16.mxu0 %v1990
  %2752 = vmatpush1.bf16.msra.mxu0 %v1989
  %2753 = vmatprep.subr.bf16.mxu0 %v1998
  %2754 = vmatpush1.bf16.msra.mxu0 %v1997
  %2755 = vmatprep.subr.bf16.mxu0 %v2006
  %2756 = vmatpush1.bf16.msra.mxu0 %v2005
  %2757 = vmatprep.subr.bf16.mxu0 %v2014
  %2758 = vmatpush1.bf16.msra.mxu0 %v2013
  %2759 = vmatprep.subr.bf16.mxu0 %v2022
  %2760 = vmatpush1.bf16.msra.mxu0 %v2021
  %2761 = vmatprep.subr.bf16.mxu0 %v2030
  %2762 = vmatpush1.bf16.msra.mxu0 %v2029
  %2763 = vmatprep.subr.bf16.mxu0 %v2038
  %2764 = vmatpush1.bf16.msra.mxu0 %v2037
  %2765 = vmatprep.subr.bf16.mxu0 %v2046
  %2766 = vmatpush1.bf16.msra.mxu0 %v2045
  %2767 = vmatprep.subr.bf16.mxu0 %v2054
  %2768 = vmatpush1.bf16.msra.mxu0 %v2053
  %2769 = vmatprep.subr.bf16.mxu0 %v2062
  %2770 = vmatpush1.bf16.msra.mxu0 %v2061
  %2771 = vmatprep.subr.bf16.mxu0 %v2070
  %2772 = vmatpush1.bf16.msra.mxu0 %v2069
  %2773 = vmatprep.mubr.bf16.mxu0 %v483
  %2774 = vmatmul.mubr.bf16.gmra.mrb[0].mxu0 %v482
  %v2775 = vpop.f32.mrb[0].mxu0
  %v2776 = vadd.f32 %v2735, %v2775
  %v2777 = vpop.f32.mrb[0].mxu0
  %v2778 = vadd.f32 %v2737, %v2777
  %v2779 = vpop.f32.mrb[0].mxu0
  %v2780 = vpop.f32.mrb[0].mxu0
  %2781 = vdwg.mxu0
  %2782 = vmatprep.subr.bf16.mxu0 %v2078
  %2783 = vmatpush1.bf16.msra.mxu0 %v2077
  %2784 = vmatprep.subr.bf16.mxu0 %v2086
  %2785 = vmatpush1.bf16.msra.mxu0 %v2085
  %2786 = vmatprep.subr.bf16.mxu0 0
  %2787 = vmatpush1.bf16.msra.mxu0 0
  %2788 = vmatprep.subr.bf16.mxu0 0
  %2789 = vmatpush1.bf16.msra.mxu0 0
  %2790 = vmatprep.subr.bf16.mxu0 0
  %2791 = vmatpush1.bf16.msra.mxu0 0
  %2792 = vmatprep.subr.bf16.mxu0 0
  %2793 = vmatpush1.bf16.msra.mxu0 0
  %2794 = vmatprep.subr.bf16.mxu0 0
  %2795 = vmatpush1.bf16.msra.mxu0 0
  %2796 = vmatprep.subr.bf16.mxu0 0
  %2797 = vmatpush1.bf16.msra.mxu0 0
  %2798 = vmatprep.subr.bf16.mxu0 0
  %2799 = vmatpush1.bf16.msra.mxu0 0
  %2800 = vmatprep.subr.bf16.mxu0 0
  %2801 = vmatpush1.bf16.msra.mxu0 0
  %2802 = vmatprep.subr.bf16.mxu0 0
  %2803 = vmatpush1.bf16.msra.mxu0 0
  %2804 = vmatprep.subr.bf16.mxu0 0
  %2805 = vmatpush1.bf16.msra.mxu0 0
  %2806 = vmatprep.subr.bf16.mxu0 0
  %2807 = vmatpush1.bf16.msra.mxu0 0
  %2808 = vmatprep.subr.bf16.mxu0 0
  %2809 = vmatpush1.bf16.msra.mxu0 0
  %2810 = vmatprep.subr.bf16.mxu0 0
  %2811 = vmatpush1.bf16.msra.mxu0 0
  %2812 = vmatprep.subr.bf16.mxu0 0
  %2813 = vmatpush1.bf16.msra.mxu0 0
  %2814 = vmatprep.mubr.bf16.mxu0 0
  %2815 = vmatmul.mubr.bf16.gmra.mrb[0].mxu0 %v2493
  %v2816 = vpop.f32.mrb[0].mxu0
  %v2817 = vadd.f32 %v2776, %v2816
  %v2818 = vpop.f32.mrb[0].mxu0
  %v2819 = vadd.f32 %v2778, %v2818
  %v2820 = vpop.f32.mrb[0].mxu0
  %v2821 = vpop.f32.mrb[0].mxu0
  %2822 = vdwg.mxu0
  %2823 = vmatprep.subr.bf16.mxu0 %v1696
  %2824 = vmatpush1.bf16.msra.mxu0 %v1695
  %2825 = vmatprep.subr.bf16.mxu0 %v1704
  %2826 = vmatpush1.bf16.msra.mxu0 %v1703
  %2827 = vmatprep.subr.bf16.mxu0 %v1712
  %2828 = vmatpush1.bf16.msra.mxu0 %v1711
  %2829 = vmatprep.subr.bf16.mxu0 %v1720
  %2830 = vmatpush1.bf16.msra.mxu0 %v1719
  %2831 = vmatprep.subr.bf16.mxu0 %v1728
  %2832 = vmatpush1.bf16.msra.mxu0 %v1727
  %2833 = vmatprep.subr.bf16.mxu0 %v1736
  %2834 = vmatpush1.bf16.msra.mxu0 %v1735
  %2835 = vmatprep.subr.bf16.mxu0 %v1744
  %2836 = vmatpush1.bf16.msra.mxu0 %v1743
  %2837 = vmatprep.subr.bf16.mxu0 %v1752
  %2838 = vmatpush1.bf16.msra.mxu0 %v1751
  %2839 = vmatprep.subr.bf16.mxu0 %v1760
  %2840 = vmatpush1.bf16.msra.mxu0 %v1759
  %2841 = vmatprep.subr.bf16.mxu0 %v1768
  %2842 = vmatpush1.bf16.msra.mxu0 %v1767
  %2843 = vmatprep.subr.bf16.mxu0 %v1776
  %2844 = vmatpush1.bf16.msra.mxu0 %v1775
  %2845 = vmatprep.subr.bf16.mxu0 %v1784
  %2846 = vmatpush1.bf16.msra.mxu0 %v1783
  %2847 = vmatprep.subr.bf16.mxu0 %v1792
  %2848 = vmatpush1.bf16.msra.mxu0 %v1791
  %2849 = vmatprep.subr.bf16.mxu0 %v1800
  %2850 = vmatpush1.bf16.msra.mxu0 %v1799
  %2851 = vmatprep.subr.bf16.mxu0 %v1808
  %2852 = vmatpush1.bf16.msra.mxu0 %v1807
  %2853 = vmatprep.subr.bf16.mxu0 %v1816
  %2854 = vmatpush1.bf16.msra.mxu0 %v1815
  %2855 = vmatprep.mubr.bf16.mxu0 %v479
  %2856 = vmatmul.mubr.bf16.gmra.mrb[0].mxu0 %v478
  %v2857 = vpop.f32.mrb[0].mxu0
  %v2858 = vadd.f32 %v446, %v2857
  %v2859 = vpop.f32.mrb[0].mxu0
  %v2860 = vadd.f32 %v450, %v2859
  %v2861 = vpop.f32.mrb[0].mxu0
  %v2862 = vpop.f32.mrb[0].mxu0
  %2863 = vdwg.mxu0
  %2864 = vmatprep.subr.bf16.mxu0 %v1824
  %2865 = vmatpush1.bf16.msra.mxu0 %v1823
  %2866 = vmatprep.subr.bf16.mxu0 %v1832
  %2867 = vmatpush1.bf16.msra.mxu0 %v1831
  %2868 = vmatprep.subr.bf16.mxu0 %v1840
  %2869 = vmatpush1.bf16.msra.mxu0 %v1839
  %2870 = vmatprep.subr.bf16.mxu0 %v1848
  %2871 = vmatpush1.bf16.msra.mxu0 %v1847
  %2872 = vmatprep.subr.bf16.mxu0 %v1856
  %2873 = vmatpush1.bf16.msra.mxu0 %v1855
  %2874 = vmatprep.subr.bf16.mxu0 %v1864
  %2875 = vmatpush1.bf16.msra.mxu0 %v1863
  %2876 = vmatprep.subr.bf16.mxu0 %v1872
  %2877 = vmatpush1.bf16.msra.mxu0 %v1871
  %2878 = vmatprep.subr.bf16.mxu0 %v1880
  %2879 = vmatpush1.bf16.msra.mxu0 %v1879
  %2880 = vmatprep.subr.bf16.mxu0 %v1888
  %2881 = vmatpush1.bf16.msra.mxu0 %v1887
  %2882 = vmatprep.subr.bf16.mxu0 %v1896
  %2883 = vmatpush1.bf16.msra.mxu0 %v1895
  %2884 = vmatprep.subr.bf16.mxu0 %v1904
  %2885 = vmatpush1.bf16.msra.mxu0 %v1903
  %2886 = vmatprep.subr.bf16.mxu0 %v1912
  %2887 = vmatpush1.bf16.msra.mxu0 %v1911
  %2888 = vmatprep.subr.bf16.mxu0 %v1920
  %2889 = vmatpush1.bf16.msra.mxu0 %v1919
  %2890 = vmatprep.subr.bf16.mxu0 %v1928
  %2891 = vmatpush1.bf16.msra.mxu0 %v1927
  %2892 = vmatprep.subr.bf16.mxu0 %v1936
  %2893 = vmatpush1.bf16.msra.mxu0 %v1935
  %2894 = vmatprep.subr.bf16.mxu0 %v1944
  %2895 = vmatpush1.bf16.msra.mxu0 %v1943
  %2896 = vmatprep.mubr.bf16.mxu0 %v481
  %2897 = vmatmul.mubr.bf16.gmra.mrb[0].mxu0 %v480
  %v2898 = vpop.f32.mrb[0].mxu0
  %v2899 = vadd.f32 %v2858, %v2898
  %v2900 = vpop.f32.mrb[0].mxu0
  %v2901 = vadd.f32 %v2860, %v2900
  %v2902 = vpop.f32.mrb[0].mxu0
  %v2903 = vpop.f32.mrb[0].mxu0
  %2904 = vdwg.mxu0
  %2905 = vmatprep.subr.bf16.mxu0 %v1952
  %2906 = vmatpush1.bf16.msra.mxu0 %v1951
  %2907 = vmatprep.subr.bf16.mxu0 %v1960
  %2908 = vmatpush1.bf16.msra.mxu0 %v1959
  %2909 = vmatprep.subr.bf16.mxu0 %v1968
  %2910 = vmatpush1.bf16.msra.mxu0 %v1967
  %2911 = vmatprep.subr.bf16.mxu0 %v1976
  %2912 = vmatpush1.bf16.msra.mxu0 %v1975
  %2913 = vmatprep.subr.bf16.mxu0 %v1984
  %2914 = vmatpush1.bf16.msra.mxu0 %v1983
  %2915 = vmatprep.subr.bf16.mxu0 %v1992
  %2916 = vmatpush1.bf16.msra.mxu0 %v1991
  %2917 = vmatprep.subr.bf16.mxu0 %v2000
  %2918 = vmatpush1.bf16.msra.mxu0 %v1999
  %2919 = vmatprep.subr.bf16.mxu0 %v2008
  %2920 = vmatpush1.bf16.msra.mxu0 %v2007
  %2921 = vmatprep.subr.bf16.mxu0 %v2016
  %2922 = vmatpush1.bf16.msra.mxu0 %v2015
  %2923 = vmatprep.subr.bf16.mxu0 %v2024
  %2924 = vmatpush1.bf16.msra.mxu0 %v2023
  %2925 = vmatprep.subr.bf16.mxu0 %v2032
  %2926 = vmatpush1.bf16.msra.mxu0 %v2031
  %2927 = vmatprep.subr.bf16.mxu0 %v2040
  %2928 = vmatpush1.bf16.msra.mxu0 %v2039
  %2929 = vmatprep.subr.bf16.mxu0 %v2048
  %2930 = vmatpush1.bf16.msra.mxu0 %v2047
  %2931 = vmatprep.subr.bf16.mxu0 %v2056
  %2932 = vmatpush1.bf16.msra.mxu0 %v2055
  %2933 = vmatprep.subr.bf16.mxu0 %v2064
  %2934 = vmatpush1.bf16.msra.mxu0 %v2063
  %2935 = vmatprep.subr.bf16.mxu0 %v2072
  %2936 = vmatpush1.bf16.msra.mxu0 %v2071
  %2937 = vmatprep.mubr.bf16.mxu0 %v483
  %2938 = vmatmul.mubr.bf16.gmra.mrb[0].mxu0 %v482
  %v2939 = vpop.f32.mrb[0].mxu0
  %v2940 = vadd.f32 %v2899, %v2939
  %v2941 = vpop.f32.mrb[0].mxu0
  %v2942 = vadd.f32 %v2901, %v2941
  %v2943 = vpop.f32.mrb[0].mxu0
  %v2944 = vpop.f32.mrb[0].mxu0
  %2945 = vdwg.mxu0
  %2946 = vmatprep.subr.bf16.mxu0 %v2080
  %2947 = vmatpush1.bf16.msra.mxu0 %v2079
  %2948 = vmatprep.subr.bf16.mxu0 %v2088
  %2949 = vmatpush1.bf16.msra.mxu0 %v2087
  %2950 = vmatprep.subr.bf16.mxu0 0
  %2951 = vmatpush1.bf16.msra.mxu0 0
  %2952 = vmatprep.subr.bf16.mxu0 0
  %2953 = vmatpush1.bf16.msra.mxu0 0
  %2954 = vmatprep.subr.bf16.mxu0 0
  %2955 = vmatpush1.bf16.msra.mxu0 0
  %2956 = vmatprep.subr.bf16.mxu0 0
  %2957 = vmatpush1.bf16.msra.mxu0 0
  %2958 = vmatprep.subr.bf16.mxu0 0
  %2959 = vmatpush1.bf16.msra.mxu0 0
  %2960 = vmatprep.subr.bf16.mxu0 0
  %2961 = vmatpush1.bf16.msra.mxu0 0
  %2962 = vmatprep.subr.bf16.mxu0 0
  %2963 = vmatpush1.bf16.msra.mxu0 0
  %2964 = vmatprep.subr.bf16.mxu0 0
  %2965 = vmatpush1.bf16.msra.mxu0 0
  %2966 = vmatprep.subr.bf16.mxu0 0
  %2967 = vmatpush1.bf16.msra.mxu0 0
  %2968 = vmatprep.subr.bf16.mxu0 0
  %2969 = vmatpush1.bf16.msra.mxu0 0
  %2970 = vmatprep.subr.bf16.mxu0 0
  %2971 = vmatpush1.bf16.msra.mxu0 0
  %2972 = vmatprep.subr.bf16.mxu0 0
  %2973 = vmatpush1.bf16.msra.mxu0 0
  %2974 = vmatprep.subr.bf16.mxu0 0
  %2975 = vmatpush1.bf16.msra.mxu0 0
  %2976 = vmatprep.subr.bf16.mxu0 0
  %2977 = vmatpush1.bf16.msra.mxu0 0
  %2978 = vmatprep.mubr.bf16.mxu0 0
  %2979 = vmatmul.mubr.bf16.gmra.mrb[0].mxu0 %v2493
  %v2980 = vpop.f32.mrb[0].mxu0
  %v2981 = vadd.f32 %v2940, %v2980
  %v2982 = vpop.f32.mrb[0].mxu0
  %v2983 = vadd.f32 %v2942, %v2982
  %v2984 = vpop.f32.mrb[0].mxu0
  %v2985 = vpop.f32.mrb[0].mxu0
  %2986 = vdwg.mxu0
  %2987 = vmatprep.subr.bf16.mxu0 %v1698
  %2988 = vmatpush1.bf16.msra.mxu0 %v1697
  %2989 = vmatprep.subr.bf16.mxu0 %v1706
  %2990 = vmatpush1.bf16.msra.mxu0 %v1705
  %2991 = vmatprep.subr.bf16.mxu0 %v1714
  %2992 = vmatpush1.bf16.msra.mxu0 %v1713
  %2993 = vmatprep.subr.bf16.mxu0 %v1722
  %2994 = vmatpush1.bf16.msra.mxu0 %v1721
  %2995 = vmatprep.subr.bf16.mxu0 %v1730
  %2996 = vmatpush1.bf16.msra.mxu0 %v1729
  %2997 = vmatprep.subr.bf16.mxu0 %v1738
  %2998 = vmatpush1.bf16.msra.mxu0 %v1737
  %2999 = vmatprep.subr.bf16.mxu0 %v1746
  %3000 = vmatpush1.bf16.msra.mxu0 %v1745
  %3001 = vmatprep.subr.bf16.mxu0 %v1754
  %3002 = vmatpush1.bf16.msra.mxu0 %v1753
  %3003 = vmatprep.subr.bf16.mxu0 %v1762
  %3004 = vmatpush1.bf16.msra.mxu0 %v1761
  %3005 = vmatprep.subr.bf16.mxu0 %v1770
  %3006 = vmatpush1.bf16.msra.mxu0 %v1769
  %3007 = vmatprep.subr.bf16.mxu0 %v1778
  %3008 = vmatpush1.bf16.msra.mxu0 %v1777
  %3009 = vmatprep.subr.bf16.mxu0 %v1786
  %3010 = vmatpush1.bf16.msra.mxu0 %v1785
  %3011 = vmatprep.subr.bf16.mxu0 %v1794
  %3012 = vmatpush1.bf16.msra.mxu0 %v1793
  %3013 = vmatprep.subr.bf16.mxu0 %v1802
  %3014 = vmatpush1.bf16.msra.mxu0 %v1801
  %3015 = vmatprep.subr.bf16.mxu0 %v1810
  %3016 = vmatpush1.bf16.msra.mxu0 %v1809
  %3017 = vmatprep.subr.bf16.mxu0 %v1818
  %3018 = vmatpush1.bf16.msra.mxu0 %v1817
  %3019 = vmatprep.mubr.bf16.mxu0 %v479
  %3020 = vmatmul.mubr.bf16.gmra.mrb[0].mxu0 %v478
  %v3021 = vpop.f32.mrb[0].mxu0
  %v3022 = vadd.f32 %v454, %v3021
  %v3023 = vpop.f32.mrb[0].mxu0
  %v3024 = vadd.f32 %v458, %v3023
  %v3025 = vpop.f32.mrb[0].mxu0
  %v3026 = vpop.f32.mrb[0].mxu0
  %3027 = vdwg.mxu0
  %3028 = vmatprep.subr.bf16.mxu0 %v1826
  %3029 = vmatpush1.bf16.msra.mxu0 %v1825
  %3030 = vmatprep.subr.bf16.mxu0 %v1834
  %3031 = vmatpush1.bf16.msra.mxu0 %v1833
  %3032 = vmatprep.subr.bf16.mxu0 %v1842
  %3033 = vmatpush1.bf16.msra.mxu0 %v1841
  %3034 = vmatprep.subr.bf16.mxu0 %v1850
  %3035 = vmatpush1.bf16.msra.mxu0 %v1849
  %3036 = vmatprep.subr.bf16.mxu0 %v1858
  %3037 = vmatpush1.bf16.msra.mxu0 %v1857
  %3038 = vmatprep.subr.bf16.mxu0 %v1866
  %3039 = vmatpush1.bf16.msra.mxu0 %v1865
  %3040 = vmatprep.subr.bf16.mxu0 %v1874
  %3041 = vmatpush1.bf16.msra.mxu0 %v1873
  %3042 = vmatprep.subr.bf16.mxu0 %v1882
  %3043 = vmatpush1.bf16.msra.mxu0 %v1881
  %3044 = vmatprep.subr.bf16.mxu0 %v1890
  %3045 = vmatpush1.bf16.msra.mxu0 %v1889
  %3046 = vmatprep.subr.bf16.mxu0 %v1898
  %3047 = vmatpush1.bf16.msra.mxu0 %v1897
  %3048 = vmatprep.subr.bf16.mxu0 %v1906
  %3049 = vmatpush1.bf16.msra.mxu0 %v1905
  %3050 = vmatprep.subr.bf16.mxu0 %v1914
  %3051 = vmatpush1.bf16.msra.mxu0 %v1913
  %3052 = vmatprep.subr.bf16.mxu0 %v1922
  %3053 = vmatpush1.bf16.msra.mxu0 %v1921
  %3054 = vmatprep.subr.bf16.mxu0 %v1930
  %3055 = vmatpush1.bf16.msra.mxu0 %v1929
  %3056 = vmatprep.subr.bf16.mxu0 %v1938
  %3057 = vmatpush1.bf16.msra.mxu0 %v1937
  %3058 = vmatprep.subr.bf16.mxu0 %v1946
  %3059 = vmatpush1.bf16.msra.mxu0 %v1945
  %3060 = vmatprep.mubr.bf16.mxu0 %v481
  %3061 = vmatmul.mubr.bf16.gmra.mrb[0].mxu0 %v480
  %v3062 = vpop.f32.mrb[0].mxu0
  %v3063 = vadd.f32 %v3022, %v3062
  %v3064 = vpop.f32.mrb[0].mxu0
  %v3065 = vadd.f32 %v3024, %v3064
  %v3066 = vpop.f32.mrb[0].mxu0
  %v3067 = vpop.f32.mrb[0].mxu0
  %3068 = vdwg.mxu0
  %3069 = vmatprep.subr.bf16.mxu0 %v1954
  %3070 = vmatpush1.bf16.msra.mxu0 %v1953
  %3071 = vmatprep.subr.bf16.mxu0 %v1962
  %3072 = vmatpush1.bf16.msra.mxu0 %v1961
  %3073 = vmatprep.subr.bf16.mxu0 %v1970
  %3074 = vmatpush1.bf16.msra.mxu0 %v1969
  %3075 = vmatprep.subr.bf16.mxu0 %v1978
  %3076 = vmatpush1.bf16.msra.mxu0 %v1977
  %3077 = vmatprep.subr.bf16.mxu0 %v1986
  %3078 = vmatpush1.bf16.msra.mxu0 %v1985
  %3079 = vmatprep.subr.bf16.mxu0 %v1994
  %3080 = vmatpush1.bf16.msra.mxu0 %v1993
  %3081 = vmatprep.subr.bf16.mxu0 %v2002
  %3082 = vmatpush1.bf16.msra.mxu0 %v2001
  %3083 = vmatprep.subr.bf16.mxu0 %v2010
  %3084 = vmatpush1.bf16.msra.mxu0 %v2009
  %3085 = vmatprep.subr.bf16.mxu0 %v2018
  %3086 = vmatpush1.bf16.msra.mxu0 %v2017
  %3087 = vmatprep.subr.bf16.mxu0 %v2026
  %3088 = vmatpush1.bf16.msra.mxu0 %v2025
  %3089 = vmatprep.subr.bf16.mxu0 %v2034
  %3090 = vmatpush1.bf16.msra.mxu0 %v2033
  %3091 = vmatprep.subr.bf16.mxu0 %v2042
  %3092 = vmatpush1.bf16.msra.mxu0 %v2041
  %3093 = vmatprep.subr.bf16.mxu0 %v2050
  %3094 = vmatpush1.bf16.msra.mxu0 %v2049
  %3095 = vmatprep.subr.bf16.mxu0 %v2058
  %3096 = vmatpush1.bf16.msra.mxu0 %v2057
  %3097 = vmatprep.subr.bf16.mxu0 %v2066
  %3098 = vmatpush1.bf16.msra.mxu0 %v2065
  %3099 = vmatprep.subr.bf16.mxu0 %v2074
  %3100 = vmatpush1.bf16.msra.mxu0 %v2073
  %3101 = vmatprep.mubr.bf16.mxu0 %v483
  %3102 = vmatmul.mubr.bf16.gmra.mrb[0].mxu0 %v482
  %v3103 = vpop.f32.mrb[0].mxu0
  %v3104 = vadd.f32 %v3063, %v3103
  %v3105 = vpop.f32.mrb[0].mxu0
  %v3106 = vadd.f32 %v3065, %v3105
  %v3107 = vpop.f32.mrb[0].mxu0
  %v3108 = vpop.f32.mrb[0].mxu0
  %3109 = vdwg.mxu0
  %3110 = vmatprep.subr.bf16.mxu0 %v2082
  %3111 = vmatpush1.bf16.msra.mxu0 %v2081
  %3112 = vmatprep.subr.bf16.mxu0 %v2090
  %3113 = vmatpush1.bf16.msra.mxu0 %v2089
  %3114 = vmatprep.subr.bf16.mxu0 0
  %3115 = vmatpush1.bf16.msra.mxu0 0
  %3116 = vmatprep.subr.bf16.mxu0 0
  %3117 = vmatpush1.bf16.msra.mxu0 0
  %3118 = vmatprep.subr.bf16.mxu0 0
  %3119 = vmatpush1.bf16.msra.mxu0 0
  %3120 = vmatprep.subr.bf16.mxu0 0
  %3121 = vmatpush1.bf16.msra.mxu0 0
  %3122 = vmatprep.subr.bf16.mxu0 0
  %3123 = vmatpush1.bf16.msra.mxu0 0
  %3124 = vmatprep.subr.bf16.mxu0 0
  %3125 = vmatpush1.bf16.msra.mxu0 0
  %3126 = vmatprep.subr.bf16.mxu0 0
  %3127 = vmatpush1.bf16.msra.mxu0 0
  %3128 = vmatprep.subr.bf16.mxu0 0
  %3129 = vmatpush1.bf16.msra.mxu0 0
  %3130 = vmatprep.subr.bf16.mxu0 0
  %3131 = vmatpush1.bf16.msra.mxu0 0
  %3132 = vmatprep.subr.bf16.mxu0 0
  %3133 = vmatpush1.bf16.msra.mxu0 0
  %3134 = vmatprep.subr.bf16.mxu0 0
  %3135 = vmatpush1.bf16.msra.mxu0 0
  %3136 = vmatprep.subr.bf16.mxu0 0
  %3137 = vmatpush1.bf16.msra.mxu0 0
  %3138 = vmatprep.subr.bf16.mxu0 0
  %3139 = vmatpush1.bf16.msra.mxu0 0
  %3140 = vmatprep.subr.bf16.mxu0 0
  %3141 = vmatpush1.bf16.msra.mxu0 0
  %3142 = vmatprep.mubr.bf16.mxu0 0
  %3143 = vmatmul.mubr.bf16.gmra.mrb[0].mxu0 %v2493
  %v3144 = vpop.f32.mrb[0].mxu0
  %v3145 = vadd.f32 %v3104, %v3144
  %v3146 = vpop.f32.mrb[0].mxu0
  %v3147 = vadd.f32 %v3106, %v3146
  %v3148 = vpop.f32.mrb[0].mxu0
  %v3149 = vpop.f32.mrb[0].mxu0
  %3150 = vdwg.mxu0
  %v3151 = vmax.f32 %v2653, 0.0
  %v3152 = vmax.f32 %v2655, 0.0
  %v3153 = vmax.f32 %v2817, 0.0
  %v3154 = vmax.f32 %v2819, 0.0
  %v3155 = vmax.f32 %v2981, 0.0
  %v3156 = vmax.f32 %v2983, 0.0
  %v3157 = vmax.f32 %v3145, 0.0
  %v3158 = vmax.f32 %v3147, 0.0
  %v3159 = vpack.c.bf16 %v3151, %v3151
  %v3160 = vpack.c.bf16 %v3152, %v3152
  %v3161 = vpack.c.bf16 %v3153, %v3153
  %v3162 = vpack.c.bf16 %v3154, %v3154
  %v3163 = vpack.c.bf16 %v3155, %v3155
  %v3164 = vpack.c.bf16 %v3156, %v3156
  %v3165 = vpack.c.bf16 %v3157, %v3157
  %v3166 = vpack.c.bf16 %v3158, %v3158
  %v3167 = vld [vmem:[%s3] sm:$0xf]
  %v3168 = vld [vmem:[%s3 + $0x4] sm:$0xf]
  %v3169 = vld [vmem:[%s3 + $0x8] sm:$0xf]
  %v3170 = vld [vmem:[%s3 + $0xc] sm:$0xf]
  %v3171 = vld [vmem:[%s3 + $0x10] sm:$0xf]
  %v3172 = vld [vmem:[%s3 + $0x14] sm:$0xf]
  %v3173 = vld [vmem:[%s3 + $0x18] sm:$0xf]
  %v3174 = vld [vmem:[%s3 + $0x1c] sm:$0xf]
  %v3175 = vld [vmem:[%s3 + $0x20] sm:$0xf]
  %v3176 = vld [vmem:[%s3 + $0x24] sm:$0xf]
  %v3177 = vld [vmem:[%s3 + $0x28] sm:$0xf]
  %v3178 = vld [vmem:[%s3 + $0x2c] sm:$0xf]
  %v3179 = vld [vmem:[%s3 + $0x30] sm:$0xf]
  %v3180 = vld [vmem:[%s3 + $0x34] sm:$0xf]
  %v3181 = vld [vmem:[%s3 + $0x38] sm:$0xf]
  %v3182 = vld [vmem:[%s3 + $0x3c] sm:$0xf]
  %v3183 = vld [vmem:[%s3 + $0x40] sm:$0xf]
  %v3184 = vld [vmem:[%s3 + $0x44] sm:$0xf]
  %v3185 = vld [vmem:[%s3 + $0x48] sm:$0xf]
  %v3186 = vld [vmem:[%s3 + $0x4c] sm:$0xf]
  %v3187 = vld [vmem:[%s3 + $0x50] sm:$0xf]
  %v3188 = vld [vmem:[%s3 + $0x54] sm:$0xf]
  %v3189 = vld [vmem:[%s3 + $0x58] sm:$0xf]
  %v3190 = vld [vmem:[%s3 + $0x5c] sm:$0xf]
  %v3191 = vld [vmem:[%s3 + $0x60] sm:$0xf]
  %v3192 = vld [vmem:[%s3 + $0x64] sm:$0xf]
  %v3193 = vld [vmem:[%s3 + $0x68] sm:$0xf]
  %v3194 = vld [vmem:[%s3 + $0x6c] sm:$0xf]
  %v3195 = vld [vmem:[%s3 + $0x70] sm:$0xf]
  %v3196 = vld [vmem:[%s3 + $0x74] sm:$0xf]
  %v3197 = vld [vmem:[%s3 + $0x78] sm:$0xf]
  %v3198 = vld [vmem:[%s3 + $0x7c] sm:$0xf]
  %v3199 = vld [vmem:[%s3 + $0x80] sm:$0xf]
  %v3200 = vld [vmem:[%s3 + $0x84] sm:$0xf]
  %v3201 = vld [vmem:[%s3 + $0x88] sm:$0xf]
  %v3202 = vld [vmem:[%s3 + $0x8c] sm:$0xf]
  %v3203 = vld [vmem:[%s3 + $0x90] sm:$0xf]
  %v3204 = vld [vmem:[%s3 + $0x94] sm:$0xf]
  %v3205 = vld [vmem:[%s3 + $0x98] sm:$0xf]
  %v3206 = vld [vmem:[%s3 + $0x9c] sm:$0xf]
  %v3207 = vld [vmem:[%s3 + $0xa0] sm:$0xf]
  %v3208 = vld [vmem:[%s3 + $0xa4] sm:$0xf]
  %v3209 = vld [vmem:[%s3 + $0xa8] sm:$0xf]
  %v3210 = vld [vmem:[%s3 + $0xac] sm:$0xf]
  %v3211 = vld [vmem:[%s3 + $0xb0] sm:$0xf]
  %v3212 = vld [vmem:[%s3 + $0xb4] sm:$0xf]
  %v3213 = vld [vmem:[%s3 + $0xb8] sm:$0xf]
  %v3214 = vld [vmem:[%s3 + $0xbc] sm:$0xf]
  %v3215 = vld [vmem:[%s3 + $0xc0] sm:$0xf]
  %v3216 = vld [vmem:[%s3 + $0xc4] sm:$0xf]
  %v3217 = vld [vmem:[%s3 + $0xc8] sm:$0xf]
  %v3218 = vld [vmem:[%s3 + $0xcc] sm:$0xf]
  %v3219 = vld [vmem:[%s3 + $0xd0] sm:$0xf]
  %v3220 = vld [vmem:[%s3 + $0xd4] sm:$0xf]
  %v3221 = vld [vmem:[%s3 + $0xd8] sm:$0xf]
  %v3222 = vld [vmem:[%s3 + $0xdc] sm:$0xf]
  %v3223 = vld [vmem:[%s3 + $0xe0] sm:$0xf]
  %v3224 = vld [vmem:[%s3 + $0xe4] sm:$0xf]
  %v3225 = vld [vmem:[%s3 + $0xe8] sm:$0xf]
  %v3226 = vld [vmem:[%s3 + $0xec] sm:$0xf]
  %v3227 = vld [vmem:[%s3 + $0xf0] sm:$0xf]
  %v3228 = vld [vmem:[%s3 + $0xf4] sm:$0xf]
  %v3229 = vld [vmem:[%s3 + $0xf8] sm:$0xf]
  %v3230 = vld [vmem:[%s3 + $0xfc] sm:$0xf]
  %v3231 = vld [vmem:[%s3 + $0x100] sm:$0xf]
  %v3232 = vld [vmem:[%s3 + $0x104] sm:$0xf]
  %v3233 = vld [vmem:[%s3 + $0x108] sm:$0xf]
  %v3234 = vld [vmem:[%s3 + $0x10c] sm:$0xf]
  %v3235 = vld [vmem:[%s3 + $0x110] sm:$0xf]
  %v3236 = vld [vmem:[%s3 + $0x114] sm:$0xf]
  %v3237 = vld [vmem:[%s3 + $0x118] sm:$0xf]
  %v3238 = vld [vmem:[%s3 + $0x11c] sm:$0xf]
  %v3239 = vld [vmem:[%s3 + $0x120] sm:$0xf]
  %v3240 = vld [vmem:[%s3 + $0x124] sm:$0xf]
  %v3241 = vld [vmem:[%s3 + $0x128] sm:$0xf]
  %v3242 = vld [vmem:[%s3 + $0x12c] sm:$0xf]
  %v3243 = vld [vmem:[%s3 + $0x130] sm:$0xf]
  %v3244 = vld [vmem:[%s3 + $0x134] sm:$0xf]
  %v3245 = vld [vmem:[%s3 + $0x138] sm:$0xf]
  %v3246 = vld [vmem:[%s3 + $0x13c] sm:$0xf]
  %v3247 = vld [vmem:[%s3 + $0x140] sm:$0xf]
  %v3248 = vld [vmem:[%s3 + $0x144] sm:$0xf]
  %v3249 = vld [vmem:[%s3 + $0x148] sm:$0xf]
  %v3250 = vld [vmem:[%s3 + $0x14c] sm:$0xf]
  %v3251 = vld [vmem:[%s3 + $0x150] sm:$0xf]
  %v3252 = vld [vmem:[%s3 + $0x154] sm:$0xf]
  %v3253 = vld [vmem:[%s3 + $0x158] sm:$0xf]
  %v3254 = vld [vmem:[%s3 + $0x15c] sm:$0xf]
  %v3255 = vld [vmem:[%s3 + $0x160] sm:$0xf]
  %v3256 = vld [vmem:[%s3 + $0x164] sm:$0xf]
  %v3257 = vld [vmem:[%s3 + $0x168] sm:$0xf]
  %v3258 = vld [vmem:[%s3 + $0x16c] sm:$0xf]
  %v3259 = vld [vmem:[%s3 + $0x170] sm:$0xf]
  %v3260 = vld [vmem:[%s3 + $0x174] sm:$0xf]
  %v3261 = vld [vmem:[%s3 + $0x178] sm:$0xf]
  %v3262 = vld [vmem:[%s3 + $0x17c] sm:$0xf]
  %v3263 = vld [vmem:[%s3 + $0x180] sm:$0xf]
  %v3264 = vld [vmem:[%s3 + $0x184] sm:$0xf]
  %v3265 = vld [vmem:[%s3 + $0x188] sm:$0xf]
  %v3266 = vld [vmem:[%s3 + $0x18c] sm:$0xf]
  %v3267 = vld [vmem:[%s3 + $0x190] sm:$0xf]
  %v3268 = vld [vmem:[%s3 + $0x194] sm:$0xf]
  %v3269 = vld [vmem:[%s3 + $0x198] sm:$0xf]
  %v3270 = vld [vmem:[%s3 + $0x19c] sm:$0xf]
  %v3271 = vld [vmem:[%s3 + $0x1a0] sm:$0xf]
  %v3272 = vld [vmem:[%s3 + $0x1a4] sm:$0xf]
  %v3273 = vld [vmem:[%s3 + $0x1a8] sm:$0xf]
  %v3274 = vld [vmem:[%s3 + $0x1ac] sm:$0xf]
  %v3275 = vld [vmem:[%s3 + $0x1b0] sm:$0xf]
  %v3276 = vld [vmem:[%s3 + $0x1b4] sm:$0xf]
  %v3277 = vld [vmem:[%s3 + $0x1b8] sm:$0xf]
  %v3278 = vld [vmem:[%s3 + $0x1bc] sm:$0xf]
  %v3279 = vld [vmem:[%s3 + $0x1c0] sm:$0xf]
  %v3280 = vld [vmem:[%s3 + $0x1c4] sm:$0xf]
  %v3281 = vld [vmem:[%s3 + $0x1c8] sm:$0xf]
  %v3282 = vld [vmem:[%s3 + $0x1cc] sm:$0xf]
  %v3283 = vld [vmem:[%s3 + $0x1d0] sm:$0xf]
  %v3284 = vld [vmem:[%s3 + $0x1d4] sm:$0xf]
  %v3285 = vld [vmem:[%s3 + $0x1d8] sm:$0xf]
  %v3286 = vld [vmem:[%s3 + $0x1dc] sm:$0xf]
  %v3287 = vld [vmem:[%s3 + $0x1e0] sm:$0xf]
  %v3288 = vld [vmem:[%s3 + $0x1e4] sm:$0xf]
  %v3289 = vld [vmem:[%s3 + $0x1e8] sm:$0xf]
  %v3290 = vld [vmem:[%s3 + $0x1ec] sm:$0xf]
  %v3291 = vld [vmem:[%s3 + $0x1f0] sm:$0xf]
  %v3292 = vld [vmem:[%s3 + $0x1f4] sm:$0xf]
  %v3293 = vld [vmem:[%s3 + $0x1f8] sm:$0xf]
  %v3294 = vld [vmem:[%s3 + $0x1fc] sm:$0xf]
  %v3295 = vld [vmem:[%s4] sm:$0x1]
  %v3297 = vlaneseq
  %v3298 = vshrl.u32 %v3297, 7
  %v3299 = vsub.s32 0, %v3298
  %v3300 = vrot.slane %v3295, %v3299
  %v3430 = vunpack.c.l.b16 %v3167
  %v3431 = vunpack.c.l.b16 %v3168
  %v3432 = vunpack.c.l.b16 %v3169
  %v3433 = vunpack.c.l.b16 %v3170
  %v3434 = vunpack.c.l.b16 %v3171
  %v3435 = vunpack.c.l.b16 %v3172
  %v3436 = vunpack.c.l.b16 %v3173
  %v3437 = vunpack.c.l.b16 %v3174
  %v3438 = vunpack.c.l.b16 %v3175
  %v3439 = vunpack.c.l.b16 %v3176
  %v3440 = vunpack.c.l.b16 %v3177
  %v3441 = vunpack.c.l.b16 %v3178
  %v3442 = vunpack.c.l.b16 %v3179
  %v3443 = vunpack.c.l.b16 %v3180
  %v3444 = vunpack.c.l.b16 %v3181
  %v3445 = vunpack.c.l.b16 %v3182
  %v3446 = vunpack.c.l.b16 %v3183
  %v3447 = vunpack.c.l.b16 %v3184
  %v3448 = vunpack.c.l.b16 %v3185
  %v3449 = vunpack.c.l.b16 %v3186
  %v3450 = vunpack.c.l.b16 %v3187
  %v3451 = vunpack.c.l.b16 %v3188
  %v3452 = vunpack.c.l.b16 %v3189
  %v3453 = vunpack.c.l.b16 %v3190
  %v3454 = vunpack.c.l.b16 %v3191
  %v3455 = vunpack.c.l.b16 %v3192
  %v3456 = vunpack.c.l.b16 %v3193
  %v3457 = vunpack.c.l.b16 %v3194
  %v3458 = vunpack.c.l.b16 %v3195
  %v3459 = vunpack.c.l.b16 %v3196
  %v3460 = vunpack.c.l.b16 %v3197
  %v3461 = vunpack.c.l.b16 %v3198
  %v3462 = vunpack.c.l.b16 %v3199
  %v3463 = vunpack.c.l.b16 %v3200
  %v3464 = vunpack.c.l.b16 %v3201
  %v3465 = vunpack.c.l.b16 %v3202
  %v3466 = vunpack.c.l.b16 %v3203
  %v3467 = vunpack.c.l.b16 %v3204
  %v3468 = vunpack.c.l.b16 %v3205
  %v3469 = vunpack.c.l.b16 %v3206
  %v3470 = vunpack.c.l.b16 %v3207
  %v3471 = vunpack.c.l.b16 %v3208
  %v3472 = vunpack.c.l.b16 %v3209
  %v3473 = vunpack.c.l.b16 %v3210
  %v3474 = vunpack.c.l.b16 %v3211
  %v3475 = vunpack.c.l.b16 %v3212
  %v3476 = vunpack.c.l.b16 %v3213
  %v3477 = vunpack.c.l.b16 %v3214
  %v3478 = vunpack.c.l.b16 %v3215
  %v3479 = vunpack.c.l.b16 %v3216
  %v3480 = vunpack.c.l.b16 %v3217
  %v3481 = vunpack.c.l.b16 %v3218
  %v3482 = vunpack.c.l.b16 %v3219
  %v3483 = vunpack.c.l.b16 %v3220
  %v3484 = vunpack.c.l.b16 %v3221
  %v3485 = vunpack.c.l.b16 %v3222
  %v3486 = vunpack.c.l.b16 %v3223
  %v3487 = vunpack.c.l.b16 %v3224
  %v3488 = vunpack.c.l.b16 %v3225
  %v3489 = vunpack.c.l.b16 %v3226
  %v3490 = vunpack.c.l.b16 %v3227
  %v3491 = vunpack.c.l.b16 %v3228
  %v3492 = vunpack.c.l.b16 %v3229
  %v3493 = vunpack.c.l.b16 %v3230
  %v3494 = vunpack.c.l.b16 %v3231
  %v3495 = vunpack.c.l.b16 %v3232
  %v3496 = vunpack.c.l.b16 %v3233
  %v3497 = vunpack.c.l.b16 %v3234
  %v3498 = vunpack.c.l.b16 %v3235
  %v3499 = vunpack.c.l.b16 %v3236
  %v3500 = vunpack.c.l.b16 %v3237
  %v3501 = vunpack.c.l.b16 %v3238
  %v3502 = vunpack.c.l.b16 %v3239
  %v3503 = vunpack.c.l.b16 %v3240
  %v3504 = vunpack.c.l.b16 %v3241
  %v3505 = vunpack.c.l.b16 %v3242
  %v3506 = vunpack.c.l.b16 %v3243
  %v3507 = vunpack.c.l.b16 %v3244
  %v3508 = vunpack.c.l.b16 %v3245
  %v3509 = vunpack.c.l.b16 %v3246
  %v3510 = vunpack.c.l.b16 %v3247
  %v3511 = vunpack.c.l.b16 %v3248
  %v3512 = vunpack.c.l.b16 %v3249
  %v3513 = vunpack.c.l.b16 %v3250
  %v3514 = vunpack.c.l.b16 %v3251
  %v3515 = vunpack.c.l.b16 %v3252
  %v3516 = vunpack.c.l.b16 %v3253
  %v3517 = vunpack.c.l.b16 %v3254
  %v3518 = vunpack.c.l.b16 %v3255
  %v3519 = vunpack.c.l.b16 %v3256
  %v3520 = vunpack.c.l.b16 %v3257
  %v3521 = vunpack.c.l.b16 %v3258
  %v3522 = vunpack.c.l.b16 %v3259
  %v3523 = vunpack.c.l.b16 %v3260
  %v3524 = vunpack.c.l.b16 %v3261
  %v3525 = vunpack.c.l.b16 %v3262
  %v3526 = vunpack.c.l.b16 %v3263
  %v3527 = vunpack.c.l.b16 %v3264
  %v3528 = vunpack.c.l.b16 %v3265
  %v3529 = vunpack.c.l.b16 %v3266
  %v3530 = vunpack.c.l.b16 %v3267
  %v3531 = vunpack.c.l.b16 %v3268
  %v3532 = vunpack.c.l.b16 %v3269
  %v3533 = vunpack.c.l.b16 %v3270
  %v3534 = vunpack.c.l.b16 %v3271
  %v3535 = vunpack.c.l.b16 %v3272
  %v3536 = vunpack.c.l.b16 %v3273
  %v3537 = vunpack.c.l.b16 %v3274
  %v3538 = vunpack.c.l.b16 %v3275
  %v3539 = vunpack.c.l.b16 %v3276
  %v3540 = vunpack.c.l.b16 %v3277
  %v3541 = vunpack.c.l.b16 %v3278
  %v3542 = vunpack.c.l.b16 %v3279
  %v3543 = vunpack.c.l.b16 %v3280
  %v3544 = vunpack.c.l.b16 %v3281
  %v3545 = vunpack.c.l.b16 %v3282
  %v3546 = vunpack.c.l.b16 %v3283
  %v3547 = vunpack.c.l.b16 %v3284
  %v3548 = vunpack.c.l.b16 %v3285
  %v3549 = vunpack.c.l.b16 %v3286
  %v3550 = vunpack.c.l.b16 %v3287
  %v3551 = vunpack.c.l.b16 %v3288
  %v3552 = vunpack.c.l.b16 %v3289
  %v3553 = vunpack.c.l.b16 %v3290
  %v3554 = vunpack.c.l.b16 %v3291
  %v3555 = vunpack.c.l.b16 %v3292
  %v3556 = vunpack.c.l.b16 %v3293
  %v3557 = vunpack.c.l.b16 %v3294
  %v3558 = vpack.c.b16 %v3431, %v3430
  %v3559 = vpack.c.b16 %v3433, %v3432
  %v3560 = vpack.c.b16 %v3435, %v3434
  %v3561 = vpack.c.b16 %v3437, %v3436
  %v3562 = vpack.c.b16 %v3439, %v3438
  %v3563 = vpack.c.b16 %v3441, %v3440
  %v3564 = vpack.c.b16 %v3443, %v3442
  %v3565 = vpack.c.b16 %v3445, %v3444
  %v3566 = vpack.c.b16 %v3447, %v3446
  %v3567 = vpack.c.b16 %v3449, %v3448
  %v3568 = vpack.c.b16 %v3451, %v3450
  %v3569 = vpack.c.b16 %v3453, %v3452
  %v3570 = vpack.c.b16 %v3455, %v3454
  %v3571 = vpack.c.b16 %v3457, %v3456
  %v3572 = vpack.c.b16 %v3459, %v3458
  %v3573 = vpack.c.b16 %v3461, %v3460
  %v3574 = vpack.c.b16 %v3463, %v3462
  %v3575 = vpack.c.b16 %v3465, %v3464
  %v3576 = vpack.c.b16 %v3467, %v3466
  %v3577 = vpack.c.b16 %v3469, %v3468
  %v3578 = vpack.c.b16 %v3471, %v3470
  %v3579 = vpack.c.b16 %v3473, %v3472
  %v3580 = vpack.c.b16 %v3475, %v3474
  %v3581 = vpack.c.b16 %v3477, %v3476
  %v3582 = vpack.c.b16 %v3479, %v3478
  %v3583 = vpack.c.b16 %v3481, %v3480
  %v3584 = vpack.c.b16 %v3483, %v3482
  %v3585 = vpack.c.b16 %v3485, %v3484
  %v3586 = vpack.c.b16 %v3487, %v3486
  %v3587 = vpack.c.b16 %v3489, %v3488
  %v3588 = vpack.c.b16 %v3491, %v3490
  %v3589 = vpack.c.b16 %v3493, %v3492
  %v3590 = vpack.c.b16 %v3495, %v3494
  %v3591 = vpack.c.b16 %v3497, %v3496
  %v3592 = vpack.c.b16 %v3499, %v3498
  %v3593 = vpack.c.b16 %v3501, %v3500
  %v3594 = vpack.c.b16 %v3503, %v3502
  %v3595 = vpack.c.b16 %v3505, %v3504
  %v3596 = vpack.c.b16 %v3507, %v3506
  %v3597 = vpack.c.b16 %v3509, %v3508
  %v3598 = vpack.c.b16 %v3511, %v3510
  %v3599 = vpack.c.b16 %v3513, %v3512
  %v3600 = vpack.c.b16 %v3515, %v3514
  %v3601 = vpack.c.b16 %v3517, %v3516
  %v3602 = vpack.c.b16 %v3519, %v3518
  %v3603 = vpack.c.b16 %v3521, %v3520
  %v3604 = vpack.c.b16 %v3523, %v3522
  %v3605 = vpack.c.b16 %v3525, %v3524
  %v3606 = vpack.c.b16 %v3527, %v3526
  %v3607 = vpack.c.b16 %v3529, %v3528
  %v3608 = vpack.c.b16 %v3531, %v3530
  %v3609 = vpack.c.b16 %v3533, %v3532
  %v3610 = vpack.c.b16 %v3535, %v3534
  %v3611 = vpack.c.b16 %v3537, %v3536
  %v3612 = vpack.c.b16 %v3539, %v3538
  %v3613 = vpack.c.b16 %v3541, %v3540
  %v3614 = vpack.c.b16 %v3543, %v3542
  %v3615 = vpack.c.b16 %v3545, %v3544
  %v3616 = vpack.c.b16 %v3547, %v3546
  %v3617 = vpack.c.b16 %v3549, %v3548
  %v3618 = vpack.c.b16 %v3551, %v3550
  %v3619 = vpack.c.b16 %v3553, %v3552
  %v3620 = vpack.c.b16 %v3555, %v3554
  %v3621 = vpack.c.b16 %v3557, %v3556
  %3686 = vmatprep.subr.bf16.mxu0 0
  %3687 = vmatpush1.bf16.msra.mxu0 %v3558
  %3688 = vmatprep.subr.bf16.mxu0 0
  %3689 = vmatpush1.bf16.msra.mxu0 %v3559
  %3690 = vmatprep.subr.bf16.mxu0 0
  %3691 = vmatpush1.bf16.msra.mxu0 %v3560
  %3692 = vmatprep.subr.bf16.mxu0 0
  %3693 = vmatpush1.bf16.msra.mxu0 %v3561
  %3694 = vmatprep.subr.bf16.mxu0 0
  %3695 = vmatpush1.bf16.msra.mxu0 %v3562
  %3696 = vmatprep.subr.bf16.mxu0 0
  %3697 = vmatpush1.bf16.msra.mxu0 %v3563
  %3698 = vmatprep.subr.bf16.mxu0 0
  %3699 = vmatpush1.bf16.msra.mxu0 %v3564
  %3700 = vmatprep.subr.bf16.mxu0 0
  %3701 = vmatpush1.bf16.msra.mxu0 %v3565
  %3702 = vmatprep.subr.bf16.mxu0 0
  %3703 = vmatpush1.bf16.msra.mxu0 %v3566
  %3704 = vmatprep.subr.bf16.mxu0 0
  %3705 = vmatpush1.bf16.msra.mxu0 %v3567
  %3706 = vmatprep.subr.bf16.mxu0 0
  %3707 = vmatpush1.bf16.msra.mxu0 %v3568
  %3708 = vmatprep.subr.bf16.mxu0 0
  %3709 = vmatpush1.bf16.msra.mxu0 %v3569
  %3710 = vmatprep.subr.bf16.mxu0 0
  %3711 = vmatpush1.bf16.msra.mxu0 %v3570
  %3712 = vmatprep.subr.bf16.mxu0 0
  %3713 = vmatpush1.bf16.msra.mxu0 %v3571
  %3714 = vmatprep.subr.bf16.mxu0 0
  %3715 = vmatpush1.bf16.msra.mxu0 %v3572
  %3716 = vmatprep.subr.bf16.mxu0 0
  %3717 = vmatpush1.bf16.msra.mxu0 %v3573
  %3718 = vmatprep.mubr.bf16.mxu0 %v3160
  %3719 = vmatmul.mubr.bf16.gmra.mrb[0].mxu0 %v3159
  %v3720 = vpop.f32.mrb[0].mxu0
  %v3721 = vadd.f32 %v3300, %v3720
  %v3722 = vpop.f32.mrb[0].mxu0
  %v3723 = vpop.f32.mrb[0].mxu0
  %v3724 = vpop.f32.mrb[0].mxu0
  %3725 = vdwg.mxu0
  %3726 = vmatprep.subr.bf16.mxu0 0
  %3727 = vmatpush1.bf16.msra.mxu0 %v3574
  %3728 = vmatprep.subr.bf16.mxu0 0
  %3729 = vmatpush1.bf16.msra.mxu0 %v3575
  %3730 = vmatprep.subr.bf16.mxu0 0
  %3731 = vmatpush1.bf16.msra.mxu0 %v3576
  %3732 = vmatprep.subr.bf16.mxu0 0
  %3733 = vmatpush1.bf16.msra.mxu0 %v3577
  %3734 = vmatprep.subr.bf16.mxu0 0
  %3735 = vmatpush1.bf16.msra.mxu0 %v3578
  %3736 = vmatprep.subr.bf16.mxu0 0
  %3737 = vmatpush1.bf16.msra.mxu0 %v3579
  %3738 = vmatprep.subr.bf16.mxu0 0
  %3739 = vmatpush1.bf16.msra.mxu0 %v3580
  %3740 = vmatprep.subr.bf16.mxu0 0
  %3741 = vmatpush1.bf16.msra.mxu0 %v3581
  %3742 = vmatprep.subr.bf16.mxu0 0
  %3743 = vmatpush1.bf16.msra.mxu0 %v3582
  %3744 = vmatprep.subr.bf16.mxu0 0
  %3745 = vmatpush1.bf16.msra.mxu0 %v3583
  %3746 = vmatprep.subr.bf16.mxu0 0
  %3747 = vmatpush1.bf16.msra.mxu0 %v3584
  %3748 = vmatprep.subr.bf16.mxu0 0
  %3749 = vmatpush1.bf16.msra.mxu0 %v3585
  %3750 = vmatprep.subr.bf16.mxu0 0
  %3751 = vmatpush1.bf16.msra.mxu0 %v3586
  %3752 = vmatprep.subr.bf16.mxu0 0
  %3753 = vmatpush1.bf16.msra.mxu0 %v3587
  %3754 = vmatprep.subr.bf16.mxu0 0
  %3755 = vmatpush1.bf16.msra.mxu0 %v3588
  %3756 = vmatprep.subr.bf16.mxu0 0
  %3757 = vmatpush1.bf16.msra.mxu0 %v3589
  %3758 = vmatprep.mubr.bf16.mxu0 %v3162
  %3759 = vmatmul.mubr.bf16.gmra.mrb[0].mxu0 %v3161
  %v3760 = vpop.f32.mrb[0].mxu0
  %v3761 = vadd.f32 %v3721, %v3760
  %v3762 = vpop.f32.mrb[0].mxu0
  %v3763 = vpop.f32.mrb[0].mxu0
  %v3764 = vpop.f32.mrb[0].mxu0
  %3765 = vdwg.mxu0
  %3766 = vmatprep.subr.bf16.mxu0 0
  %3767 = vmatpush1.bf16.msra.mxu0 %v3590
  %3768 = vmatprep.subr.bf16.mxu0 0
  %3769 = vmatpush1.bf16.msra.mxu0 %v3591
  %3770 = vmatprep.subr.bf16.mxu0 0
  %3771 = vmatpush1.bf16.msra.mxu0 %v3592
  %3772 = vmatprep.subr.bf16.mxu0 0
  %3773 = vmatpush1.bf16.msra.mxu0 %v3593
  %3774 = vmatprep.subr.bf16.mxu0 0
  %3775 = vmatpush1.bf16.msra.mxu0 %v3594
  %3776 = vmatprep.subr.bf16.mxu0 0
  %3777 = vmatpush1.bf16.msra.mxu0 %v3595
  %3778 = vmatprep.subr.bf16.mxu0 0
  %3779 = vmatpush1.bf16.msra.mxu0 %v3596
  %3780 = vmatprep.subr.bf16.mxu0 0
  %3781 = vmatpush1.bf16.msra.mxu0 %v3597
  %3782 = vmatprep.subr.bf16.mxu0 0
  %3783 = vmatpush1.bf16.msra.mxu0 %v3598
  %3784 = vmatprep.subr.bf16.mxu0 0
  %3785 = vmatpush1.bf16.msra.mxu0 %v3599
  %3786 = vmatprep.subr.bf16.mxu0 0
  %3787 = vmatpush1.bf16.msra.mxu0 %v3600
  %3788 = vmatprep.subr.bf16.mxu0 0
  %3789 = vmatpush1.bf16.msra.mxu0 %v3601
  %3790 = vmatprep.subr.bf16.mxu0 0
  %3791 = vmatpush1.bf16.msra.mxu0 %v3602
  %3792 = vmatprep.subr.bf16.mxu0 0
  %3793 = vmatpush1.bf16.msra.mxu0 %v3603
  %3794 = vmatprep.subr.bf16.mxu0 0
  %3795 = vmatpush1.bf16.msra.mxu0 %v3604
  %3796 = vmatprep.subr.bf16.mxu0 0
  %3797 = vmatpush1.bf16.msra.mxu0 %v3605
  %3798 = vmatprep.mubr.bf16.mxu0 %v3164
  %3799 = vmatmul.mubr.bf16.gmra.mrb[0].mxu0 %v3163
  %v3800 = vpop.f32.mrb[0].mxu0
  %v3801 = vadd.f32 %v3761, %v3800
  %v3802 = vpop.f32.mrb[0].mxu0
  %v3803 = vpop.f32.mrb[0].mxu0
  %v3804 = vpop.f32.mrb[0].mxu0
  %3805 = vdwg.mxu0
  %3806 = vmatprep.subr.bf16.mxu0 0
  %3807 = vmatpush1.bf16.msra.mxu0 %v3606
  %3808 = vmatprep.subr.bf16.mxu0 0
  %3809 = vmatpush1.bf16.msra.mxu0 %v3607
  %3810 = vmatprep.subr.bf16.mxu0 0
  %3811 = vmatpush1.bf16.msra.mxu0 %v3608
  %3812 = vmatprep.subr.bf16.mxu0 0
  %3813 = vmatpush1.bf16.msra.mxu0 %v3609
  %3814 = vmatprep.subr.bf16.mxu0 0
  %3815 = vmatpush1.bf16.msra.mxu0 %v3610
  %3816 = vmatprep.subr.bf16.mxu0 0
  %3817 = vmatpush1.bf16.msra.mxu0 %v3611
  %3818 = vmatprep.subr.bf16.mxu0 0
  %3819 = vmatpush1.bf16.msra.mxu0 %v3612
  %3820 = vmatprep.subr.bf16.mxu0 0
  %3821 = vmatpush1.bf16.msra.mxu0 %v3613
  %3822 = vmatprep.subr.bf16.mxu0 0
  %3823 = vmatpush1.bf16.msra.mxu0 %v3614
  %3824 = vmatprep.subr.bf16.mxu0 0
  %3825 = vmatpush1.bf16.msra.mxu0 %v3615
  %3826 = vmatprep.subr.bf16.mxu0 0
  %3827 = vmatpush1.bf16.msra.mxu0 %v3616
  %3828 = vmatprep.subr.bf16.mxu0 0
  %3829 = vmatpush1.bf16.msra.mxu0 %v3617
  %3830 = vmatprep.subr.bf16.mxu0 0
  %3831 = vmatpush1.bf16.msra.mxu0 %v3618
  %3832 = vmatprep.subr.bf16.mxu0 0
  %3833 = vmatpush1.bf16.msra.mxu0 %v3619
  %3834 = vmatprep.subr.bf16.mxu0 0
  %3835 = vmatpush1.bf16.msra.mxu0 %v3620
  %3836 = vmatprep.subr.bf16.mxu0 0
  %3837 = vmatpush1.bf16.msra.mxu0 %v3621
  %3838 = vmatprep.mubr.bf16.mxu0 %v3166
  %3839 = vmatmul.mubr.bf16.gmra.mrb[0].mxu0 %v3165
  %v3840 = vpop.f32.mrb[0].mxu0
  %v3841 = vadd.f32 %v3801, %v3840
  %v3842 = vpop.f32.mrb[0].mxu0
  %v3843 = vpop.f32.mrb[0].mxu0
  %v3844 = vpop.f32.mrb[0].mxu0
  %3845 = vdwg.mxu0
  %vm3846 = vcmask 64512
  %3847 = vst.msk [vmem:[%s5] sm:$0xff] %vm3846, %v3841
  // Predicated region
  $region22: #{regression_net_forward.5} parent=0 // pred_check
    _
  $region23: #{regression_net_forward.5} parent=0 // pred_check_branch
    %3849 = sbr.rel (0) target = $region25
  $region24: #{regression_net_forward.5} parent=0 // pred_region
    _
  $region25: #{regression_net_forward.5} parent=0 // pred_fallthru
    _
  // Predicated region
  $region26: #{regression_net_forward.5} parent=0 // pred_check
    _
  $region27: #{regression_net_forward.5} parent=0 // pred_check_branch
    %3851 = sbr.rel (0) target = $region29
  $region28: #{regression_net_forward.5} parent=0 // pred_region
    _
  $region29: #{regression_net_forward.5} parent=0 // pred_fallthru
    _

</llo_original>
